<compile_context>
chip_gen: v7x
topology: tpu7x:2x2x1
jax: 0.10.0
libtpu: 0.0.40
codegen_flags: <defaults>
</compile_context>

<pallas_src>
import functools

import jax
import jax.numpy as jnp
from jax import lax
from jax.experimental import pallas as pl
from jax.experimental.pallas import tpu as pltpu


def _round_up(x, m):
    return ((x + m - 1) // m) * m


def _vmem_limit_bytes():
    """Scoped-VMEM limit: 0.85 of physical VMEM on 128 MiB parts (v5e/v6e), 0.7 on
    smaller parts (v7x, 64 MiB/TC) to leave compiler-internal scratch headroom."""
    try:
        cap = int(pltpu.get_tpu_info().vmem_capacity_bytes)
    except Exception:
        cap = 64 * 1024 * 1024  # conservative default (v7x per-core VMEM)
    frac = 0.85 if cap >= (128 << 20) else 0.7
    return max(32 * 1024 * 1024, int(cap * frac))


def _choose_tile_q(n_pad, vmem_limit_bytes):
    """Largest multiple-of-128 query tile whose live planes fit the VMEM budget.

    Peak live data per tile is ~5 (n_pad, TILE_Q) planes (distance carry plus
    compare/select temporaries) -> ~20 B/element, plus the resident candidate column,
    which lane-pads to a full vreg row (512 B per candidate, x2 if double-buffered).
    """
    resident = 2 * 512 * n_pad + (2 << 20)
    budget = max(vmem_limit_bytes - resident, 1 << 20)
    t = (budget // (20 * n_pad) // 128) * 128
    # TODO(synk): when the budget forces t < 128 (very large matrices), add a second
    # "arbitrary" grid axis over candidate chunks with a running k-best merge in VMEM
    # scratch so neither the resident candidates nor the distance plane scale with the
    # full n_pad (needed for v7x's 64 MiB VMEM).
    return int(max(128, min(t, 2048)))


def _knn_impute_kernel(cand_col_ref, q_ref, out_ref, *, k, n_pad):
    cand_col = cand_col_ref[...]      # (n_pad, 1), +inf where not a candidate
    q = q_ref[...]                    # (1, tile_q) queries, lane-dense
    big = jnp.float32(jnp.inf)

    # |v - q| gives the same neighbour ordering as (v - q)^2 in 1-D and saves one
    # full (n_pad, tile_q) VPU multiply pass.  Excluded candidates are +inf.
    d = jnp.abs(cand_col - q)         # (n_pad, tile_q)

    # Small (n_pad, 1) iota, broadcast on use (never a standalone (n_pad, tile_q) plane).
    row_idx = lax.broadcasted_iota(jnp.int32, (n_pad, 1), 0)
    acc0 = jnp.zeros(q.shape, jnp.float32)

    def one_round(_, carry):
        d, acc = carry
        min_d = jnp.min(d, axis=0, keepdims=True)                       # nearest distance
        is_min = d == min_d
        sel = jnp.min(jnp.where(is_min, row_idx, n_pad),                # first argmin
                      axis=0, keepdims=True)
        onehot = row_idx == sel                                         # (n_pad, tile_q)
        # Exact gather of the selected candidate value via a masked cross-sublane min
        # (replaces the M=1 f32 MXU gather; no precision truncation, no onehot f32 cast).
        val = jnp.min(jnp.where(onehot, cand_col, big), axis=0, keepdims=True)
        acc = acc + val
        d = jnp.where(onehot, big, d)                                   # knock out neighbour
        return d, acc

    # k is small (default 5); unrolled fori_loop keeps LLO visibility while bounding
    # live ranges to the (d, acc) carry.
    _, acc = lax.fori_loop(0, k, one_round, (d, acc0), unroll=True)
    out_ref[...] = acc * jnp.float32(1.0 / k)                           # mean of k nearest


def knn_impute_all(x_pad, cand_col, *, k, n_pad, tile_q, vmem_limit, single_buffer):
    """One Jacobi sweep: KNN-imputed value for every (flattened, padded) cell."""
    q = x_pad.reshape(1, n_pad)
    grid = (n_pad // tile_q,)

    if single_buffer:
        # Constant index map -> double-buffering the resident candidates is pure waste.
        cand_spec = pl.BlockSpec((n_pad, 1), lambda i: (0, 0),
                                 pipeline_mode=pl.Buffered(1))
    else:
        cand_spec = pl.BlockSpec((n_pad, 1), lambda i: (0, 0))

    cost = pl.CostEstimate(flops=int(n_pad) * int(n_pad) * (2 + 6 * k),
                           transcendentals=0,
                           bytes_accessed=int(12 * n_pad))

    out = pl.pallas_call(
        functools.partial(_knn_impute_kernel, k=k, n_pad=n_pad),
        grid=grid,
        in_specs=[
            cand_spec,                                      # candidates (sublanes), resident
            pl.BlockSpec((1, tile_q), lambda i: (0, i)),    # query tile, lane-dense
        ],
        out_specs=pl.BlockSpec((1, tile_q), lambda i: (0, i)),  # lane-dense, unmasked stores
        out_shape=jax.ShapeDtypeStruct((1, n_pad), jnp.float32),
        compiler_params=pltpu.CompilerParams(
            dimension_semantics=("parallel",),   # shard query tiles across TensorCores
            vmem_limit_bytes=int(vmem_limit),
        ),
        cost_estimate=cost,
    )(cand_col, q)
    return out.reshape(n_pad)


class KNNImputer:
    def __init__(self, k_neighbors=5, max_iter=100, tol=1e-4):
        self.k_neighbors = k_neighbors
        self.max_iter = max_iter
        self.tol = tol

    def fit(self, X):
        self.X = jnp.asarray(X, jnp.float32)
        self.mask = ~jnp.isnan(self.X)
        self.rows, self.cols = self.X.shape
        self.n_obs = int(jnp.sum(self.mask))

    def forward(self):
        rows, cols = self.rows, self.cols
        n = rows * cols
        # Never request more neighbours than observed cells (reference topk would error).
        k = int(max(1, min(self.k_neighbors, max(self.n_obs, 1))))
        max_iter = int(self.max_iter)
        tol = float(self.tol)

        vmem_limit = _vmem_limit_bytes()
        n_pad0 = _round_up(max(n, 128), 128)
        tile_q = _choose_tile_q(n_pad0, vmem_limit)
        if n_pad0 >= 256:
            # Keep at least 2 query tiles so both v7x TensorCores get work.
            tile_q = min(tile_q, max(128, (n_pad0 // 2 // 128) * 128))
        else:
            tile_q = min(tile_q, n_pad0)
        n_pad = _round_up(n, tile_q)
        assert n_pad % tile_q == 0

        mask_f = self.mask.astype(jnp.float32).reshape(-1)
        mask_pad = jnp.zeros((n_pad,), jnp.float32).at[:n].set(mask_f)

        # TODO(synk): the reference starts with NaN in missing cells, which makes its
        # first distance/topk pass degenerate (NaN distances, topk over a 0-dim sum).
        # We bootstrap missing cells with the observed mean and iterate the same
        # "k observed values nearest to the current cell value -> mean" update.
        obs_mean = jnp.nansum(self.X) / jnp.maximum(jnp.sum(mask_f), 1.0)
        x0 = jnp.where(self.mask, self.X, obs_mean).reshape(-1)
        x0_pad = jnp.zeros((n_pad,), jnp.float32).at[:n].set(x0)

        # Candidate set = observed cells only; their values never change across sweeps,
        # so the (+inf-masked) candidate column is built once and reused every sweep.
        cand_col = jnp.where(mask_pad > 0.0, x0_pad,
                             jnp.float32(jnp.inf)).reshape(n_pad, 1)

        def make_impute(single_buffer):
            return functools.partial(knn_impute_all, k=k, n_pad=n_pad, tile_q=tile_q,
                                     vmem_limit=vmem_limit, single_buffer=single_buffer)

        # Prefer single-buffered resident candidates (pl.Buffered(1)); fall back if this
        # jax/Mosaic version rejects pipeline_mode on a top-level pallas_call BlockSpec.
        impute = make_impute(True)
        try:
            jax.block_until_ready(impute(x0_pad, cand_col))
        except Exception:
            impute = make_impute(False)

        # TODO(synk): reference updates cells in-place one-by-one (Gauss-Seidel order);
        # here all missing cells are updated simultaneously per outer sweep (Jacobi).
        @jax.jit
        def run(x_init, cand, m_pad):
            def body(state):
                x_pad, it, _ = state
                imputed = impute(x_pad, cand)
                x_new = jnp.where(m_pad > 0.0, x_pad, imputed)
                delta = jnp.sum(jnp.abs(x_new[:n] - x_pad[:n]))
                return x_new, it + 1, delta

            def cond(state):
                _, it, delta = state
                return jnp.logical_and(it < max_iter, delta >= tol)

            x_final, _, _ = lax.while_loop(
                cond, body, (x_init, jnp.int32(0), jnp.float32(jnp.inf)))
            return x_final

        x_final = run(x0_pad, cand_col, mask_pad)
        self.X = x_final[:n].reshape(rows, cols)
        return self.X


if __name__ == "__main__":
    key = jax.random.PRNGKey(0)
    k1, k2 = jax.random.split(key)
    rows, cols = 16, 16
    base = jax.random.normal(k1, (rows, cols), dtype=jnp.float32)
    missing = jax.random.uniform(k2, (rows, cols)) < 0.2
    X = jnp.where(missing, jnp.nan, base)

    imputer = KNNImputer(k_neighbors=5, max_iter=100, tol=1e-4)
    imputer.fit(X)
    out = imputer.forward()
    out = jax.block_until_ready(out)

    assert out.shape == (rows, cols)
    assert out.dtype == jnp.float32
    assert not bool(jnp.any(jnp.isnan(out)))
    # observed entries must be untouched
    assert bool(jnp.all(jnp.where(~missing, out == base, True)))
    print("KERNEL_OK")
</pallas_src>

<mosaic_0001>
module attributes {stable_mosaic.version = 11 : i64} {
  func.func @_knn_impute_kernel(%arg0: i32, %arg1: memref<256x1xf32, #tpu.memory_space<vmem>>, %arg2: memref<1x128xf32, #tpu.memory_space<vmem>>, %arg3: memref<1x128xf32, #tpu.memory_space<vmem>>) attributes {dimension_semantics = [#tpu.dimension_semantics<parallel>], iteration_bounds = array<i64: 2>, scalar_prefetch = 0 : i64, scratch_operands = 0 : i64, tpu.core_type = #tpu.core_type<tc>, window_params = [{pipeline_mode = #tpu.pipeline_mode<synchronous>, transform_indices = @transform_0, window_bounds = array<i64: 256, 1>}, {transform_indices = @transform_1, window_bounds = array<i64: 1, 128>}, {transform_indices = @transform_2, window_bounds = array<i64: 1, 128>}]} {
    %c0 = arith.constant 0 : index
    %c0_0 = arith.constant 0 : index
    %0 = vector.load %arg1[%c0, %c0_0] : memref<256x1xf32, #tpu.memory_space<vmem>>, vector<256x1xf32>
    %c0_1 = arith.constant 0 : index
    %c0_2 = arith.constant 0 : index
    %1 = vector.load %arg2[%c0_1, %c0_2] : memref<1x128xf32, #tpu.memory_space<vmem>>, vector<1x128xf32>
    %2 = vector.broadcast %0 : vector<256x1xf32> to vector<256x128xf32>
    %3 = vector.broadcast %1 : vector<1x128xf32> to vector<256x128xf32>
    %4 = arith.subf %2, %3 : vector<256x128xf32>
    %5 = math.absf %4 : vector<256x128xf32>
    %6 = tpu.iota {dimensions = array<i32: 0>} : vector<256x1xi32>
    %cst = arith.constant 0.000000e+00 : f32
    %7 = vector.broadcast %cst : f32 to vector<1x128xf32>
    %cst_3 = arith.constant 0x7F800000 : f32
    %c0_i32 = arith.constant 0 : i32
    %cst_4 = arith.constant dense<0x7F800000> : vector<128xf32>
    %8 = vector.multi_reduction <minimumf>, %5, %cst_4 [0] : vector<256x128xf32> to vector<128xf32>
    %9 = vector.shape_cast %8 : vector<128xf32> to vector<1x128xf32>
    %10 = vector.broadcast %9 : vector<1x128xf32> to vector<256x128xf32>
    %11 = arith.cmpf oeq, %5, %10 : vector<256x128xf32>
    %c256_i32 = arith.constant 256 : i32
    %12 = vector.shape_cast %6 : vector<256x1xi32> to vector<256x1xi32>
    %13 = vector.broadcast %12 : vector<256x1xi32> to vector<256x128xi32>
    %14 = vector.broadcast %c256_i32 : i32 to vector<256x128xi32>
    %15 = arith.select %11, %13, %14 : vector<256x128xi1>, vector<256x128xi32>
    %cst_5 = arith.constant dense<2147483647> : vector<128xi32>
    %16 = vector.multi_reduction <minsi>, %15, %cst_5 [0] : vector<256x128xi32> to vector<128xi32>
    %17 = vector.shape_cast %16 : vector<128xi32> to vector<1x128xi32>
    %18 = vector.broadcast %6 : vector<256x1xi32> to vector<256x128xi32>
    %19 = vector.broadcast %17 : vector<1x128xi32> to vector<256x128xi32>
    %20 = arith.cmpi eq, %18, %19 : vector<256x128xi32>
    %21 = vector.shape_cast %0 : vector<256x1xf32> to vector<256x1xf32>
    %22 = vector.broadcast %21 : vector<256x1xf32> to vector<256x128xf32>
    %23 = vector.broadcast %cst_3 : f32 to vector<256x128xf32>
    %24 = arith.select %20, %22, %23 : vector<256x128xi1>, vector<256x128xf32>
    %cst_6 = arith.constant dense<0x7F800000> : vector<128xf32>
    %25 = vector.multi_reduction <minimumf>, %24, %cst_6 [0] : vector<256x128xf32> to vector<128xf32>
    %26 = vector.shape_cast %25 : vector<128xf32> to vector<1x128xf32>
    %27 = arith.addf %7, %26 : vector<1x128xf32>
    %28 = vector.broadcast %cst_3 : f32 to vector<256x128xf32>
    %29 = arith.select %20, %28, %5 : vector<256x128xi1>, vector<256x128xf32>
    %c1_i32 = arith.constant 1 : i32
    %cst_7 = arith.constant dense<0x7F800000> : vector<128xf32>
    %30 = vector.multi_reduction <minimumf>, %29, %cst_7 [0] : vector<256x128xf32> to vector<128xf32>
    %31 = vector.shape_cast %30 : vector<128xf32> to vector<1x128xf32>
    %32 = vector.broadcast %31 : vector<1x128xf32> to vector<256x128xf32>
    %33 = arith.cmpf oeq, %29, %32 : vector<256x128xf32>
    %c256_i32_8 = arith.constant 256 : i32
    %34 = vector.shape_cast %6 : vector<256x1xi32> to vector<256x1xi32>
    %35 = vector.broadcast %34 : vector<256x1xi32> to vector<256x128xi32>
    %36 = vector.broadcast %c256_i32_8 : i32 to vector<256x128xi32>
    %37 = arith.select %33, %35, %36 : vector<256x128xi1>, vector<256x128xi32>
    %cst_9 = arith.constant dense<2147483647> : vector<128xi32>
    %38 = vector.multi_reduction <minsi>, %37, %cst_9 [0] : vector<256x128xi32> to vector<128xi32>
    %39 = vector.shape_cast %38 : vector<128xi32> to vector<1x128xi32>
    %40 = vector.broadcast %6 : vector<256x1xi32> to vector<256x128xi32>
    %41 = vector.broadcast %39 : vector<1x128xi32> to vector<256x128xi32>
    %42 = arith.cmpi eq, %40, %41 : vector<256x128xi32>
    %43 = vector.shape_cast %0 : vector<256x1xf32> to vector<256x1xf32>
    %44 = vector.broadcast %43 : vector<256x1xf32> to vector<256x128xf32>
    %45 = vector.broadcast %cst_3 : f32 to vector<256x128xf32>
    %46 = arith.select %42, %44, %45 : vector<256x128xi1>, vector<256x128xf32>
    %cst_10 = arith.constant dense<0x7F800000> : vector<128xf32>
    %47 = vector.multi_reduction <minimumf>, %46, %cst_10 [0] : vector<256x128xf32> to vector<128xf32>
    %48 = vector.shape_cast %47 : vector<128xf32> to vector<1x128xf32>
    %49 = arith.addf %27, %48 : vector<1x128xf32>
    %50 = vector.broadcast %cst_3 : f32 to vector<256x128xf32>
    %51 = arith.select %42, %50, %29 : vector<256x128xi1>, vector<256x128xf32>
    %c2_i32 = arith.constant 2 : i32
    %cst_11 = arith.constant dense<0x7F800000> : vector<128xf32>
    %52 = vector.multi_reduction <minimumf>, %51, %cst_11 [0] : vector<256x128xf32> to vector<128xf32>
    %53 = vector.shape_cast %52 : vector<128xf32> to vector<1x128xf32>
    %54 = vector.broadcast %53 : vector<1x128xf32> to vector<256x128xf32>
    %55 = arith.cmpf oeq, %51, %54 : vector<256x128xf32>
    %c256_i32_12 = arith.constant 256 : i32
    %56 = vector.shape_cast %6 : vector<256x1xi32> to vector<256x1xi32>
    %57 = vector.broadcast %56 : vector<256x1xi32> to vector<256x128xi32>
    %58 = vector.broadcast %c256_i32_12 : i32 to vector<256x128xi32>
    %59 = arith.select %55, %57, %58 : vector<256x128xi1>, vector<256x128xi32>
    %cst_13 = arith.constant dense<2147483647> : vector<128xi32>
    %60 = vector.multi_reduction <minsi>, %59, %cst_13 [0] : vector<256x128xi32> to vector<128xi32>
    %61 = vector.shape_cast %60 : vector<128xi32> to vector<1x128xi32>
    %62 = vector.broadcast %6 : vector<256x1xi32> to vector<256x128xi32>
    %63 = vector.broadcast %61 : vector<1x128xi32> to vector<256x128xi32>
    %64 = arith.cmpi eq, %62, %63 : vector<256x128xi32>
    %65 = vector.shape_cast %0 : vector<256x1xf32> to vector<256x1xf32>
    %66 = vector.broadcast %65 : vector<256x1xf32> to vector<256x128xf32>
    %67 = vector.broadcast %cst_3 : f32 to vector<256x128xf32>
    %68 = arith.select %64, %66, %67 : vector<256x128xi1>, vector<256x128xf32>
    %cst_14 = arith.constant dense<0x7F800000> : vector<128xf32>
    %69 = vector.multi_reduction <minimumf>, %68, %cst_14 [0] : vector<256x128xf32> to vector<128xf32>
    %70 = vector.shape_cast %69 : vector<128xf32> to vector<1x128xf32>
    %71 = arith.addf %49, %70 : vector<1x128xf32>
    %72 = vector.broadcast %cst_3 : f32 to vector<256x128xf32>
    %73 = arith.select %64, %72, %51 : vector<256x128xi1>, vector<256x128xf32>
    %c3_i32 = arith.constant 3 : i32
    %cst_15 = arith.constant dense<0x7F800000> : vector<128xf32>
    %74 = vector.multi_reduction <minimumf>, %73, %cst_15 [0] : vector<256x128xf32> to vector<128xf32>
    %75 = vector.shape_cast %74 : vector<128xf32> to vector<1x128xf32>
    %76 = vector.broadcast %75 : vector<1x128xf32> to vector<256x128xf32>
    %77 = arith.cmpf oeq, %73, %76 : vector<256x128xf32>
    %c256_i32_16 = arith.constant 256 : i32
    %78 = vector.shape_cast %6 : vector<256x1xi32> to vector<256x1xi32>
    %79 = vector.broadcast %78 : vector<256x1xi32> to vector<256x128xi32>
    %80 = vector.broadcast %c256_i32_16 : i32 to vector<256x128xi32>
    %81 = arith.select %77, %79, %80 : vector<256x128xi1>, vector<256x128xi32>
    %cst_17 = arith.constant dense<2147483647> : vector<128xi32>
    %82 = vector.multi_reduction <minsi>, %81, %cst_17 [0] : vector<256x128xi32> to vector<128xi32>
    %83 = vector.shape_cast %82 : vector<128xi32> to vector<1x128xi32>
    %84 = vector.broadcast %6 : vector<256x1xi32> to vector<256x128xi32>
    %85 = vector.broadcast %83 : vector<1x128xi32> to vector<256x128xi32>
    %86 = arith.cmpi eq, %84, %85 : vector<256x128xi32>
    %87 = vector.shape_cast %0 : vector<256x1xf32> to vector<256x1xf32>
    %88 = vector.broadcast %87 : vector<256x1xf32> to vector<256x128xf32>
    %89 = vector.broadcast %cst_3 : f32 to vector<256x128xf32>
    %90 = arith.select %86, %88, %89 : vector<256x128xi1>, vector<256x128xf32>
    %cst_18 = arith.constant dense<0x7F800000> : vector<128xf32>
    %91 = vector.multi_reduction <minimumf>, %90, %cst_18 [0] : vector<256x128xf32> to vector<128xf32>
    %92 = vector.shape_cast %91 : vector<128xf32> to vector<1x128xf32>
    %93 = arith.addf %71, %92 : vector<1x128xf32>
    %94 = vector.broadcast %cst_3 : f32 to vector<256x128xf32>
    %95 = arith.select %86, %94, %73 : vector<256x128xi1>, vector<256x128xf32>
    %c4_i32 = arith.constant 4 : i32
    %cst_19 = arith.constant dense<0x7F800000> : vector<128xf32>
    %96 = vector.multi_reduction <minimumf>, %95, %cst_19 [0] : vector<256x128xf32> to vector<128xf32>
    %97 = vector.shape_cast %96 : vector<128xf32> to vector<1x128xf32>
    %98 = vector.broadcast %97 : vector<1x128xf32> to vector<256x128xf32>
    %99 = arith.cmpf oeq, %95, %98 : vector<256x128xf32>
    %c256_i32_20 = arith.constant 256 : i32
    %100 = vector.shape_cast %6 : vector<256x1xi32> to vector<256x1xi32>
    %101 = vector.broadcast %100 : vector<256x1xi32> to vector<256x128xi32>
    %102 = vector.broadcast %c256_i32_20 : i32 to vector<256x128xi32>
    %103 = arith.select %99, %101, %102 : vector<256x128xi1>, vector<256x128xi32>
    %cst_21 = arith.constant dense<2147483647> : vector<128xi32>
    %104 = vector.multi_reduction <minsi>, %103, %cst_21 [0] : vector<256x128xi32> to vector<128xi32>
    %105 = vector.shape_cast %104 : vector<128xi32> to vector<1x128xi32>
    %106 = vector.broadcast %6 : vector<256x1xi32> to vector<256x128xi32>
    %107 = vector.broadcast %105 : vector<1x128xi32> to vector<256x128xi32>
    %108 = arith.cmpi eq, %106, %107 : vector<256x128xi32>
    %109 = vector.shape_cast %0 : vector<256x1xf32> to vector<256x1xf32>
    %110 = vector.broadcast %109 : vector<256x1xf32> to vector<256x128xf32>
    %111 = vector.broadcast %cst_3 : f32 to vector<256x128xf32>
    %112 = arith.select %108, %110, %111 : vector<256x128xi1>, vector<256x128xf32>
    %cst_22 = arith.constant dense<0x7F800000> : vector<128xf32>
    %113 = vector.multi_reduction <minimumf>, %112, %cst_22 [0] : vector<256x128xf32> to vector<128xf32>
    %114 = vector.shape_cast %113 : vector<128xf32> to vector<1x128xf32>
    %115 = arith.addf %93, %114 : vector<1x128xf32>
    %116 = vector.broadcast %cst_3 : f32 to vector<256x128xf32>
    %117 = arith.select %108, %116, %95 : vector<256x128xi1>, vector<256x128xf32>
    %cst_23 = arith.constant 2.000000e-01 : f32
    %118 = vector.broadcast %cst_23 : f32 to vector<1x128xf32>
    %119 = arith.mulf %115, %118 : vector<1x128xf32>
    %c0_24 = arith.constant 0 : index
    %c0_25 = arith.constant 0 : index
    %120 = vector.load %arg3[%c0_24, %c0_25] : memref<1x128xf32, #tpu.memory_space<vmem>>, vector<1x128xf32>
    tpu.vector_store %arg3[%c0_24, %c0_25], %119 {strides = array<i32>} : memref<1x128xf32, #tpu.memory_space<vmem>>, vector<1x128xf32>,
    return
  }
  func.func @transform_0(%arg0: i32) -> (i32, i32) {
    %c0_i32 = arith.constant 0 : i32
    %c0_i32_0 = arith.constant 0 : i32
    %c0_i32_1 = arith.constant 0 : i32
    return %c0_i32, %c0_i32_0 : i32, i32
  }
  func.func @transform_1(%arg0: i32) -> (i32, i32) {
    %c0_i32 = arith.constant 0 : i32
    %c0_i32_0 = arith.constant 0 : i32
    return %c0_i32, %arg0 : i32, i32
  }
  func.func @transform_2(%arg0: i32) -> (i32, i32) {
    %c0_i32 = arith.constant 0 : i32
    %c0_i32_0 = arith.constant 0 : i32
    return %c0_i32, %arg0 : i32, i32
  }
}

module attributes {stable_mosaic.version = 11 : i64} {
  func.func @_knn_impute_kernel(%arg0: i32, %arg1: memref<256x1xf32, #tpu.memory_space<vmem>>, %arg2: memref<1x128xf32, #tpu.memory_space<vmem>>, %arg3: memref<1x128xf32, #tpu.memory_space<vmem>>) attributes {dimension_semantics = [#tpu.dimension_semantics<parallel>], iteration_bounds = array<i64: 2>, scalar_prefetch = 0 : i64, scratch_operands = 0 : i64, tpu.core_type = #tpu.core_type<tc>, window_params = [{pipeline_mode = #tpu.pipeline_mode<synchronous>, transform_indices = @transform_0, window_bounds = array<i64: 256, 1>}, {transform_indices = @transform_1, window_bounds = array<i64: 1, 128>}, {transform_indices = @transform_2, window_bounds = array<i64: 1, 128>}]} {
    %c0 = arith.constant 0 : index
    %c0_0 = arith.constant 0 : index
    %0 = vector.load %arg1[%c0, %c0_0] : memref<256x1xf32, #tpu.memory_space<vmem>>, vector<256x1xf32>
    %c0_1 = arith.constant 0 : index
    %c0_2 = arith.constant 0 : index
    %1 = vector.load %arg2[%c0_1, %c0_2] : memref<1x128xf32, #tpu.memory_space<vmem>>, vector<1x128xf32>
    %2 = vector.broadcast %0 : vector<256x1xf32> to vector<256x128xf32>
    %3 = vector.broadcast %1 : vector<1x128xf32> to vector<256x128xf32>
    %4 = arith.subf %2, %3 : vector<256x128xf32>
    %5 = math.absf %4 : vector<256x128xf32>
    %6 = tpu.iota {dimensions = array<i32: 0>} : vector<256x1xi32>
    %cst = arith.constant 0.000000e+00 : f32
    %7 = vector.broadcast %cst : f32 to vector<1x128xf32>
    %cst_3 = arith.constant 0x7F800000 : f32
    %c0_i32 = arith.constant 0 : i32
    %cst_4 = arith.constant dense<0x7F800000> : vector<128xf32>
    %8 = vector.multi_reduction <minimumf>, %5, %cst_4 [0] : vector<256x128xf32> to vector<128xf32>
    %9 = vector.shape_cast %8 : vector<128xf32> to vector<1x128xf32>
    %10 = vector.broadcast %9 : vector<1x128xf32> to vector<256x128xf32>
    %11 = arith.cmpf oeq, %5, %10 : vector<256x128xf32>
    %c256_i32 = arith.constant 256 : i32
    %12 = vector.shape_cast %6 : vector<256x1xi32> to vector<256x1xi32>
    %13 = vector.broadcast %12 : vector<256x1xi32> to vector<256x128xi32>
    %14 = vector.broadcast %c256_i32 : i32 to vector<256x128xi32>
    %15 = arith.select %11, %13, %14 : vector<256x128xi1>, vector<256x128xi32>
    %cst_5 = arith.constant dense<2147483647> : vector<128xi32>
    %16 = vector.multi_reduction <minsi>, %15, %cst_5 [0] : vector<256x128xi32> to vector<128xi32>
    %17 = vector.shape_cast %16 : vector<128xi32> to vector<1x128xi32>
    %18 = vector.broadcast %6 : vector<256x1xi32> to vector<256x128xi32>
    %19 = vector.broadcast %17 : vector<1x128xi32> to vector<256x128xi32>
    %20 = arith.cmpi eq, %18, %19 : vector<256x128xi32>
    %21 = vector.shape_cast %0 : vector<256x1xf32> to vector<256x1xf32>
    %22 = vector.broadcast %21 : vector<256x1xf32> to vector<256x128xf32>
    %23 = vector.broadcast %cst_3 : f32 to vector<256x128xf32>
    %24 = arith.select %20, %22, %23 : vector<256x128xi1>, vector<256x128xf32>
    %cst_6 = arith.constant dense<0x7F800000> : vector<128xf32>
    %25 = vector.multi_reduction <minimumf>, %24, %cst_6 [0] : vector<256x128xf32> to vector<128xf32>
    %26 = vector.shape_cast %25 : vector<128xf32> to vector<1x128xf32>
    %27 = arith.addf %7, %26 : vector<1x128xf32>
    %28 = vector.broadcast %cst_3 : f32 to vector<256x128xf32>
    %29 = arith.select %20, %28, %5 : vector<256x128xi1>, vector<256x128xf32>
    %c1_i32 = arith.constant 1 : i32
    %cst_7 = arith.constant dense<0x7F800000> : vector<128xf32>
    %30 = vector.multi_reduction <minimumf>, %29, %cst_7 [0] : vector<256x128xf32> to vector<128xf32>
    %31 = vector.shape_cast %30 : vector<128xf32> to vector<1x128xf32>
    %32 = vector.broadcast %31 : vector<1x128xf32> to vector<256x128xf32>
    %33 = arith.cmpf oeq, %29, %32 : vector<256x128xf32>
    %c256_i32_8 = arith.constant 256 : i32
    %34 = vector.shape_cast %6 : vector<256x1xi32> to vector<256x1xi32>
    %35 = vector.broadcast %34 : vector<256x1xi32> to vector<256x128xi32>
    %36 = vector.broadcast %c256_i32_8 : i32 to vector<256x128xi32>
    %37 = arith.select %33, %35, %36 : vector<256x128xi1>, vector<256x128xi32>
    %cst_9 = arith.constant dense<2147483647> : vector<128xi32>
    %38 = vector.multi_reduction <minsi>, %37, %cst_9 [0] : vector<256x128xi32> to vector<128xi32>
    %39 = vector.shape_cast %38 : vector<128xi32> to vector<1x128xi32>
    %40 = vector.broadcast %6 : vector<256x1xi32> to vector<256x128xi32>
    %41 = vector.broadcast %39 : vector<1x128xi32> to vector<256x128xi32>
    %42 = arith.cmpi eq, %40, %41 : vector<256x128xi32>
    %43 = vector.shape_cast %0 : vector<256x1xf32> to vector<256x1xf32>
    %44 = vector.broadcast %43 : vector<256x1xf32> to vector<256x128xf32>
    %45 = vector.broadcast %cst_3 : f32 to vector<256x128xf32>
    %46 = arith.select %42, %44, %45 : vector<256x128xi1>, vector<256x128xf32>
    %cst_10 = arith.constant dense<0x7F800000> : vector<128xf32>
    %47 = vector.multi_reduction <minimumf>, %46, %cst_10 [0] : vector<256x128xf32> to vector<128xf32>
    %48 = vector.shape_cast %47 : vector<128xf32> to vector<1x128xf32>
    %49 = arith.addf %27, %48 : vector<1x128xf32>
    %50 = vector.broadcast %cst_3 : f32 to vector<256x128xf32>
    %51 = arith.select %42, %50, %29 : vector<256x128xi1>, vector<256x128xf32>
    %c2_i32 = arith.constant 2 : i32
    %cst_11 = arith.constant dense<0x7F800000> : vector<128xf32>
    %52 = vector.multi_reduction <minimumf>, %51, %cst_11 [0] : vector<256x128xf32> to vector<128xf32>
    %53 = vector.shape_cast %52 : vector<128xf32> to vector<1x128xf32>
    %54 = vector.broadcast %53 : vector<1x128xf32> to vector<256x128xf32>
    %55 = arith.cmpf oeq, %51, %54 : vector<256x128xf32>
    %c256_i32_12 = arith.constant 256 : i32
    %56 = vector.shape_cast %6 : vector<256x1xi32> to vector<256x1xi32>
    %57 = vector.broadcast %56 : vector<256x1xi32> to vector<256x128xi32>
    %58 = vector.broadcast %c256_i32_12 : i32 to vector<256x128xi32>
    %59 = arith.select %55, %57, %58 : vector<256x128xi1>, vector<256x128xi32>
    %cst_13 = arith.constant dense<2147483647> : vector<128xi32>
    %60 = vector.multi_reduction <minsi>, %59, %cst_13 [0] : vector<256x128xi32> to vector<128xi32>
    %61 = vector.shape_cast %60 : vector<128xi32> to vector<1x128xi32>
    %62 = vector.broadcast %6 : vector<256x1xi32> to vector<256x128xi32>
    %63 = vector.broadcast %61 : vector<1x128xi32> to vector<256x128xi32>
    %64 = arith.cmpi eq, %62, %63 : vector<256x128xi32>
    %65 = vector.shape_cast %0 : vector<256x1xf32> to vector<256x1xf32>
    %66 = vector.broadcast %65 : vector<256x1xf32> to vector<256x128xf32>
    %67 = vector.broadcast %cst_3 : f32 to vector<256x128xf32>
    %68 = arith.select %64, %66, %67 : vector<256x128xi1>, vector<256x128xf32>
    %cst_14 = arith.constant dense<0x7F800000> : vector<128xf32>
    %69 = vector.multi_reduction <minimumf>, %68, %cst_14 [0] : vector<256x128xf32> to vector<128xf32>
    %70 = vector.shape_cast %69 : vector<128xf32> to vector<1x128xf32>
    %71 = arith.addf %49, %70 : vector<1x128xf32>
    %72 = vector.broadcast %cst_3 : f32 to vector<256x128xf32>
    %73 = arith.select %64, %72, %51 : vector<256x128xi1>, vector<256x128xf32>
    %c3_i32 = arith.constant 3 : i32
    %cst_15 = arith.constant dense<0x7F800000> : vector<128xf32>
    %74 = vector.multi_reduction <minimumf>, %73, %cst_15 [0] : vector<256x128xf32> to vector<128xf32>
    %75 = vector.shape_cast %74 : vector<128xf32> to vector<1x128xf32>
    %76 = vector.broadcast %75 : vector<1x128xf32> to vector<256x128xf32>
    %77 = arith.cmpf oeq, %73, %76 : vector<256x128xf32>
    %c256_i32_16 = arith.constant 256 : i32
    %78 = vector.shape_cast %6 : vector<256x1xi32> to vector<256x1xi32>
    %79 = vector.broadcast %78 : vector<256x1xi32> to vector<256x128xi32>
    %80 = vector.broadcast %c256_i32_16 : i32 to vector<256x128xi32>
    %81 = arith.select %77, %79, %80 : vector<256x128xi1>, vector<256x128xi32>
    %cst_17 = arith.constant dense<2147483647> : vector<128xi32>
    %82 = vector.multi_reduction <minsi>, %81, %cst_17 [0] : vector<256x128xi32> to vector<128xi32>
    %83 = vector.shape_cast %82 : vector<128xi32> to vector<1x128xi32>
    %84 = vector.broadcast %6 : vector<256x1xi32> to vector<256x128xi32>
    %85 = vector.broadcast %83 : vector<1x128xi32> to vector<256x128xi32>
    %86 = arith.cmpi eq, %84, %85 : vector<256x128xi32>
    %87 = vector.shape_cast %0 : vector<256x1xf32> to vector<256x1xf32>
    %88 = vector.broadcast %87 : vector<256x1xf32> to vector<256x128xf32>
    %89 = vector.broadcast %cst_3 : f32 to vector<256x128xf32>
    %90 = arith.select %86, %88, %89 : vector<256x128xi1>, vector<256x128xf32>
    %cst_18 = arith.constant dense<0x7F800000> : vector<128xf32>
    %91 = vector.multi_reduction <minimumf>, %90, %cst_18 [0] : vector<256x128xf32> to vector<128xf32>
    %92 = vector.shape_cast %91 : vector<128xf32> to vector<1x128xf32>
    %93 = arith.addf %71, %92 : vector<1x128xf32>
    %94 = vector.broadcast %cst_3 : f32 to vector<256x128xf32>
    %95 = arith.select %86, %94, %73 : vector<256x128xi1>, vector<256x128xf32>
    %c4_i32 = arith.constant 4 : i32
    %cst_19 = arith.constant dense<0x7F800000> : vector<128xf32>
    %96 = vector.multi_reduction <minimumf>, %95, %cst_19 [0] : vector<256x128xf32> to vector<128xf32>
    %97 = vector.shape_cast %96 : vector<128xf32> to vector<1x128xf32>
    %98 = vector.broadcast %97 : vector<1x128xf32> to vector<256x128xf32>
    %99 = arith.cmpf oeq, %95, %98 : vector<256x128xf32>
    %c256_i32_20 = arith.constant 256 : i32
    %100 = vector.shape_cast %6 : vector<256x1xi32> to vector<256x1xi32>
    %101 = vector.broadcast %100 : vector<256x1xi32> to vector<256x128xi32>
    %102 = vector.broadcast %c256_i32_20 : i32 to vector<256x128xi32>
    %103 = arith.select %99, %101, %102 : vector<256x128xi1>, vector<256x128xi32>
    %cst_21 = arith.constant dense<2147483647> : vector<128xi32>
    %104 = vector.multi_reduction <minsi>, %103, %cst_21 [0] : vector<256x128xi32> to vector<128xi32>
    %105 = vector.shape_cast %104 : vector<128xi32> to vector<1x128xi32>
    %106 = vector.broadcast %6 : vector<256x1xi32> to vector<256x128xi32>
    %107 = vector.broadcast %105 : vector<1x128xi32> to vector<256x128xi32>
    %108 = arith.cmpi eq, %106, %107 : vector<256x128xi32>
    %109 = vector.shape_cast %0 : vector<256x1xf32> to vector<256x1xf32>
    %110 = vector.broadcast %109 : vector<256x1xf32> to vector<256x128xf32>
    %111 = vector.broadcast %cst_3 : f32 to vector<256x128xf32>
    %112 = arith.select %108, %110, %111 : vector<256x128xi1>, vector<256x128xf32>
    %cst_22 = arith.constant dense<0x7F800000> : vector<128xf32>
    %113 = vector.multi_reduction <minimumf>, %112, %cst_22 [0] : vector<256x128xf32> to vector<128xf32>
    %114 = vector.shape_cast %113 : vector<128xf32> to vector<1x128xf32>
    %115 = arith.addf %93, %114 : vector<1x128xf32>
    %116 = vector.broadcast %cst_3 : f32 to vector<256x128xf32>
    %117 = arith.select %108, %116, %95 : vector<256x128xi1>, vector<256x128xf32>
    %cst_23 = arith.constant 2.000000e-01 : f32
    %118 = vector.broadcast %cst_23 : f32 to vector<1x128xf32>
    %119 = arith.mulf %115, %118 : vector<1x128xf32>
    %c0_24 = arith.constant 0 : index
    %c0_25 = arith.constant 0 : index
    %120 = vector.load %arg3[%c0_24, %c0_25] : memref<1x128xf32, #tpu.memory_space<vmem>>, vector<1x128xf32>
    tpu.vector_store %arg3[%c0_24, %c0_25], %119 {strides = array<i32>} : memref<1x128xf32, #tpu.memory_space<vmem>>, vector<1x128xf32>,
    return
  }
  func.func @transform_0(%arg0: i32) -> (i32, i32) {
    %c0_i32 = arith.constant 0 : i32
    %c0_i32_0 = arith.constant 0 : i32
    %c0_i32_1 = arith.constant 0 : i32
    return %c0_i32, %c0_i32_0 : i32, i32
  }
  func.func @transform_1(%arg0: i32) -> (i32, i32) {
    %c0_i32 = arith.constant 0 : i32
    %c0_i32_0 = arith.constant 0 : i32
    return %c0_i32, %arg0 : i32, i32
  }
  func.func @transform_2(%arg0: i32) -> (i32, i32) {
    %c0_i32 = arith.constant 0 : i32
    %c0_i32_0 = arith.constant 0 : i32
    return %c0_i32, %arg0 : i32, i32
  }
}

</mosaic_0001>

<llo_original>
// kernel: tpu_custom_call.1
$region0: #{tpu_custom_call.1}
  #allocation0 [shape = 'u32[]', space=smem, size = 0x4, offset = 0x4, fixed_abs, tag = 'smem constant byte address 0x4 - core index']
  #allocation1 [shape = 'u32[144,128]{1,0:T(1,128)}', space=vmem, size = 0x12000, scoped, tag = 'internal scratch']
  %s0 = inlined_call_operand.vmem [shape: f32[256,1], index: 0, kind: input, shape index: {}]
  %s1 = inlined_call_operand.vmem [shape: f32[1,256], index: 1, kind: input, shape index: {}]
  %s2 = inlined_call_operand.hbm [shape: f32[1,256], index: 2, kind: output, shape index: {}]
  %s3 = sld [smem:[#allocation0]]
  $region41: #{tpu_custom_call.1} parent=0
    _
  %s5 = ssub.s32 1, %s3
  %s6 = scalar_select 0, %s5, %s3
  $region1: #{tpu_custom_call.1} parent=0
    #allocation2 [shape = 'u8[1024]{0}', space=vmem, size = 0x400, scoped, tag = 'output window, operand 0']
    #allocation3 [shape = 's32[2]{0}', space=sflag, size = 0x8, scoped, tag = 'scoped memory for tpu_custom_call.1']
    %7 = vsyncpa [#allocation3], 0
    %s8 = scalar_lea.sflag [#allocation3], 1
    %9 = vsyncpa %s8, 0
    loop: start=0, step=1, limit=4
    $region2: #{tpu_custom_call.1} parent=1 // loop_pre_header
      _
    $region3: #{tpu_custom_call.1} parent=1 // loop_header
      %s11 = sphi 0, %s15
      %p12 = scmp.ge.s32.totalorder %s11, 4
      %s19 = sphi 0, %s19
      %s21 = sphi 0, %s19
      %s22 = sphi 0, %s21
      %s36 = sphi 0, %s22
      %s42 = sphi 0, %s44
      %s45 = sphi 0, %s42
      %s46 = sphi 0, %s45
      %s62 = sphi 0, %s46
      %s68 = sphi 0, %s70
      %s71 = sphi 0, %s68
      %s72 = sphi 0, %s71
      %s88 = sphi 0, %s72
    $region4: #{tpu_custom_call.1} parent=1 // loop_header_branch
      %14 = sbr.rel (%p12) target = $region8
    $region5: #{tpu_custom_call.1} parent=1 // loop_body
      %s16 = ssub.s32 %s11, 1
      %s17 = ssub.s32 %s11, 2
      %s18 = sadd.s32 %s11, 1
      %s20 = sadd.s32 %s19, 1
      %p23 = scmp.eq.s32.totalorder %s11, 1
      %p24 = scmp.ne.s32.totalorder %s19, %s21
      %p25 = scmp.eq.s32.totalorder %s11, 0
      %p26 = por %p24, %p25
      %p27 = scmp.ne.s32.totalorder %s19, %s21
      %p28 = scmp.eq.s32.totalorder %s16, 1
      %p29 = por %p27, %p28
      %p30 = scmp.ne.s32.totalorder %s21, %s22
      %p31 = scmp.eq.s32.totalorder %s16, 0
      %p32 = por %p30, %p31
      %p33 = scmp.ne.s32.totalorder %s21, %s22
      %p34 = scmp.eq.s32.totalorder %s17, 1
      %p35 = por %p33, %p34
      %p37 = scmp.ne.s32.totalorder %s22, %s36
      %p38 = scmp.eq.s32.totalorder %s17, 0
      %p39 = por %p37, %p38
      %s40 = ssub.s32 %s11, %s18
      %p41 = scmp.eq.s32.totalorder %s40, 0
      %s43 = sadd.s32 %s42, 1
      %s44 = scalar_select %p41, %s42, %s43
      %p47 = pneg %p41
      %p48 = scmp.eq.s32.totalorder %s11, 1
      %p49 = por %p47, %p48
      %p50 = scmp.ne.s32.totalorder %s42, %s45
      %p51 = scmp.eq.s32.totalorder %s11, 0
      %p52 = por %p50, %p51
      %p53 = scmp.ne.s32.totalorder %s42, %s45
      %p54 = scmp.eq.s32.totalorder %s16, 1
      %p55 = por %p53, %p54
      %p56 = scmp.ne.s32.totalorder %s45, %s46
      %p57 = scmp.eq.s32.totalorder %s16, 0
      %p58 = por %p56, %p57
      %p59 = scmp.ne.s32.totalorder %s45, %s46
      %p60 = scmp.eq.s32.totalorder %s17, 1
      %p61 = por %p59, %p60
      %p63 = scmp.ne.s32.totalorder %s46, %s62
      %p64 = scmp.eq.s32.totalorder %s17, 0
      %p65 = por %p63, %p64
      %s66 = ssub.s32 %s11, %s18
      %p67 = scmp.eq.s32.totalorder %s66, 0
      %s69 = sadd.s32 %s68, 1
      %s70 = scalar_select %p67, %s68, %s69
      %p73 = pneg %p67
      %p74 = scmp.eq.s32.totalorder %s11, 1
      %p75 = por %p73, %p74
      %p76 = scmp.ne.s32.totalorder %s68, %s71
      %p77 = scmp.eq.s32.totalorder %s11, 0
      %p78 = por %p76, %p77
      %p79 = scmp.ne.s32.totalorder %s68, %s71
      %p80 = scmp.eq.s32.totalorder %s16, 1
      %p81 = por %p79, %p80
      %p82 = scmp.ne.s32.totalorder %s71, %s72
      %p83 = scmp.eq.s32.totalorder %s16, 0
      %p84 = por %p82, %p83
      %p85 = scmp.ne.s32.totalorder %s71, %s72
      %p86 = scmp.eq.s32.totalorder %s17, 1
      %p87 = por %p85, %p86
      %p89 = scmp.ne.s32.totalorder %s72, %s88
      %p90 = scmp.eq.s32.totalorder %s17, 0
      %p91 = por %p89, %p90
      %p92 = scmp.le.s32.totalorder 1, %s11
      %p93 = scmp.lt.s32.totalorder %s11, 3
      %p94 = pnand %p92, %p93
      %p95 = pneg %p94
      // Predicated region
      $region9: #{tpu_custom_call.1} parent=5 // pred_check
        _
      $region10: #{tpu_custom_call.1} parent=5 // pred_check_branch
        %97 = sbr.rel (%p94) target = $region12
      $region11: #{tpu_custom_call.1} parent=5 // pred_region
        %s98 = ssub.s32 %s11, 1
        // Predicated region
        $region13: #{tpu_custom_call.1} parent=11 // pred_check
          %p99 = pneg %p32
        $region14: #{tpu_custom_call.1} parent=11 // pred_check_branch
          %101 = sbr.rel (%p99) target = $region16
        $region15: #{tpu_custom_call.1} parent=11 // pred_region
          _
        $region16: #{tpu_custom_call.1} parent=11 // pred_fallthru
          _
      $region12: #{tpu_custom_call.1} parent=5 // pred_fallthru
        _
      %p102 = scmp.lt.s32.totalorder %s11, 2
      // Predicated region
      $region17: #{tpu_custom_call.1} parent=5 // pred_check
        %p103 = pneg %p102
      $region18: #{tpu_custom_call.1} parent=5 // pred_check_branch
        %105 = sbr.rel (%p103) target = $region20
      $region19: #{tpu_custom_call.1} parent=5 // pred_region
        // Predicated region
        $region21: #{tpu_custom_call.1} parent=19 // pred_check
          %p106 = pneg %p52
        $region22: #{tpu_custom_call.1} parent=19 // pred_check_branch
          %108 = sbr.rel (%p106) target = $region24
        $region23: #{tpu_custom_call.1} parent=19 // pred_region
          %p109 = scmp.lt.s32.totalorder %s11, 1
          %s110 = scalar_select %p109, %s11, 1
          %s111 = scalar_lea.vmem %s1, %s110
        $region24: #{tpu_custom_call.1} parent=19 // pred_fallthru
          _
      $region20: #{tpu_custom_call.1} parent=5 // pred_fallthru
        _
      %p112 = scmp.le.s32.totalorder 1, %s11
      %p113 = scmp.lt.s32.totalorder %s11, 3
      %p114 = pnand %p112, %p113
      %p115 = pneg %p114
      // Predicated region
      $region25: #{tpu_custom_call.1} parent=5 // pred_check
        _
      $region26: #{tpu_custom_call.1} parent=5 // pred_check_branch
        %117 = sbr.rel (%p114) target = $region28
      $region27: #{tpu_custom_call.1} parent=5 // pred_region
        %s118 = ssub.s32 %s11, 1
        %p119 = pneg %p32
        %p120 = pneg %p29
        %p121 = scmp.lt.s32.totalorder %s16, 1
        %s122 = scalar_select %p121, %s16, 1
        %s123 = scalar_lea.vmem %s1, %s122
        %p124 = pneg %p58
        %p125 = pneg %p55
        %p126 = pneg %p84
        %p127 = pneg %p81
        %s128 = sand.u32 %s71, 1
        %s129 = scalar_lea.sflag [#allocation3], %s128
        %s130 = sand.u32 %s71, 1
        %s131 = scalar_lea.vmem [#allocation2], %s130
        %p132 = scmp.lt.s32.totalorder %s16, 1
        %s133 = scalar_select %p132, %s16, 1
        %s134 = scalar_lea.vmem %s1, %s133
        %v135 = vld [vmem:[%s0] sm:$0xff]
        %v136 = vld [vmem:[%s0 + $0x8] sm:$0xff]
        %v137 = vld [vmem:[%s0 + $0x10] sm:$0xff]
        %v138 = vld [vmem:[%s0 + $0x18] sm:$0xff]
        %v139 = vld [vmem:[%s0 + $0x20] sm:$0xff]
        %v140 = vld [vmem:[%s0 + $0x28] sm:$0xff]
        %v141 = vld [vmem:[%s0 + $0x30] sm:$0xff]
        %v142 = vld [vmem:[%s0 + $0x38] sm:$0xff]
        %v143 = vld [vmem:[%s0 + $0x40] sm:$0xff]
        %v144 = vld [vmem:[%s0 + $0x48] sm:$0xff]
        %v145 = vld [vmem:[%s0 + $0x50] sm:$0xff]
        %v146 = vld [vmem:[%s0 + $0x58] sm:$0xff]
        %v147 = vld [vmem:[%s0 + $0x60] sm:$0xff]
        %v148 = vld [vmem:[%s0 + $0x68] sm:$0xff]
        %v149 = vld [vmem:[%s0 + $0x70] sm:$0xff]
        %v150 = vld [vmem:[%s0 + $0x78] sm:$0xff]
        %v151 = vld [vmem:[%s0 + $0x80] sm:$0xff]
        %v152 = vld [vmem:[%s0 + $0x88] sm:$0xff]
        %v153 = vld [vmem:[%s0 + $0x90] sm:$0xff]
        %v154 = vld [vmem:[%s0 + $0x98] sm:$0xff]
        %v155 = vld [vmem:[%s0 + $0xa0] sm:$0xff]
        %v156 = vld [vmem:[%s0 + $0xa8] sm:$0xff]
        %v157 = vld [vmem:[%s0 + $0xb0] sm:$0xff]
        %v158 = vld [vmem:[%s0 + $0xb8] sm:$0xff]
        %v159 = vld [vmem:[%s0 + $0xc0] sm:$0xff]
        %v160 = vld [vmem:[%s0 + $0xc8] sm:$0xff]
        %v161 = vld [vmem:[%s0 + $0xd0] sm:$0xff]
        %v162 = vld [vmem:[%s0 + $0xd8] sm:$0xff]
        %v163 = vld [vmem:[%s0 + $0xe0] sm:$0xff]
        %v164 = vld [vmem:[%s0 + $0xe8] sm:$0xff]
        %v165 = vld [vmem:[%s0 + $0xf0] sm:$0xff]
        %v166 = vld [vmem:[%s0 + $0xf8] sm:$0xff]
        %v167 = vld [vmem:[%s134] sm:$0x1]
        %169 = vset.pattern.permute.xlu0 0
        %170 = vperm.xlu0 %169, %v135
        %v171 = vpop.permute.xlu0 %170
        %174 = vset.pattern.permute.xlu0 0
        %175 = vperm.xlu0 %174, %v136
        %v176 = vpop.permute.xlu0 %175
        %179 = vset.pattern.permute.xlu0 0
        %180 = vperm.xlu0 %179, %v137
        %v181 = vpop.permute.xlu0 %180
        %184 = vset.pattern.permute.xlu0 0
        %185 = vperm.xlu0 %184, %v138
        %v186 = vpop.permute.xlu0 %185
        %189 = vset.pattern.permute.xlu0 0
        %190 = vperm.xlu0 %189, %v139
        %v191 = vpop.permute.xlu0 %190
        %194 = vset.pattern.permute.xlu0 0
        %195 = vperm.xlu0 %194, %v140
        %v196 = vpop.permute.xlu0 %195
        %199 = vset.pattern.permute.xlu0 0
        %200 = vperm.xlu0 %199, %v141
        %v201 = vpop.permute.xlu0 %200
        %204 = vset.pattern.permute.xlu0 0
        %205 = vperm.xlu0 %204, %v142
        %v206 = vpop.permute.xlu0 %205
        %209 = vset.pattern.permute.xlu0 0
        %210 = vperm.xlu0 %209, %v143
        %v211 = vpop.permute.xlu0 %210
        %214 = vset.pattern.permute.xlu0 0
        %215 = vperm.xlu0 %214, %v144
        %v216 = vpop.permute.xlu0 %215
        %219 = vset.pattern.permute.xlu0 0
        %220 = vperm.xlu0 %219, %v145
        %v221 = vpop.permute.xlu0 %220
        %224 = vset.pattern.permute.xlu0 0
        %225 = vperm.xlu0 %224, %v146
        %v226 = vpop.permute.xlu0 %225
        %229 = vset.pattern.permute.xlu0 0
        %230 = vperm.xlu0 %229, %v147
        %v231 = vpop.permute.xlu0 %230
        %234 = vset.pattern.permute.xlu0 0
        %235 = vperm.xlu0 %234, %v148
        %v236 = vpop.permute.xlu0 %235
        %239 = vset.pattern.permute.xlu0 0
        %240 = vperm.xlu0 %239, %v149
        %v241 = vpop.permute.xlu0 %240
        %244 = vset.pattern.permute.xlu0 0
        %245 = vperm.xlu0 %244, %v150
        %v246 = vpop.permute.xlu0 %245
        %249 = vset.pattern.permute.xlu0 0
        %250 = vperm.xlu0 %249, %v151
        %v251 = vpop.permute.xlu0 %250
        %254 = vset.pattern.permute.xlu0 0
        %255 = vperm.xlu0 %254, %v152
        %v256 = vpop.permute.xlu0 %255
        %259 = vset.pattern.permute.xlu0 0
        %260 = vperm.xlu0 %259, %v153
        %v261 = vpop.permute.xlu0 %260
        %264 = vset.pattern.permute.xlu0 0
        %265 = vperm.xlu0 %264, %v154
        %v266 = vpop.permute.xlu0 %265
        %269 = vset.pattern.permute.xlu0 0
        %270 = vperm.xlu0 %269, %v155
        %v271 = vpop.permute.xlu0 %270
        %274 = vset.pattern.permute.xlu0 0
        %275 = vperm.xlu0 %274, %v156
        %v276 = vpop.permute.xlu0 %275
        %279 = vset.pattern.permute.xlu0 0
        %280 = vperm.xlu0 %279, %v157
        %v281 = vpop.permute.xlu0 %280
        %284 = vset.pattern.permute.xlu0 0
        %285 = vperm.xlu0 %284, %v158
        %v286 = vpop.permute.xlu0 %285
        %289 = vset.pattern.permute.xlu0 0
        %290 = vperm.xlu0 %289, %v159
        %v291 = vpop.permute.xlu0 %290
        %294 = vset.pattern.permute.xlu0 0
        %295 = vperm.xlu0 %294, %v160
        %v296 = vpop.permute.xlu0 %295
        %299 = vset.pattern.permute.xlu0 0
        %300 = vperm.xlu0 %299, %v161
        %v301 = vpop.permute.xlu0 %300
        %304 = vset.pattern.permute.xlu0 0
        %305 = vperm.xlu0 %304, %v162
        %v306 = vpop.permute.xlu0 %305
        %309 = vset.pattern.permute.xlu0 0
        %310 = vperm.xlu0 %309, %v163
        %v311 = vpop.permute.xlu0 %310
        %314 = vset.pattern.permute.xlu0 0
        %315 = vperm.xlu0 %314, %v164
        %v316 = vpop.permute.xlu0 %315
        %319 = vset.pattern.permute.xlu0 0
        %320 = vperm.xlu0 %319, %v165
        %v321 = vpop.permute.xlu0 %320
        %324 = vset.pattern.permute.xlu0 0
        %325 = vperm.xlu0 %324, %v166
        %v326 = vpop.permute.xlu0 %325
        %v329 = vlaneseq
        %v330 = vshrl.u32 %v329, 7
        %v331 = vsub.s32 0, %v330
        %v332 = vrot.slane %v167, %v331
        %v334 = vsub.f32 %v171, %v332
        %v335 = vsub.f32 %v176, %v332
        %v336 = vsub.f32 %v181, %v332
        %v337 = vsub.f32 %v186, %v332
        %v338 = vsub.f32 %v191, %v332
        %v339 = vsub.f32 %v196, %v332
        %v340 = vsub.f32 %v201, %v332
        %v341 = vsub.f32 %v206, %v332
        %v342 = vsub.f32 %v211, %v332
        %v343 = vsub.f32 %v216, %v332
        %v344 = vsub.f32 %v221, %v332
        %v345 = vsub.f32 %v226, %v332
        %v346 = vsub.f32 %v231, %v332
        %v347 = vsub.f32 %v236, %v332
        %v348 = vsub.f32 %v241, %v332
        %v349 = vsub.f32 %v246, %v332
        %v350 = vsub.f32 %v251, %v332
        %v351 = vsub.f32 %v256, %v332
        %v352 = vsub.f32 %v261, %v332
        %v353 = vsub.f32 %v266, %v332
        %v354 = vsub.f32 %v271, %v332
        %v355 = vsub.f32 %v276, %v332
        %v356 = vsub.f32 %v281, %v332
        %v357 = vsub.f32 %v286, %v332
        %v358 = vsub.f32 %v291, %v332
        %v359 = vsub.f32 %v296, %v332
        %v360 = vsub.f32 %v301, %v332
        %v361 = vsub.f32 %v306, %v332
        %v362 = vsub.f32 %v311, %v332
        %v363 = vsub.f32 %v316, %v332
        %v364 = vsub.f32 %v321, %v332
        %v365 = vsub.f32 %v326, %v332
        %v366 = vand.u32 2147483647, %v334
        %v367 = vand.u32 2147483647, %v335
        %v368 = vand.u32 2147483647, %v336
        %v369 = vand.u32 2147483647, %v337
        %v370 = vand.u32 2147483647, %v338
        %v371 = vand.u32 2147483647, %v339
        %v372 = vand.u32 2147483647, %v340
        %v373 = vand.u32 2147483647, %v341
        %v374 = vand.u32 2147483647, %v342
        %v375 = vand.u32 2147483647, %v343
        %v376 = vand.u32 2147483647, %v344
        %v377 = vand.u32 2147483647, %v345
        %v378 = vand.u32 2147483647, %v346
        %v379 = vand.u32 2147483647, %v347
        %v380 = vand.u32 2147483647, %v348
        %v381 = vand.u32 2147483647, %v349
        %v382 = vand.u32 2147483647, %v350
        %v383 = vand.u32 2147483647, %v351
        %v384 = vand.u32 2147483647, %v352
        %v385 = vand.u32 2147483647, %v353
        %v386 = vand.u32 2147483647, %v354
        %v387 = vand.u32 2147483647, %v355
        %v388 = vand.u32 2147483647, %v356
        %v389 = vand.u32 2147483647, %v357
        %v390 = vand.u32 2147483647, %v358
        %v391 = vand.u32 2147483647, %v359
        %v392 = vand.u32 2147483647, %v360
        %v393 = vand.u32 2147483647, %v361
        %v394 = vand.u32 2147483647, %v362
        %v395 = vand.u32 2147483647, %v363
        %v396 = vand.u32 2147483647, %v364
        %v397 = vand.u32 2147483647, %v365
        %v398 = vlaneseq
        %v399 = vshrl.u32 %v398, 7
        %v400 = vadd.s32 %v399, 8
        %v401 = vadd.s32 %v399, 16
        %v402 = vadd.s32 %v399, 24
        %v403 = vadd.s32 %v399, 32
        %v404 = vadd.s32 %v399, 40
        %v405 = vadd.s32 %v399, 48
        %v406 = vadd.s32 %v399, 56
        %v407 = vadd.s32 %v399, 64
        %v408 = vadd.s32 %v399, 72
        %v409 = vadd.s32 %v399, 80
        %v410 = vadd.s32 %v399, 88
        %v411 = vadd.s32 %v399, 96
        %v412 = vadd.s32 %v399, 104
        %v413 = vadd.s32 %v399, 112
        %v414 = vadd.s32 %v399, 120
        %v415 = vadd.s32 %v399, 128
        %v416 = vadd.s32 %v399, 136
        %v417 = vadd.s32 %v399, 144
        %v418 = vadd.s32 %v399, 152
        %v419 = vadd.s32 %v399, 160
        %v420 = vadd.s32 %v399, 168
        %v421 = vadd.s32 %v399, 176
        %v422 = vadd.s32 %v399, 184
        %v423 = vadd.s32 %v399, 192
        %v424 = vadd.s32 %v399, 200
        %v425 = vadd.s32 %v399, 208
        %v426 = vadd.s32 %v399, 216
        %v427 = vadd.s32 %v399, 224
        %v428 = vadd.s32 %v399, 232
        %v429 = vadd.s32 %v399, 240
        %v430 = vadd.s32 %v399, 248
        %v431 = vmin.f32 %v366, %v370
        %v432 = vmin.f32 %v367, %v371
        %v433 = vmin.f32 %v368, %v372
        %v434 = vmin.f32 %v369, %v373
        %v435 = vmin.f32 %v431, %v374
        %v436 = vmin.f32 %v432, %v375
        %v437 = vmin.f32 %v433, %v376
        %v438 = vmin.f32 %v434, %v377
        %v439 = vmin.f32 %v435, %v378
        %v440 = vmin.f32 %v436, %v379
        %v441 = vmin.f32 %v437, %v380
        %v442 = vmin.f32 %v438, %v381
        %v443 = vmin.f32 %v439, %v382
        %v444 = vmin.f32 %v440, %v383
        %v445 = vmin.f32 %v441, %v384
        %v446 = vmin.f32 %v442, %v385
        %v447 = vmin.f32 %v443, %v386
        %v448 = vmin.f32 %v444, %v387
        %v449 = vmin.f32 %v445, %v388
        %v450 = vmin.f32 %v446, %v389
        %v451 = vmin.f32 %v447, %v390
        %v452 = vmin.f32 %v448, %v391
        %v453 = vmin.f32 %v449, %v392
        %v454 = vmin.f32 %v450, %v393
        %v455 = vmin.f32 %v451, %v394
        %v456 = vmin.f32 %v452, %v395
        %v457 = vmin.f32 %v453, %v396
        %v458 = vmin.f32 %v454, %v397
        %v459 = vmin.f32 %v455, %v456
        %v460 = vmin.f32 %v457, %v458
        %v461 = vmin.f32 %v459, %v460
        %v462 = vrot.slane %v461, 4
        %v463 = vmin.f32 %v461, %v462
        %v464 = vrot.slane %v463, 2
        %v465 = vmin.f32 %v463, %v464
        %v466 = vrot.slane %v465, 1
        %v467 = vmin.f32 %v465, %v466
        %vm468 = vcmp.eq.f32.partialorder %v366, %v467
        %vm469 = vcmp.eq.f32.partialorder %v367, %v467
        %vm470 = vcmp.eq.f32.partialorder %v368, %v467
        %vm471 = vcmp.eq.f32.partialorder %v369, %v467
        %vm472 = vcmp.eq.f32.partialorder %v370, %v467
        %vm473 = vcmp.eq.f32.partialorder %v371, %v467
        %vm474 = vcmp.eq.f32.partialorder %v372, %v467
        %vm475 = vcmp.eq.f32.partialorder %v373, %v467
        %vm476 = vcmp.eq.f32.partialorder %v374, %v467
        %vm477 = vcmp.eq.f32.partialorder %v375, %v467
        %vm478 = vcmp.eq.f32.partialorder %v376, %v467
        %vm479 = vcmp.eq.f32.partialorder %v377, %v467
        %vm480 = vcmp.eq.f32.partialorder %v378, %v467
        %vm481 = vcmp.eq.f32.partialorder %v379, %v467
        %vm482 = vcmp.eq.f32.partialorder %v380, %v467
        %vm483 = vcmp.eq.f32.partialorder %v381, %v467
        %vm484 = vcmp.eq.f32.partialorder %v382, %v467
        %vm485 = vcmp.eq.f32.partialorder %v383, %v467
        %vm486 = vcmp.eq.f32.partialorder %v384, %v467
        %vm487 = vcmp.eq.f32.partialorder %v385, %v467
        %vm488 = vcmp.eq.f32.partialorder %v386, %v467
        %vm489 = vcmp.eq.f32.partialorder %v387, %v467
        %vm490 = vcmp.eq.f32.partialorder %v388, %v467
        %vm491 = vcmp.eq.f32.partialorder %v389, %v467
        %vm492 = vcmp.eq.f32.partialorder %v390, %v467
        %vm493 = vcmp.eq.f32.partialorder %v391, %v467
        %vm494 = vcmp.eq.f32.partialorder %v392, %v467
        %vm495 = vcmp.eq.f32.partialorder %v393, %v467
        %vm496 = vcmp.eq.f32.partialorder %v394, %v467
        %vm497 = vcmp.eq.f32.partialorder %v395, %v467
        %vm498 = vcmp.eq.f32.partialorder %v396, %v467
        %vm499 = vcmp.eq.f32.partialorder %v397, %v467
        %v500 = vsel %vm468, %v399, 256
        %v501 = vsel %vm469, %v400, 256
        %v502 = vsel %vm470, %v401, 256
        %v503 = vsel %vm471, %v402, 256
        %v504 = vsel %vm472, %v403, 256
        %v505 = vsel %vm473, %v404, 256
        %v506 = vsel %vm474, %v405, 256
        %v507 = vsel %vm475, %v406, 256
        %v508 = vsel %vm476, %v407, 256
        %v509 = vsel %vm477, %v408, 256
        %v510 = vsel %vm478, %v409, 256
        %v511 = vsel %vm479, %v410, 256
        %v512 = vsel %vm480, %v411, 256
        %v513 = vsel %vm481, %v412, 256
        %v514 = vsel %vm482, %v413, 256
        %v515 = vsel %vm483, %v414, 256
        %v516 = vsel %vm484, %v415, 256
        %v517 = vsel %vm485, %v416, 256
        %v518 = vsel %vm486, %v417, 256
        %v519 = vsel %vm487, %v418, 256
        %v520 = vsel %vm488, %v419, 256
        %v521 = vsel %vm489, %v420, 256
        %v522 = vsel %vm490, %v421, 256
        %v523 = vsel %vm491, %v422, 256
        %v524 = vsel %vm492, %v423, 256
        %v525 = vsel %vm493, %v424, 256
        %v526 = vsel %vm494, %v425, 256
        %v527 = vsel %vm495, %v426, 256
        %v528 = vsel %vm496, %v427, 256
        %v529 = vsel %vm497, %v428, 256
        %v530 = vsel %vm498, %v429, 256
        %v531 = vsel %vm499, %v430, 256
        %vm532 = vcmp.lt.s32.totalorder %v500, %v504
        %v533 = vsel %vm532, %v500, %v504
        %vm534 = vcmp.lt.s32.totalorder %v501, %v505
        %v535 = vsel %vm534, %v501, %v505
        %vm536 = vcmp.lt.s32.totalorder %v502, %v506
        %v537 = vsel %vm536, %v502, %v506
        %vm538 = vcmp.lt.s32.totalorder %v503, %v507
        %v539 = vsel %vm538, %v503, %v507
        %vm540 = vcmp.lt.s32.totalorder %v533, %v508
        %v541 = vsel %vm540, %v533, %v508
        %vm542 = vcmp.lt.s32.totalorder %v535, %v509
        %v543 = vsel %vm542, %v535, %v509
        %vm544 = vcmp.lt.s32.totalorder %v537, %v510
        %v545 = vsel %vm544, %v537, %v510
        %vm546 = vcmp.lt.s32.totalorder %v539, %v511
        %v547 = vsel %vm546, %v539, %v511
        %vm548 = vcmp.lt.s32.totalorder %v541, %v512
        %v549 = vsel %vm548, %v541, %v512
        %vm550 = vcmp.lt.s32.totalorder %v543, %v513
        %v551 = vsel %vm550, %v543, %v513
        %vm552 = vcmp.lt.s32.totalorder %v545, %v514
        %v553 = vsel %vm552, %v545, %v514
        %vm554 = vcmp.lt.s32.totalorder %v547, %v515
        %v555 = vsel %vm554, %v547, %v515
        %vm556 = vcmp.lt.s32.totalorder %v549, %v516
        %v557 = vsel %vm556, %v549, %v516
        %vm558 = vcmp.lt.s32.totalorder %v551, %v517
        %v559 = vsel %vm558, %v551, %v517
        %vm560 = vcmp.lt.s32.totalorder %v553, %v518
        %v561 = vsel %vm560, %v553, %v518
        %vm562 = vcmp.lt.s32.totalorder %v555, %v519
        %v563 = vsel %vm562, %v555, %v519
        %vm564 = vcmp.lt.s32.totalorder %v557, %v520
        %v565 = vsel %vm564, %v557, %v520
        %vm566 = vcmp.lt.s32.totalorder %v559, %v521
        %v567 = vsel %vm566, %v559, %v521
        %vm568 = vcmp.lt.s32.totalorder %v561, %v522
        %v569 = vsel %vm568, %v561, %v522
        %vm570 = vcmp.lt.s32.totalorder %v563, %v523
        %v571 = vsel %vm570, %v563, %v523
        %vm572 = vcmp.lt.s32.totalorder %v565, %v524
        %v573 = vsel %vm572, %v565, %v524
        %vm574 = vcmp.lt.s32.totalorder %v567, %v525
        %v575 = vsel %vm574, %v567, %v525
        %vm576 = vcmp.lt.s32.totalorder %v569, %v526
        %v577 = vsel %vm576, %v569, %v526
        %vm578 = vcmp.lt.s32.totalorder %v571, %v527
        %v579 = vsel %vm578, %v571, %v527
        %vm580 = vcmp.lt.s32.totalorder %v573, %v528
        %v581 = vsel %vm580, %v573, %v528
        %vm582 = vcmp.lt.s32.totalorder %v575, %v529
        %v583 = vsel %vm582, %v575, %v529
        %vm584 = vcmp.lt.s32.totalorder %v577, %v530
        %v585 = vsel %vm584, %v577, %v530
        %vm586 = vcmp.lt.s32.totalorder %v579, %v531
        %v587 = vsel %vm586, %v579, %v531
        %vm588 = vcmp.lt.s32.totalorder %v581, %v583
        %v589 = vsel %vm588, %v581, %v583
        %vm590 = vcmp.lt.s32.totalorder %v585, %v587
        %v591 = vsel %vm590, %v585, %v587
        %vm592 = vcmp.lt.s32.totalorder %v589, %v591
        %v593 = vsel %vm592, %v589, %v591
        %v594 = vrot.slane %v593, 4
        %vm595 = vcmp.lt.s32.totalorder %v593, %v594
        %v596 = vsel %vm595, %v593, %v594
        %v597 = vrot.slane %v596, 2
        %vm598 = vcmp.lt.s32.totalorder %v596, %v597
        %v599 = vsel %vm598, %v596, %v597
        %v600 = vrot.slane %v599, 1
        %vm601 = vcmp.lt.s32.totalorder %v599, %v600
        %v602 = vsel %vm601, %v599, %v600
        %vm603 = vcmp.eq.s32.totalorder %v399, %v602
        %vm604 = vcmp.eq.s32.totalorder %v400, %v602
        %vm605 = vcmp.eq.s32.totalorder %v401, %v602
        %vm606 = vcmp.eq.s32.totalorder %v402, %v602
        %vm607 = vcmp.eq.s32.totalorder %v403, %v602
        %vm608 = vcmp.eq.s32.totalorder %v404, %v602
        %vm609 = vcmp.eq.s32.totalorder %v405, %v602
        %vm610 = vcmp.eq.s32.totalorder %v406, %v602
        %vm611 = vcmp.eq.s32.totalorder %v407, %v602
        %vm612 = vcmp.eq.s32.totalorder %v408, %v602
        %vm613 = vcmp.eq.s32.totalorder %v409, %v602
        %vm614 = vcmp.eq.s32.totalorder %v410, %v602
        %vm615 = vcmp.eq.s32.totalorder %v411, %v602
        %vm616 = vcmp.eq.s32.totalorder %v412, %v602
        %vm617 = vcmp.eq.s32.totalorder %v413, %v602
        %vm618 = vcmp.eq.s32.totalorder %v414, %v602
        %vm619 = vcmp.eq.s32.totalorder %v415, %v602
        %vm620 = vcmp.eq.s32.totalorder %v416, %v602
        %vm621 = vcmp.eq.s32.totalorder %v417, %v602
        %vm622 = vcmp.eq.s32.totalorder %v418, %v602
        %vm623 = vcmp.eq.s32.totalorder %v419, %v602
        %vm624 = vcmp.eq.s32.totalorder %v420, %v602
        %vm625 = vcmp.eq.s32.totalorder %v421, %v602
        %vm626 = vcmp.eq.s32.totalorder %v422, %v602
        %vm627 = vcmp.eq.s32.totalorder %v423, %v602
        %vm628 = vcmp.eq.s32.totalorder %v424, %v602
        %vm629 = vcmp.eq.s32.totalorder %v425, %v602
        %vm630 = vcmp.eq.s32.totalorder %v426, %v602
        %vm631 = vcmp.eq.s32.totalorder %v427, %v602
        %vm632 = vcmp.eq.s32.totalorder %v428, %v602
        %vm633 = vcmp.eq.s32.totalorder %v429, %v602
        %vm634 = vcmp.eq.s32.totalorder %v430, %v602
        %v635 = vsel %vm603, %v171, inf
        %v636 = vsel %vm604, %v176, inf
        %v637 = vsel %vm605, %v181, inf
        %v638 = vsel %vm606, %v186, inf
        %v639 = vsel %vm607, %v191, inf
        %v640 = vsel %vm608, %v196, inf
        %v641 = vsel %vm609, %v201, inf
        %v642 = vsel %vm610, %v206, inf
        %v643 = vsel %vm611, %v211, inf
        %v644 = vsel %vm612, %v216, inf
        %v645 = vsel %vm613, %v221, inf
        %v646 = vsel %vm614, %v226, inf
        %v647 = vsel %vm615, %v231, inf
        %v648 = vsel %vm616, %v236, inf
        %v649 = vsel %vm617, %v241, inf
        %v650 = vsel %vm618, %v246, inf
        %v651 = vsel %vm619, %v251, inf
        %v652 = vsel %vm620, %v256, inf
        %v653 = vsel %vm621, %v261, inf
        %v654 = vsel %vm622, %v266, inf
        %v655 = vsel %vm623, %v271, inf
        %v656 = vsel %vm624, %v276, inf
        %v657 = vsel %vm625, %v281, inf
        %v658 = vsel %vm626, %v286, inf
        %v659 = vsel %vm627, %v291, inf
        %v660 = vsel %vm628, %v296, inf
        %v661 = vsel %vm629, %v301, inf
        %v662 = vsel %vm630, %v306, inf
        %v663 = vsel %vm631, %v311, inf
        %v664 = vsel %vm632, %v316, inf
        %v665 = vsel %vm633, %v321, inf
        %v666 = vsel %vm634, %v326, inf
        %v667 = vmin.f32 %v635, %v639
        %v668 = vmin.f32 %v636, %v640
        %v669 = vmin.f32 %v637, %v641
        %v670 = vmin.f32 %v638, %v642
        %v671 = vmin.f32 %v667, %v643
        %v672 = vmin.f32 %v668, %v644
        %v673 = vmin.f32 %v669, %v645
        %v674 = vmin.f32 %v670, %v646
        %v675 = vmin.f32 %v671, %v647
        %v676 = vmin.f32 %v672, %v648
        %v677 = vmin.f32 %v673, %v649
        %v678 = vmin.f32 %v674, %v650
        %v679 = vmin.f32 %v675, %v651
        %v680 = vmin.f32 %v676, %v652
        %v681 = vmin.f32 %v677, %v653
        %v682 = vmin.f32 %v678, %v654
        %v683 = vmin.f32 %v679, %v655
        %v684 = vmin.f32 %v680, %v656
        %v685 = vmin.f32 %v681, %v657
        %v686 = vmin.f32 %v682, %v658
        %v687 = vmin.f32 %v683, %v659
        %v688 = vmin.f32 %v684, %v660
        %v689 = vmin.f32 %v685, %v661
        %v690 = vmin.f32 %v686, %v662
        %v691 = vmin.f32 %v687, %v663
        %v692 = vmin.f32 %v688, %v664
        %v693 = vmin.f32 %v689, %v665
        %v694 = vmin.f32 %v690, %v666
        %v695 = vmin.f32 %v691, %v692
        %v696 = vmin.f32 %v693, %v694
        %v697 = vmin.f32 %v695, %v696
        %v698 = vrot.slane %v697, 4
        %v699 = vmin.f32 %v697, %v698
        %v700 = vrot.slane %v699, 2
        %v701 = vmin.f32 %v699, %v700
        %v702 = vrot.slane %v701, 1
        %v703 = vmin.f32 %v701, %v702
        %v704 = vadd.f32 %v703, 0.0
        %v705 = vsel %vm603, inf, %v366
        %v706 = vsel %vm604, inf, %v367
        %v707 = vsel %vm605, inf, %v368
        %v708 = vsel %vm606, inf, %v369
        %v709 = vsel %vm607, inf, %v370
        %v710 = vsel %vm608, inf, %v371
        %v711 = vsel %vm609, inf, %v372
        %v712 = vsel %vm610, inf, %v373
        %v713 = vsel %vm611, inf, %v374
        %v714 = vsel %vm612, inf, %v375
        %v715 = vsel %vm613, inf, %v376
        %v716 = vsel %vm614, inf, %v377
        %v717 = vsel %vm615, inf, %v378
        %v718 = vsel %vm616, inf, %v379
        %v719 = vsel %vm617, inf, %v380
        %v720 = vsel %vm618, inf, %v381
        %v721 = vsel %vm619, inf, %v382
        %v722 = vsel %vm620, inf, %v383
        %v723 = vsel %vm621, inf, %v384
        %v724 = vsel %vm622, inf, %v385
        %v725 = vsel %vm623, inf, %v386
        %v726 = vsel %vm624, inf, %v387
        %v727 = vsel %vm625, inf, %v388
        %v728 = vsel %vm626, inf, %v389
        %v729 = vsel %vm627, inf, %v390
        %v730 = vsel %vm628, inf, %v391
        %v731 = vsel %vm629, inf, %v392
        %v732 = vsel %vm630, inf, %v393
        %v733 = vsel %vm631, inf, %v394
        %v734 = vsel %vm632, inf, %v395
        %v735 = vsel %vm633, inf, %v396
        %v736 = vsel %vm634, inf, %v397
        %v737 = vmin.f32 %v705, %v709
        %v738 = vmin.f32 %v706, %v710
        %v739 = vmin.f32 %v707, %v711
        %v740 = vmin.f32 %v708, %v712
        %v741 = vmin.f32 %v737, %v713
        %v742 = vmin.f32 %v738, %v714
        %v743 = vmin.f32 %v739, %v715
        %v744 = vmin.f32 %v740, %v716
        %v745 = vmin.f32 %v741, %v717
        %v746 = vmin.f32 %v742, %v718
        %v747 = vmin.f32 %v743, %v719
        %v748 = vmin.f32 %v744, %v720
        %v749 = vmin.f32 %v745, %v721
        %v750 = vmin.f32 %v746, %v722
        %v751 = vmin.f32 %v747, %v723
        %v752 = vmin.f32 %v748, %v724
        %v753 = vmin.f32 %v749, %v725
        %v754 = vmin.f32 %v750, %v726
        %v755 = vmin.f32 %v751, %v727
        %v756 = vmin.f32 %v752, %v728
        %v757 = vmin.f32 %v753, %v729
        %v758 = vmin.f32 %v754, %v730
        %v759 = vmin.f32 %v755, %v731
        %v760 = vmin.f32 %v756, %v732
        %v761 = vmin.f32 %v757, %v733
        %v762 = vmin.f32 %v758, %v734
        %v763 = vmin.f32 %v759, %v735
        %v764 = vmin.f32 %v760, %v736
        %v765 = vmin.f32 %v761, %v762
        %v766 = vmin.f32 %v763, %v764
        %v767 = vmin.f32 %v765, %v766
        %v768 = vrot.slane %v767, 4
        %v769 = vmin.f32 %v767, %v768
        %v770 = vrot.slane %v769, 2
        %v771 = vmin.f32 %v769, %v770
        %v772 = vrot.slane %v771, 1
        %v773 = vmin.f32 %v771, %v772
        %vm774 = vcmp.eq.f32.partialorder %v705, %v773
        %vm775 = vcmp.eq.f32.partialorder %v706, %v773
        %vm776 = vcmp.eq.f32.partialorder %v707, %v773
        %vm777 = vcmp.eq.f32.partialorder %v708, %v773
        %vm778 = vcmp.eq.f32.partialorder %v709, %v773
        %vm779 = vcmp.eq.f32.partialorder %v710, %v773
        %vm780 = vcmp.eq.f32.partialorder %v711, %v773
        %vm781 = vcmp.eq.f32.partialorder %v712, %v773
        %vm782 = vcmp.eq.f32.partialorder %v713, %v773
        %vm783 = vcmp.eq.f32.partialorder %v714, %v773
        %vm784 = vcmp.eq.f32.partialorder %v715, %v773
        %vm785 = vcmp.eq.f32.partialorder %v716, %v773
        %vm786 = vcmp.eq.f32.partialorder %v717, %v773
        %vm787 = vcmp.eq.f32.partialorder %v718, %v773
        %vm788 = vcmp.eq.f32.partialorder %v719, %v773
        %vm789 = vcmp.eq.f32.partialorder %v720, %v773
        %vm790 = vcmp.eq.f32.partialorder %v721, %v773
        %vm791 = vcmp.eq.f32.partialorder %v722, %v773
        %vm792 = vcmp.eq.f32.partialorder %v723, %v773
        %vm793 = vcmp.eq.f32.partialorder %v724, %v773
        %vm794 = vcmp.eq.f32.partialorder %v725, %v773
        %vm795 = vcmp.eq.f32.partialorder %v726, %v773
        %vm796 = vcmp.eq.f32.partialorder %v727, %v773
        %vm797 = vcmp.eq.f32.partialorder %v728, %v773
        %vm798 = vcmp.eq.f32.partialorder %v729, %v773
        %vm799 = vcmp.eq.f32.partialorder %v730, %v773
        %vm800 = vcmp.eq.f32.partialorder %v731, %v773
        %vm801 = vcmp.eq.f32.partialorder %v732, %v773
        %vm802 = vcmp.eq.f32.partialorder %v733, %v773
        %vm803 = vcmp.eq.f32.partialorder %v734, %v773
        %vm804 = vcmp.eq.f32.partialorder %v735, %v773
        %vm805 = vcmp.eq.f32.partialorder %v736, %v773
        %v806 = vsel %vm774, %v399, 256
        %v807 = vsel %vm775, %v400, 256
        %v808 = vsel %vm776, %v401, 256
        %v809 = vsel %vm777, %v402, 256
        %v810 = vsel %vm778, %v403, 256
        %v811 = vsel %vm779, %v404, 256
        %v812 = vsel %vm780, %v405, 256
        %v813 = vsel %vm781, %v406, 256
        %v814 = vsel %vm782, %v407, 256
        %v815 = vsel %vm783, %v408, 256
        %v816 = vsel %vm784, %v409, 256
        %v817 = vsel %vm785, %v410, 256
        %v818 = vsel %vm786, %v411, 256
        %v819 = vsel %vm787, %v412, 256
        %v820 = vsel %vm788, %v413, 256
        %v821 = vsel %vm789, %v414, 256
        %v822 = vsel %vm790, %v415, 256
        %v823 = vsel %vm791, %v416, 256
        %v824 = vsel %vm792, %v417, 256
        %v825 = vsel %vm793, %v418, 256
        %v826 = vsel %vm794, %v419, 256
        %v827 = vsel %vm795, %v420, 256
        %v828 = vsel %vm796, %v421, 256
        %v829 = vsel %vm797, %v422, 256
        %v830 = vsel %vm798, %v423, 256
        %v831 = vsel %vm799, %v424, 256
        %v832 = vsel %vm800, %v425, 256
        %v833 = vsel %vm801, %v426, 256
        %v834 = vsel %vm802, %v427, 256
        %v835 = vsel %vm803, %v428, 256
        %v836 = vsel %vm804, %v429, 256
        %v837 = vsel %vm805, %v430, 256
        %vm838 = vcmp.lt.s32.totalorder %v806, %v810
        %v839 = vsel %vm838, %v806, %v810
        %vm840 = vcmp.lt.s32.totalorder %v807, %v811
        %v841 = vsel %vm840, %v807, %v811
        %vm842 = vcmp.lt.s32.totalorder %v808, %v812
        %v843 = vsel %vm842, %v808, %v812
        %vm844 = vcmp.lt.s32.totalorder %v809, %v813
        %v845 = vsel %vm844, %v809, %v813
        %vm846 = vcmp.lt.s32.totalorder %v839, %v814
        %v847 = vsel %vm846, %v839, %v814
        %vm848 = vcmp.lt.s32.totalorder %v841, %v815
        %v849 = vsel %vm848, %v841, %v815
        %vm850 = vcmp.lt.s32.totalorder %v843, %v816
        %v851 = vsel %vm850, %v843, %v816
        %vm852 = vcmp.lt.s32.totalorder %v845, %v817
        %v853 = vsel %vm852, %v845, %v817
        %vm854 = vcmp.lt.s32.totalorder %v847, %v818
        %v855 = vsel %vm854, %v847, %v818
        %vm856 = vcmp.lt.s32.totalorder %v849, %v819
        %v857 = vsel %vm856, %v849, %v819
        %vm858 = vcmp.lt.s32.totalorder %v851, %v820
        %v859 = vsel %vm858, %v851, %v820
        %vm860 = vcmp.lt.s32.totalorder %v853, %v821
        %v861 = vsel %vm860, %v853, %v821
        %vm862 = vcmp.lt.s32.totalorder %v855, %v822
        %v863 = vsel %vm862, %v855, %v822
        %vm864 = vcmp.lt.s32.totalorder %v857, %v823
        %v865 = vsel %vm864, %v857, %v823
        %vm866 = vcmp.lt.s32.totalorder %v859, %v824
        %v867 = vsel %vm866, %v859, %v824
        %vm868 = vcmp.lt.s32.totalorder %v861, %v825
        %v869 = vsel %vm868, %v861, %v825
        %vm870 = vcmp.lt.s32.totalorder %v863, %v826
        %v871 = vsel %vm870, %v863, %v826
        %vm872 = vcmp.lt.s32.totalorder %v865, %v827
        %v873 = vsel %vm872, %v865, %v827
        %vm874 = vcmp.lt.s32.totalorder %v867, %v828
        %v875 = vsel %vm874, %v867, %v828
        %vm876 = vcmp.lt.s32.totalorder %v869, %v829
        %v877 = vsel %vm876, %v869, %v829
        %vm878 = vcmp.lt.s32.totalorder %v871, %v830
        %v879 = vsel %vm878, %v871, %v830
        %vm880 = vcmp.lt.s32.totalorder %v873, %v831
        %v881 = vsel %vm880, %v873, %v831
        %vm882 = vcmp.lt.s32.totalorder %v875, %v832
        %v883 = vsel %vm882, %v875, %v832
        %vm884 = vcmp.lt.s32.totalorder %v877, %v833
        %v885 = vsel %vm884, %v877, %v833
        %vm886 = vcmp.lt.s32.totalorder %v879, %v834
        %v887 = vsel %vm886, %v879, %v834
        %vm888 = vcmp.lt.s32.totalorder %v881, %v835
        %v889 = vsel %vm888, %v881, %v835
        %vm890 = vcmp.lt.s32.totalorder %v883, %v836
        %v891 = vsel %vm890, %v883, %v836
        %vm892 = vcmp.lt.s32.totalorder %v885, %v837
        %v893 = vsel %vm892, %v885, %v837
        %vm894 = vcmp.lt.s32.totalorder %v887, %v889
        %v895 = vsel %vm894, %v887, %v889
        %vm896 = vcmp.lt.s32.totalorder %v891, %v893
        %v897 = vsel %vm896, %v891, %v893
        %vm898 = vcmp.lt.s32.totalorder %v895, %v897
        %v899 = vsel %vm898, %v895, %v897
        %v900 = vrot.slane %v899, 4
        %vm901 = vcmp.lt.s32.totalorder %v899, %v900
        %v902 = vsel %vm901, %v899, %v900
        %v903 = vrot.slane %v902, 2
        %vm904 = vcmp.lt.s32.totalorder %v902, %v903
        %v905 = vsel %vm904, %v902, %v903
        %v906 = vrot.slane %v905, 1
        %vm907 = vcmp.lt.s32.totalorder %v905, %v906
        %v908 = vsel %vm907, %v905, %v906
        %vm909 = vcmp.eq.s32.totalorder %v399, %v908
        %vm910 = vcmp.eq.s32.totalorder %v400, %v908
        %vm911 = vcmp.eq.s32.totalorder %v401, %v908
        %vm912 = vcmp.eq.s32.totalorder %v402, %v908
        %vm913 = vcmp.eq.s32.totalorder %v403, %v908
        %vm914 = vcmp.eq.s32.totalorder %v404, %v908
        %vm915 = vcmp.eq.s32.totalorder %v405, %v908
        %vm916 = vcmp.eq.s32.totalorder %v406, %v908
        %vm917 = vcmp.eq.s32.totalorder %v407, %v908
        %vm918 = vcmp.eq.s32.totalorder %v408, %v908
        %vm919 = vcmp.eq.s32.totalorder %v409, %v908
        %vm920 = vcmp.eq.s32.totalorder %v410, %v908
        %vm921 = vcmp.eq.s32.totalorder %v411, %v908
        %vm922 = vcmp.eq.s32.totalorder %v412, %v908
        %vm923 = vcmp.eq.s32.totalorder %v413, %v908
        %vm924 = vcmp.eq.s32.totalorder %v414, %v908
        %vm925 = vcmp.eq.s32.totalorder %v415, %v908
        %vm926 = vcmp.eq.s32.totalorder %v416, %v908
        %vm927 = vcmp.eq.s32.totalorder %v417, %v908
        %vm928 = vcmp.eq.s32.totalorder %v418, %v908
        %vm929 = vcmp.eq.s32.totalorder %v419, %v908
        %vm930 = vcmp.eq.s32.totalorder %v420, %v908
        %vm931 = vcmp.eq.s32.totalorder %v421, %v908
        %vm932 = vcmp.eq.s32.totalorder %v422, %v908
        %vm933 = vcmp.eq.s32.totalorder %v423, %v908
        %vm934 = vcmp.eq.s32.totalorder %v424, %v908
        %vm935 = vcmp.eq.s32.totalorder %v425, %v908
        %vm936 = vcmp.eq.s32.totalorder %v426, %v908
        %vm937 = vcmp.eq.s32.totalorder %v427, %v908
        %vm938 = vcmp.eq.s32.totalorder %v428, %v908
        %vm939 = vcmp.eq.s32.totalorder %v429, %v908
        %vm940 = vcmp.eq.s32.totalorder %v430, %v908
        %v941 = vsel %vm909, %v171, inf
        %v942 = vsel %vm910, %v176, inf
        %v943 = vsel %vm911, %v181, inf
        %v944 = vsel %vm912, %v186, inf
        %v945 = vsel %vm913, %v191, inf
        %v946 = vsel %vm914, %v196, inf
        %v947 = vsel %vm915, %v201, inf
        %v948 = vsel %vm916, %v206, inf
        %v949 = vsel %vm917, %v211, inf
        %v950 = vsel %vm918, %v216, inf
        %v951 = vsel %vm919, %v221, inf
        %v952 = vsel %vm920, %v226, inf
        %v953 = vsel %vm921, %v231, inf
        %v954 = vsel %vm922, %v236, inf
        %v955 = vsel %vm923, %v241, inf
        %v956 = vsel %vm924, %v246, inf
        %v957 = vsel %vm925, %v251, inf
        %v958 = vsel %vm926, %v256, inf
        %v959 = vsel %vm927, %v261, inf
        %v960 = vsel %vm928, %v266, inf
        %v961 = vsel %vm929, %v271, inf
        %v962 = vsel %vm930, %v276, inf
        %v963 = vsel %vm931, %v281, inf
        %v964 = vsel %vm932, %v286, inf
        %v965 = vsel %vm933, %v291, inf
        %v966 = vsel %vm934, %v296, inf
        %v967 = vsel %vm935, %v301, inf
        %v968 = vsel %vm936, %v306, inf
        %v969 = vsel %vm937, %v311, inf
        %v970 = vsel %vm938, %v316, inf
        %v971 = vsel %vm939, %v321, inf
        %v972 = vsel %vm940, %v326, inf
        %v973 = vmin.f32 %v941, %v945
        %v974 = vmin.f32 %v942, %v946
        %v975 = vmin.f32 %v943, %v947
        %v976 = vmin.f32 %v944, %v948
        %v977 = vmin.f32 %v973, %v949
        %v978 = vmin.f32 %v974, %v950
        %v979 = vmin.f32 %v975, %v951
        %v980 = vmin.f32 %v976, %v952
        %v981 = vmin.f32 %v977, %v953
        %v982 = vmin.f32 %v978, %v954
        %v983 = vmin.f32 %v979, %v955
        %v984 = vmin.f32 %v980, %v956
        %v985 = vmin.f32 %v981, %v957
        %v986 = vmin.f32 %v982, %v958
        %v987 = vmin.f32 %v983, %v959
        %v988 = vmin.f32 %v984, %v960
        %v989 = vmin.f32 %v985, %v961
        %v990 = vmin.f32 %v986, %v962
        %v991 = vmin.f32 %v987, %v963
        %v992 = vmin.f32 %v988, %v964
        %v993 = vmin.f32 %v989, %v965
        %v994 = vmin.f32 %v990, %v966
        %v995 = vmin.f32 %v991, %v967
        %v996 = vmin.f32 %v992, %v968
        %v997 = vmin.f32 %v993, %v969
        %v998 = vmin.f32 %v994, %v970
        %v999 = vmin.f32 %v995, %v971
        %v1000 = vmin.f32 %v996, %v972
        %v1001 = vmin.f32 %v997, %v998
        %v1002 = vmin.f32 %v999, %v1000
        %v1003 = vmin.f32 %v1001, %v1002
        %v1004 = vrot.slane %v1003, 4
        %v1005 = vmin.f32 %v1003, %v1004
        %v1006 = vrot.slane %v1005, 2
        %v1007 = vmin.f32 %v1005, %v1006
        %v1008 = vrot.slane %v1007, 1
        %v1009 = vmin.f32 %v1007, %v1008
        %v1010 = vadd.f32 %v704, %v1009
        %v1011 = vsel %vm909, inf, %v705
        %v1012 = vsel %vm910, inf, %v706
        %v1013 = vsel %vm911, inf, %v707
        %v1014 = vsel %vm912, inf, %v708
        %v1015 = vsel %vm913, inf, %v709
        %v1016 = vsel %vm914, inf, %v710
        %v1017 = vsel %vm915, inf, %v711
        %v1018 = vsel %vm916, inf, %v712
        %v1019 = vsel %vm917, inf, %v713
        %v1020 = vsel %vm918, inf, %v714
        %v1021 = vsel %vm919, inf, %v715
        %v1022 = vsel %vm920, inf, %v716
        %v1023 = vsel %vm921, inf, %v717
        %v1024 = vsel %vm922, inf, %v718
        %v1025 = vsel %vm923, inf, %v719
        %v1026 = vsel %vm924, inf, %v720
        %v1027 = vsel %vm925, inf, %v721
        %v1028 = vsel %vm926, inf, %v722
        %v1029 = vsel %vm927, inf, %v723
        %v1030 = vsel %vm928, inf, %v724
        %v1031 = vsel %vm929, inf, %v725
        %v1032 = vsel %vm930, inf, %v726
        %v1033 = vsel %vm931, inf, %v727
        %v1034 = vsel %vm932, inf, %v728
        %v1035 = vsel %vm933, inf, %v729
        %v1036 = vsel %vm934, inf, %v730
        %v1037 = vsel %vm935, inf, %v731
        %v1038 = vsel %vm936, inf, %v732
        %v1039 = vsel %vm937, inf, %v733
        %v1040 = vsel %vm938, inf, %v734
        %v1041 = vsel %vm939, inf, %v735
        %v1042 = vsel %vm940, inf, %v736
        %v1043 = vmin.f32 %v1011, %v1015
        %v1044 = vmin.f32 %v1012, %v1016
        %v1045 = vmin.f32 %v1013, %v1017
        %v1046 = vmin.f32 %v1014, %v1018
        %v1047 = vmin.f32 %v1043, %v1019
        %v1048 = vmin.f32 %v1044, %v1020
        %v1049 = vmin.f32 %v1045, %v1021
        %v1050 = vmin.f32 %v1046, %v1022
        %v1051 = vmin.f32 %v1047, %v1023
        %v1052 = vmin.f32 %v1048, %v1024
        %v1053 = vmin.f32 %v1049, %v1025
        %v1054 = vmin.f32 %v1050, %v1026
        %v1055 = vmin.f32 %v1051, %v1027
        %v1056 = vmin.f32 %v1052, %v1028
        %v1057 = vmin.f32 %v1053, %v1029
        %v1058 = vmin.f32 %v1054, %v1030
        %v1059 = vmin.f32 %v1055, %v1031
        %v1060 = vmin.f32 %v1056, %v1032
        %v1061 = vmin.f32 %v1057, %v1033
        %v1062 = vmin.f32 %v1058, %v1034
        %v1063 = vmin.f32 %v1059, %v1035
        %v1064 = vmin.f32 %v1060, %v1036
        %v1065 = vmin.f32 %v1061, %v1037
        %v1066 = vmin.f32 %v1062, %v1038
        %v1067 = vmin.f32 %v1063, %v1039
        %v1068 = vmin.f32 %v1064, %v1040
        %v1069 = vmin.f32 %v1065, %v1041
        %v1070 = vmin.f32 %v1066, %v1042
        %v1071 = vmin.f32 %v1067, %v1068
        %v1072 = vmin.f32 %v1069, %v1070
        %v1073 = vmin.f32 %v1071, %v1072
        %v1074 = vrot.slane %v1073, 4
        %v1075 = vmin.f32 %v1073, %v1074
        %v1076 = vrot.slane %v1075, 2
        %v1077 = vmin.f32 %v1075, %v1076
        %v1078 = vrot.slane %v1077, 1
        %v1079 = vmin.f32 %v1077, %v1078
        %vm1080 = vcmp.eq.f32.partialorder %v1011, %v1079
        %vm1081 = vcmp.eq.f32.partialorder %v1012, %v1079
        %vm1082 = vcmp.eq.f32.partialorder %v1013, %v1079
        %vm1083 = vcmp.eq.f32.partialorder %v1014, %v1079
        %vm1084 = vcmp.eq.f32.partialorder %v1015, %v1079
        %vm1085 = vcmp.eq.f32.partialorder %v1016, %v1079
        %vm1086 = vcmp.eq.f32.partialorder %v1017, %v1079
        %vm1087 = vcmp.eq.f32.partialorder %v1018, %v1079
        %vm1088 = vcmp.eq.f32.partialorder %v1019, %v1079
        %vm1089 = vcmp.eq.f32.partialorder %v1020, %v1079
        %vm1090 = vcmp.eq.f32.partialorder %v1021, %v1079
        %vm1091 = vcmp.eq.f32.partialorder %v1022, %v1079
        %vm1092 = vcmp.eq.f32.partialorder %v1023, %v1079
        %vm1093 = vcmp.eq.f32.partialorder %v1024, %v1079
        %vm1094 = vcmp.eq.f32.partialorder %v1025, %v1079
        %vm1095 = vcmp.eq.f32.partialorder %v1026, %v1079
        %vm1096 = vcmp.eq.f32.partialorder %v1027, %v1079
        %vm1097 = vcmp.eq.f32.partialorder %v1028, %v1079
        %vm1098 = vcmp.eq.f32.partialorder %v1029, %v1079
        %vm1099 = vcmp.eq.f32.partialorder %v1030, %v1079
        %vm1100 = vcmp.eq.f32.partialorder %v1031, %v1079
        %vm1101 = vcmp.eq.f32.partialorder %v1032, %v1079
        %vm1102 = vcmp.eq.f32.partialorder %v1033, %v1079
        %vm1103 = vcmp.eq.f32.partialorder %v1034, %v1079
        %vm1104 = vcmp.eq.f32.partialorder %v1035, %v1079
        %vm1105 = vcmp.eq.f32.partialorder %v1036, %v1079
        %vm1106 = vcmp.eq.f32.partialorder %v1037, %v1079
        %vm1107 = vcmp.eq.f32.partialorder %v1038, %v1079
        %vm1108 = vcmp.eq.f32.partialorder %v1039, %v1079
        %vm1109 = vcmp.eq.f32.partialorder %v1040, %v1079
        %vm1110 = vcmp.eq.f32.partialorder %v1041, %v1079
        %vm1111 = vcmp.eq.f32.partialorder %v1042, %v1079
        %v1112 = vsel %vm1080, %v399, 256
        %v1113 = vsel %vm1081, %v400, 256
        %v1114 = vsel %vm1082, %v401, 256
        %v1115 = vsel %vm1083, %v402, 256
        %v1116 = vsel %vm1084, %v403, 256
        %v1117 = vsel %vm1085, %v404, 256
        %v1118 = vsel %vm1086, %v405, 256
        %v1119 = vsel %vm1087, %v406, 256
        %v1120 = vsel %vm1088, %v407, 256
        %v1121 = vsel %vm1089, %v408, 256
        %v1122 = vsel %vm1090, %v409, 256
        %v1123 = vsel %vm1091, %v410, 256
        %v1124 = vsel %vm1092, %v411, 256
        %v1125 = vsel %vm1093, %v412, 256
        %v1126 = vsel %vm1094, %v413, 256
        %v1127 = vsel %vm1095, %v414, 256
        %v1128 = vsel %vm1096, %v415, 256
        %v1129 = vsel %vm1097, %v416, 256
        %v1130 = vsel %vm1098, %v417, 256
        %v1131 = vsel %vm1099, %v418, 256
        %v1132 = vsel %vm1100, %v419, 256
        %v1133 = vsel %vm1101, %v420, 256
        %v1134 = vsel %vm1102, %v421, 256
        %v1135 = vsel %vm1103, %v422, 256
        %v1136 = vsel %vm1104, %v423, 256
        %v1137 = vsel %vm1105, %v424, 256
        %v1138 = vsel %vm1106, %v425, 256
        %v1139 = vsel %vm1107, %v426, 256
        %v1140 = vsel %vm1108, %v427, 256
        %v1141 = vsel %vm1109, %v428, 256
        %v1142 = vsel %vm1110, %v429, 256
        %v1143 = vsel %vm1111, %v430, 256
        %vm1144 = vcmp.lt.s32.totalorder %v1112, %v1116
        %v1145 = vsel %vm1144, %v1112, %v1116
        %vm1146 = vcmp.lt.s32.totalorder %v1113, %v1117
        %v1147 = vsel %vm1146, %v1113, %v1117
        %vm1148 = vcmp.lt.s32.totalorder %v1114, %v1118
        %v1149 = vsel %vm1148, %v1114, %v1118
        %vm1150 = vcmp.lt.s32.totalorder %v1115, %v1119
        %v1151 = vsel %vm1150, %v1115, %v1119
        %vm1152 = vcmp.lt.s32.totalorder %v1145, %v1120
        %v1153 = vsel %vm1152, %v1145, %v1120
        %vm1154 = vcmp.lt.s32.totalorder %v1147, %v1121
        %v1155 = vsel %vm1154, %v1147, %v1121
        %vm1156 = vcmp.lt.s32.totalorder %v1149, %v1122
        %v1157 = vsel %vm1156, %v1149, %v1122
        %vm1158 = vcmp.lt.s32.totalorder %v1151, %v1123
        %v1159 = vsel %vm1158, %v1151, %v1123
        %vm1160 = vcmp.lt.s32.totalorder %v1153, %v1124
        %v1161 = vsel %vm1160, %v1153, %v1124
        %vm1162 = vcmp.lt.s32.totalorder %v1155, %v1125
        %v1163 = vsel %vm1162, %v1155, %v1125
        %vm1164 = vcmp.lt.s32.totalorder %v1157, %v1126
        %v1165 = vsel %vm1164, %v1157, %v1126
        %vm1166 = vcmp.lt.s32.totalorder %v1159, %v1127
        %v1167 = vsel %vm1166, %v1159, %v1127
        %vm1168 = vcmp.lt.s32.totalorder %v1161, %v1128
        %v1169 = vsel %vm1168, %v1161, %v1128
        %vm1170 = vcmp.lt.s32.totalorder %v1163, %v1129
        %v1171 = vsel %vm1170, %v1163, %v1129
        %vm1172 = vcmp.lt.s32.totalorder %v1165, %v1130
        %v1173 = vsel %vm1172, %v1165, %v1130
        %vm1174 = vcmp.lt.s32.totalorder %v1167, %v1131
        %v1175 = vsel %vm1174, %v1167, %v1131
        %vm1176 = vcmp.lt.s32.totalorder %v1169, %v1132
        %v1177 = vsel %vm1176, %v1169, %v1132
        %vm1178 = vcmp.lt.s32.totalorder %v1171, %v1133
        %v1179 = vsel %vm1178, %v1171, %v1133
        %vm1180 = vcmp.lt.s32.totalorder %v1173, %v1134
        %v1181 = vsel %vm1180, %v1173, %v1134
        %vm1182 = vcmp.lt.s32.totalorder %v1175, %v1135
        %v1183 = vsel %vm1182, %v1175, %v1135
        %vm1184 = vcmp.lt.s32.totalorder %v1177, %v1136
        %v1185 = vsel %vm1184, %v1177, %v1136
        %vm1186 = vcmp.lt.s32.totalorder %v1179, %v1137
        %v1187 = vsel %vm1186, %v1179, %v1137
        %vm1188 = vcmp.lt.s32.totalorder %v1181, %v1138
        %v1189 = vsel %vm1188, %v1181, %v1138
        %vm1190 = vcmp.lt.s32.totalorder %v1183, %v1139
        %v1191 = vsel %vm1190, %v1183, %v1139
        %vm1192 = vcmp.lt.s32.totalorder %v1185, %v1140
        %v1193 = vsel %vm1192, %v1185, %v1140
        %vm1194 = vcmp.lt.s32.totalorder %v1187, %v1141
        %v1195 = vsel %vm1194, %v1187, %v1141
        %vm1196 = vcmp.lt.s32.totalorder %v1189, %v1142
        %v1197 = vsel %vm1196, %v1189, %v1142
        %vm1198 = vcmp.lt.s32.totalorder %v1191, %v1143
        %v1199 = vsel %vm1198, %v1191, %v1143
        %vm1200 = vcmp.lt.s32.totalorder %v1193, %v1195
        %v1201 = vsel %vm1200, %v1193, %v1195
        %vm1202 = vcmp.lt.s32.totalorder %v1197, %v1199
        %v1203 = vsel %vm1202, %v1197, %v1199
        %vm1204 = vcmp.lt.s32.totalorder %v1201, %v1203
        %v1205 = vsel %vm1204, %v1201, %v1203
        %v1206 = vrot.slane %v1205, 4
        %vm1207 = vcmp.lt.s32.totalorder %v1205, %v1206
        %v1208 = vsel %vm1207, %v1205, %v1206
        %v1209 = vrot.slane %v1208, 2
        %vm1210 = vcmp.lt.s32.totalorder %v1208, %v1209
        %v1211 = vsel %vm1210, %v1208, %v1209
        %v1212 = vrot.slane %v1211, 1
        %vm1213 = vcmp.lt.s32.totalorder %v1211, %v1212
        %v1214 = vsel %vm1213, %v1211, %v1212
        %vm1215 = vcmp.eq.s32.totalorder %v399, %v1214
        %vm1216 = vcmp.eq.s32.totalorder %v400, %v1214
        %vm1217 = vcmp.eq.s32.totalorder %v401, %v1214
        %vm1218 = vcmp.eq.s32.totalorder %v402, %v1214
        %vm1219 = vcmp.eq.s32.totalorder %v403, %v1214
        %vm1220 = vcmp.eq.s32.totalorder %v404, %v1214
        %vm1221 = vcmp.eq.s32.totalorder %v405, %v1214
        %vm1222 = vcmp.eq.s32.totalorder %v406, %v1214
        %vm1223 = vcmp.eq.s32.totalorder %v407, %v1214
        %vm1224 = vcmp.eq.s32.totalorder %v408, %v1214
        %vm1225 = vcmp.eq.s32.totalorder %v409, %v1214
        %vm1226 = vcmp.eq.s32.totalorder %v410, %v1214
        %vm1227 = vcmp.eq.s32.totalorder %v411, %v1214
        %vm1228 = vcmp.eq.s32.totalorder %v412, %v1214
        %vm1229 = vcmp.eq.s32.totalorder %v413, %v1214
        %vm1230 = vcmp.eq.s32.totalorder %v414, %v1214
        %vm1231 = vcmp.eq.s32.totalorder %v415, %v1214
        %vm1232 = vcmp.eq.s32.totalorder %v416, %v1214
        %vm1233 = vcmp.eq.s32.totalorder %v417, %v1214
        %vm1234 = vcmp.eq.s32.totalorder %v418, %v1214
        %vm1235 = vcmp.eq.s32.totalorder %v419, %v1214
        %vm1236 = vcmp.eq.s32.totalorder %v420, %v1214
        %vm1237 = vcmp.eq.s32.totalorder %v421, %v1214
        %vm1238 = vcmp.eq.s32.totalorder %v422, %v1214
        %vm1239 = vcmp.eq.s32.totalorder %v423, %v1214
        %vm1240 = vcmp.eq.s32.totalorder %v424, %v1214
        %vm1241 = vcmp.eq.s32.totalorder %v425, %v1214
        %vm1242 = vcmp.eq.s32.totalorder %v426, %v1214
        %vm1243 = vcmp.eq.s32.totalorder %v427, %v1214
        %vm1244 = vcmp.eq.s32.totalorder %v428, %v1214
        %vm1245 = vcmp.eq.s32.totalorder %v429, %v1214
        %vm1246 = vcmp.eq.s32.totalorder %v430, %v1214
        %v1247 = vsel %vm1215, %v171, inf
        %v1248 = vsel %vm1216, %v176, inf
        %v1249 = vsel %vm1217, %v181, inf
        %v1250 = vsel %vm1218, %v186, inf
        %v1251 = vsel %vm1219, %v191, inf
        %v1252 = vsel %vm1220, %v196, inf
        %v1253 = vsel %vm1221, %v201, inf
        %v1254 = vsel %vm1222, %v206, inf
        %v1255 = vsel %vm1223, %v211, inf
        %v1256 = vsel %vm1224, %v216, inf
        %v1257 = vsel %vm1225, %v221, inf
        %v1258 = vsel %vm1226, %v226, inf
        %v1259 = vsel %vm1227, %v231, inf
        %v1260 = vsel %vm1228, %v236, inf
        %v1261 = vsel %vm1229, %v241, inf
        %v1262 = vsel %vm1230, %v246, inf
        %v1263 = vsel %vm1231, %v251, inf
        %v1264 = vsel %vm1232, %v256, inf
        %v1265 = vsel %vm1233, %v261, inf
        %v1266 = vsel %vm1234, %v266, inf
        %v1267 = vsel %vm1235, %v271, inf
        %v1268 = vsel %vm1236, %v276, inf
        %v1269 = vsel %vm1237, %v281, inf
        %v1270 = vsel %vm1238, %v286, inf
        %v1271 = vsel %vm1239, %v291, inf
        %v1272 = vsel %vm1240, %v296, inf
        %v1273 = vsel %vm1241, %v301, inf
        %v1274 = vsel %vm1242, %v306, inf
        %v1275 = vsel %vm1243, %v311, inf
        %v1276 = vsel %vm1244, %v316, inf
        %v1277 = vsel %vm1245, %v321, inf
        %v1278 = vsel %vm1246, %v326, inf
        %v1279 = vmin.f32 %v1247, %v1251
        %v1280 = vmin.f32 %v1248, %v1252
        %v1281 = vmin.f32 %v1249, %v1253
        %v1282 = vmin.f32 %v1250, %v1254
        %v1283 = vmin.f32 %v1279, %v1255
        %v1284 = vmin.f32 %v1280, %v1256
        %v1285 = vmin.f32 %v1281, %v1257
        %v1286 = vmin.f32 %v1282, %v1258
        %v1287 = vmin.f32 %v1283, %v1259
        %v1288 = vmin.f32 %v1284, %v1260
        %v1289 = vmin.f32 %v1285, %v1261
        %v1290 = vmin.f32 %v1286, %v1262
        %v1291 = vmin.f32 %v1287, %v1263
        %v1292 = vmin.f32 %v1288, %v1264
        %v1293 = vmin.f32 %v1289, %v1265
        %v1294 = vmin.f32 %v1290, %v1266
        %v1295 = vmin.f32 %v1291, %v1267
        %v1296 = vmin.f32 %v1292, %v1268
        %v1297 = vmin.f32 %v1293, %v1269
        %v1298 = vmin.f32 %v1294, %v1270
        %v1299 = vmin.f32 %v1295, %v1271
        %v1300 = vmin.f32 %v1296, %v1272
        %v1301 = vmin.f32 %v1297, %v1273
        %v1302 = vmin.f32 %v1298, %v1274
        %v1303 = vmin.f32 %v1299, %v1275
        %v1304 = vmin.f32 %v1300, %v1276
        %v1305 = vmin.f32 %v1301, %v1277
        %v1306 = vmin.f32 %v1302, %v1278
        %v1307 = vmin.f32 %v1303, %v1304
        %v1308 = vmin.f32 %v1305, %v1306
        %v1309 = vmin.f32 %v1307, %v1308
        %v1310 = vrot.slane %v1309, 4
        %v1311 = vmin.f32 %v1309, %v1310
        %v1312 = vrot.slane %v1311, 2
        %v1313 = vmin.f32 %v1311, %v1312
        %v1314 = vrot.slane %v1313, 1
        %v1315 = vmin.f32 %v1313, %v1314
        %v1316 = vadd.f32 %v1010, %v1315
        %v1317 = vsel %vm1215, inf, %v1011
        %v1318 = vsel %vm1216, inf, %v1012
        %v1319 = vsel %vm1217, inf, %v1013
        %v1320 = vsel %vm1218, inf, %v1014
        %v1321 = vsel %vm1219, inf, %v1015
        %v1322 = vsel %vm1220, inf, %v1016
        %v1323 = vsel %vm1221, inf, %v1017
        %v1324 = vsel %vm1222, inf, %v1018
        %v1325 = vsel %vm1223, inf, %v1019
        %v1326 = vsel %vm1224, inf, %v1020
        %v1327 = vsel %vm1225, inf, %v1021
        %v1328 = vsel %vm1226, inf, %v1022
        %v1329 = vsel %vm1227, inf, %v1023
        %v1330 = vsel %vm1228, inf, %v1024
        %v1331 = vsel %vm1229, inf, %v1025
        %v1332 = vsel %vm1230, inf, %v1026
        %v1333 = vsel %vm1231, inf, %v1027
        %v1334 = vsel %vm1232, inf, %v1028
        %v1335 = vsel %vm1233, inf, %v1029
        %v1336 = vsel %vm1234, inf, %v1030
        %v1337 = vsel %vm1235, inf, %v1031
        %v1338 = vsel %vm1236, inf, %v1032
        %v1339 = vsel %vm1237, inf, %v1033
        %v1340 = vsel %vm1238, inf, %v1034
        %v1341 = vsel %vm1239, inf, %v1035
        %v1342 = vsel %vm1240, inf, %v1036
        %v1343 = vsel %vm1241, inf, %v1037
        %v1344 = vsel %vm1242, inf, %v1038
        %v1345 = vsel %vm1243, inf, %v1039
        %v1346 = vsel %vm1244, inf, %v1040
        %v1347 = vsel %vm1245, inf, %v1041
        %v1348 = vsel %vm1246, inf, %v1042
        %v1349 = vmin.f32 %v1317, %v1321
        %v1350 = vmin.f32 %v1318, %v1322
        %v1351 = vmin.f32 %v1319, %v1323
        %v1352 = vmin.f32 %v1320, %v1324
        %v1353 = vmin.f32 %v1349, %v1325
        %v1354 = vmin.f32 %v1350, %v1326
        %v1355 = vmin.f32 %v1351, %v1327
        %v1356 = vmin.f32 %v1352, %v1328
        %v1357 = vmin.f32 %v1353, %v1329
        %v1358 = vmin.f32 %v1354, %v1330
        %v1359 = vmin.f32 %v1355, %v1331
        %v1360 = vmin.f32 %v1356, %v1332
        %v1361 = vmin.f32 %v1357, %v1333
        %v1362 = vmin.f32 %v1358, %v1334
        %v1363 = vmin.f32 %v1359, %v1335
        %v1364 = vmin.f32 %v1360, %v1336
        %v1365 = vmin.f32 %v1361, %v1337
        %v1366 = vmin.f32 %v1362, %v1338
        %v1367 = vmin.f32 %v1363, %v1339
        %v1368 = vmin.f32 %v1364, %v1340
        %v1369 = vmin.f32 %v1365, %v1341
        %v1370 = vmin.f32 %v1366, %v1342
        %v1371 = vmin.f32 %v1367, %v1343
        %v1372 = vmin.f32 %v1368, %v1344
        %v1373 = vmin.f32 %v1369, %v1345
        %v1374 = vmin.f32 %v1370, %v1346
        %v1375 = vmin.f32 %v1371, %v1347
        %v1376 = vmin.f32 %v1372, %v1348
        %v1377 = vmin.f32 %v1373, %v1374
        %v1378 = vmin.f32 %v1375, %v1376
        %v1379 = vmin.f32 %v1377, %v1378
        %v1380 = vrot.slane %v1379, 4
        %v1381 = vmin.f32 %v1379, %v1380
        %v1382 = vrot.slane %v1381, 2
        %v1383 = vmin.f32 %v1381, %v1382
        %v1384 = vrot.slane %v1383, 1
        %v1385 = vmin.f32 %v1383, %v1384
        %vm1386 = vcmp.eq.f32.partialorder %v1317, %v1385
        %vm1387 = vcmp.eq.f32.partialorder %v1318, %v1385
        %vm1388 = vcmp.eq.f32.partialorder %v1319, %v1385
        %vm1389 = vcmp.eq.f32.partialorder %v1320, %v1385
        %vm1390 = vcmp.eq.f32.partialorder %v1321, %v1385
        %vm1391 = vcmp.eq.f32.partialorder %v1322, %v1385
        %vm1392 = vcmp.eq.f32.partialorder %v1323, %v1385
        %vm1393 = vcmp.eq.f32.partialorder %v1324, %v1385
        %vm1394 = vcmp.eq.f32.partialorder %v1325, %v1385
        %vm1395 = vcmp.eq.f32.partialorder %v1326, %v1385
        %vm1396 = vcmp.eq.f32.partialorder %v1327, %v1385
        %vm1397 = vcmp.eq.f32.partialorder %v1328, %v1385
        %vm1398 = vcmp.eq.f32.partialorder %v1329, %v1385
        %vm1399 = vcmp.eq.f32.partialorder %v1330, %v1385
        %vm1400 = vcmp.eq.f32.partialorder %v1331, %v1385
        %vm1401 = vcmp.eq.f32.partialorder %v1332, %v1385
        %vm1402 = vcmp.eq.f32.partialorder %v1333, %v1385
        %vm1403 = vcmp.eq.f32.partialorder %v1334, %v1385
        %vm1404 = vcmp.eq.f32.partialorder %v1335, %v1385
        %vm1405 = vcmp.eq.f32.partialorder %v1336, %v1385
        %vm1406 = vcmp.eq.f32.partialorder %v1337, %v1385
        %vm1407 = vcmp.eq.f32.partialorder %v1338, %v1385
        %vm1408 = vcmp.eq.f32.partialorder %v1339, %v1385
        %vm1409 = vcmp.eq.f32.partialorder %v1340, %v1385
        %vm1410 = vcmp.eq.f32.partialorder %v1341, %v1385
        %vm1411 = vcmp.eq.f32.partialorder %v1342, %v1385
        %vm1412 = vcmp.eq.f32.partialorder %v1343, %v1385
        %vm1413 = vcmp.eq.f32.partialorder %v1344, %v1385
        %vm1414 = vcmp.eq.f32.partialorder %v1345, %v1385
        %vm1415 = vcmp.eq.f32.partialorder %v1346, %v1385
        %vm1416 = vcmp.eq.f32.partialorder %v1347, %v1385
        %vm1417 = vcmp.eq.f32.partialorder %v1348, %v1385
        %v1418 = vsel %vm1386, %v399, 256
        %v1419 = vsel %vm1387, %v400, 256
        %v1420 = vsel %vm1388, %v401, 256
        %v1421 = vsel %vm1389, %v402, 256
        %v1422 = vsel %vm1390, %v403, 256
        %v1423 = vsel %vm1391, %v404, 256
        %v1424 = vsel %vm1392, %v405, 256
        %v1425 = vsel %vm1393, %v406, 256
        %v1426 = vsel %vm1394, %v407, 256
        %v1427 = vsel %vm1395, %v408, 256
        %v1428 = vsel %vm1396, %v409, 256
        %v1429 = vsel %vm1397, %v410, 256
        %v1430 = vsel %vm1398, %v411, 256
        %v1431 = vsel %vm1399, %v412, 256
        %v1432 = vsel %vm1400, %v413, 256
        %v1433 = vsel %vm1401, %v414, 256
        %v1434 = vsel %vm1402, %v415, 256
        %v1435 = vsel %vm1403, %v416, 256
        %v1436 = vsel %vm1404, %v417, 256
        %v1437 = vsel %vm1405, %v418, 256
        %v1438 = vsel %vm1406, %v419, 256
        %v1439 = vsel %vm1407, %v420, 256
        %v1440 = vsel %vm1408, %v421, 256
        %v1441 = vsel %vm1409, %v422, 256
        %v1442 = vsel %vm1410, %v423, 256
        %v1443 = vsel %vm1411, %v424, 256
        %v1444 = vsel %vm1412, %v425, 256
        %v1445 = vsel %vm1413, %v426, 256
        %v1446 = vsel %vm1414, %v427, 256
        %v1447 = vsel %vm1415, %v428, 256
        %v1448 = vsel %vm1416, %v429, 256
        %v1449 = vsel %vm1417, %v430, 256
        %vm1450 = vcmp.lt.s32.totalorder %v1418, %v1422
        %v1451 = vsel %vm1450, %v1418, %v1422
        %vm1452 = vcmp.lt.s32.totalorder %v1419, %v1423
        %v1453 = vsel %vm1452, %v1419, %v1423
        %vm1454 = vcmp.lt.s32.totalorder %v1420, %v1424
        %v1455 = vsel %vm1454, %v1420, %v1424
        %vm1456 = vcmp.lt.s32.totalorder %v1421, %v1425
        %v1457 = vsel %vm1456, %v1421, %v1425
        %vm1458 = vcmp.lt.s32.totalorder %v1451, %v1426
        %v1459 = vsel %vm1458, %v1451, %v1426
        %vm1460 = vcmp.lt.s32.totalorder %v1453, %v1427
        %v1461 = vsel %vm1460, %v1453, %v1427
        %vm1462 = vcmp.lt.s32.totalorder %v1455, %v1428
        %v1463 = vsel %vm1462, %v1455, %v1428
        %vm1464 = vcmp.lt.s32.totalorder %v1457, %v1429
        %v1465 = vsel %vm1464, %v1457, %v1429
        %vm1466 = vcmp.lt.s32.totalorder %v1459, %v1430
        %v1467 = vsel %vm1466, %v1459, %v1430
        %vm1468 = vcmp.lt.s32.totalorder %v1461, %v1431
        %v1469 = vsel %vm1468, %v1461, %v1431
        %vm1470 = vcmp.lt.s32.totalorder %v1463, %v1432
        %v1471 = vsel %vm1470, %v1463, %v1432
        %vm1472 = vcmp.lt.s32.totalorder %v1465, %v1433
        %v1473 = vsel %vm1472, %v1465, %v1433
        %vm1474 = vcmp.lt.s32.totalorder %v1467, %v1434
        %v1475 = vsel %vm1474, %v1467, %v1434
        %vm1476 = vcmp.lt.s32.totalorder %v1469, %v1435
        %v1477 = vsel %vm1476, %v1469, %v1435
        %vm1478 = vcmp.lt.s32.totalorder %v1471, %v1436
        %v1479 = vsel %vm1478, %v1471, %v1436
        %vm1480 = vcmp.lt.s32.totalorder %v1473, %v1437
        %v1481 = vsel %vm1480, %v1473, %v1437
        %vm1482 = vcmp.lt.s32.totalorder %v1475, %v1438
        %v1483 = vsel %vm1482, %v1475, %v1438
        %vm1484 = vcmp.lt.s32.totalorder %v1477, %v1439
        %v1485 = vsel %vm1484, %v1477, %v1439
        %vm1486 = vcmp.lt.s32.totalorder %v1479, %v1440
        %v1487 = vsel %vm1486, %v1479, %v1440
        %vm1488 = vcmp.lt.s32.totalorder %v1481, %v1441
        %v1489 = vsel %vm1488, %v1481, %v1441
        %vm1490 = vcmp.lt.s32.totalorder %v1483, %v1442
        %v1491 = vsel %vm1490, %v1483, %v1442
        %vm1492 = vcmp.lt.s32.totalorder %v1485, %v1443
        %v1493 = vsel %vm1492, %v1485, %v1443
        %vm1494 = vcmp.lt.s32.totalorder %v1487, %v1444
        %v1495 = vsel %vm1494, %v1487, %v1444
        %vm1496 = vcmp.lt.s32.totalorder %v1489, %v1445
        %v1497 = vsel %vm1496, %v1489, %v1445
        %vm1498 = vcmp.lt.s32.totalorder %v1491, %v1446
        %v1499 = vsel %vm1498, %v1491, %v1446
        %vm1500 = vcmp.lt.s32.totalorder %v1493, %v1447
        %v1501 = vsel %vm1500, %v1493, %v1447
        %vm1502 = vcmp.lt.s32.totalorder %v1495, %v1448
        %v1503 = vsel %vm1502, %v1495, %v1448
        %vm1504 = vcmp.lt.s32.totalorder %v1497, %v1449
        %v1505 = vsel %vm1504, %v1497, %v1449
        %vm1506 = vcmp.lt.s32.totalorder %v1499, %v1501
        %v1507 = vsel %vm1506, %v1499, %v1501
        %vm1508 = vcmp.lt.s32.totalorder %v1503, %v1505
        %v1509 = vsel %vm1508, %v1503, %v1505
        %vm1510 = vcmp.lt.s32.totalorder %v1507, %v1509
        %v1511 = vsel %vm1510, %v1507, %v1509
        %v1512 = vrot.slane %v1511, 4
        %vm1513 = vcmp.lt.s32.totalorder %v1511, %v1512
        %v1514 = vsel %vm1513, %v1511, %v1512
        %v1515 = vrot.slane %v1514, 2
        %vm1516 = vcmp.lt.s32.totalorder %v1514, %v1515
        %v1517 = vsel %vm1516, %v1514, %v1515
        %v1518 = vrot.slane %v1517, 1
        %vm1519 = vcmp.lt.s32.totalorder %v1517, %v1518
        %v1520 = vsel %vm1519, %v1517, %v1518
        %vm1521 = vcmp.eq.s32.totalorder %v399, %v1520
        %vm1522 = vcmp.eq.s32.totalorder %v400, %v1520
        %vm1523 = vcmp.eq.s32.totalorder %v401, %v1520
        %vm1524 = vcmp.eq.s32.totalorder %v402, %v1520
        %vm1525 = vcmp.eq.s32.totalorder %v403, %v1520
        %vm1526 = vcmp.eq.s32.totalorder %v404, %v1520
        %vm1527 = vcmp.eq.s32.totalorder %v405, %v1520
        %vm1528 = vcmp.eq.s32.totalorder %v406, %v1520
        %vm1529 = vcmp.eq.s32.totalorder %v407, %v1520
        %vm1530 = vcmp.eq.s32.totalorder %v408, %v1520
        %vm1531 = vcmp.eq.s32.totalorder %v409, %v1520
        %vm1532 = vcmp.eq.s32.totalorder %v410, %v1520
        %vm1533 = vcmp.eq.s32.totalorder %v411, %v1520
        %vm1534 = vcmp.eq.s32.totalorder %v412, %v1520
        %vm1535 = vcmp.eq.s32.totalorder %v413, %v1520
        %vm1536 = vcmp.eq.s32.totalorder %v414, %v1520
        %vm1537 = vcmp.eq.s32.totalorder %v415, %v1520
        %vm1538 = vcmp.eq.s32.totalorder %v416, %v1520
        %vm1539 = vcmp.eq.s32.totalorder %v417, %v1520
        %vm1540 = vcmp.eq.s32.totalorder %v418, %v1520
        %vm1541 = vcmp.eq.s32.totalorder %v419, %v1520
        %vm1542 = vcmp.eq.s32.totalorder %v420, %v1520
        %vm1543 = vcmp.eq.s32.totalorder %v421, %v1520
        %vm1544 = vcmp.eq.s32.totalorder %v422, %v1520
        %vm1545 = vcmp.eq.s32.totalorder %v423, %v1520
        %vm1546 = vcmp.eq.s32.totalorder %v424, %v1520
        %vm1547 = vcmp.eq.s32.totalorder %v425, %v1520
        %vm1548 = vcmp.eq.s32.totalorder %v426, %v1520
        %vm1549 = vcmp.eq.s32.totalorder %v427, %v1520
        %vm1550 = vcmp.eq.s32.totalorder %v428, %v1520
        %vm1551 = vcmp.eq.s32.totalorder %v429, %v1520
        %vm1552 = vcmp.eq.s32.totalorder %v430, %v1520
        %v1553 = vsel %vm1521, %v171, inf
        %v1554 = vsel %vm1522, %v176, inf
        %v1555 = vsel %vm1523, %v181, inf
        %v1556 = vsel %vm1524, %v186, inf
        %v1557 = vsel %vm1525, %v191, inf
        %v1558 = vsel %vm1526, %v196, inf
        %v1559 = vsel %vm1527, %v201, inf
        %v1560 = vsel %vm1528, %v206, inf
        %v1561 = vsel %vm1529, %v211, inf
        %v1562 = vsel %vm1530, %v216, inf
        %v1563 = vsel %vm1531, %v221, inf
        %v1564 = vsel %vm1532, %v226, inf
        %v1565 = vsel %vm1533, %v231, inf
        %v1566 = vsel %vm1534, %v236, inf
        %v1567 = vsel %vm1535, %v241, inf
        %v1568 = vsel %vm1536, %v246, inf
        %v1569 = vsel %vm1537, %v251, inf
        %v1570 = vsel %vm1538, %v256, inf
        %v1571 = vsel %vm1539, %v261, inf
        %v1572 = vsel %vm1540, %v266, inf
        %v1573 = vsel %vm1541, %v271, inf
        %v1574 = vsel %vm1542, %v276, inf
        %v1575 = vsel %vm1543, %v281, inf
        %v1576 = vsel %vm1544, %v286, inf
        %v1577 = vsel %vm1545, %v291, inf
        %v1578 = vsel %vm1546, %v296, inf
        %v1579 = vsel %vm1547, %v301, inf
        %v1580 = vsel %vm1548, %v306, inf
        %v1581 = vsel %vm1549, %v311, inf
        %v1582 = vsel %vm1550, %v316, inf
        %v1583 = vsel %vm1551, %v321, inf
        %v1584 = vsel %vm1552, %v326, inf
        %v1585 = vmin.f32 %v1553, %v1557
        %v1586 = vmin.f32 %v1554, %v1558
        %v1587 = vmin.f32 %v1555, %v1559
        %v1588 = vmin.f32 %v1556, %v1560
        %v1589 = vmin.f32 %v1585, %v1561
        %v1590 = vmin.f32 %v1586, %v1562
        %v1591 = vmin.f32 %v1587, %v1563
        %v1592 = vmin.f32 %v1588, %v1564
        %v1593 = vmin.f32 %v1589, %v1565
        %v1594 = vmin.f32 %v1590, %v1566
        %v1595 = vmin.f32 %v1591, %v1567
        %v1596 = vmin.f32 %v1592, %v1568
        %v1597 = vmin.f32 %v1593, %v1569
        %v1598 = vmin.f32 %v1594, %v1570
        %v1599 = vmin.f32 %v1595, %v1571
        %v1600 = vmin.f32 %v1596, %v1572
        %v1601 = vmin.f32 %v1597, %v1573
        %v1602 = vmin.f32 %v1598, %v1574
        %v1603 = vmin.f32 %v1599, %v1575
        %v1604 = vmin.f32 %v1600, %v1576
        %v1605 = vmin.f32 %v1601, %v1577
        %v1606 = vmin.f32 %v1602, %v1578
        %v1607 = vmin.f32 %v1603, %v1579
        %v1608 = vmin.f32 %v1604, %v1580
        %v1609 = vmin.f32 %v1605, %v1581
        %v1610 = vmin.f32 %v1606, %v1582
        %v1611 = vmin.f32 %v1607, %v1583
        %v1612 = vmin.f32 %v1608, %v1584
        %v1613 = vmin.f32 %v1609, %v1610
        %v1614 = vmin.f32 %v1611, %v1612
        %v1615 = vmin.f32 %v1613, %v1614
        %v1616 = vrot.slane %v1615, 4
        %v1617 = vmin.f32 %v1615, %v1616
        %v1618 = vrot.slane %v1617, 2
        %v1619 = vmin.f32 %v1617, %v1618
        %v1620 = vrot.slane %v1619, 1
        %v1621 = vmin.f32 %v1619, %v1620
        %v1622 = vadd.f32 %v1316, %v1621
        %v1623 = vsel %vm1521, inf, %v1317
        %v1624 = vsel %vm1522, inf, %v1318
        %v1625 = vsel %vm1523, inf, %v1319
        %v1626 = vsel %vm1524, inf, %v1320
        %v1627 = vsel %vm1525, inf, %v1321
        %v1628 = vsel %vm1526, inf, %v1322
        %v1629 = vsel %vm1527, inf, %v1323
        %v1630 = vsel %vm1528, inf, %v1324
        %v1631 = vsel %vm1529, inf, %v1325
        %v1632 = vsel %vm1530, inf, %v1326
        %v1633 = vsel %vm1531, inf, %v1327
        %v1634 = vsel %vm1532, inf, %v1328
        %v1635 = vsel %vm1533, inf, %v1329
        %v1636 = vsel %vm1534, inf, %v1330
        %v1637 = vsel %vm1535, inf, %v1331
        %v1638 = vsel %vm1536, inf, %v1332
        %v1639 = vsel %vm1537, inf, %v1333
        %v1640 = vsel %vm1538, inf, %v1334
        %v1641 = vsel %vm1539, inf, %v1335
        %v1642 = vsel %vm1540, inf, %v1336
        %v1643 = vsel %vm1541, inf, %v1337
        %v1644 = vsel %vm1542, inf, %v1338
        %v1645 = vsel %vm1543, inf, %v1339
        %v1646 = vsel %vm1544, inf, %v1340
        %v1647 = vsel %vm1545, inf, %v1341
        %v1648 = vsel %vm1546, inf, %v1342
        %v1649 = vsel %vm1547, inf, %v1343
        %v1650 = vsel %vm1548, inf, %v1344
        %v1651 = vsel %vm1549, inf, %v1345
        %v1652 = vsel %vm1550, inf, %v1346
        %v1653 = vsel %vm1551, inf, %v1347
        %v1654 = vsel %vm1552, inf, %v1348
        %v1655 = vmin.f32 %v1623, %v1627
        %v1656 = vmin.f32 %v1624, %v1628
        %v1657 = vmin.f32 %v1625, %v1629
        %v1658 = vmin.f32 %v1626, %v1630
        %v1659 = vmin.f32 %v1655, %v1631
        %v1660 = vmin.f32 %v1656, %v1632
        %v1661 = vmin.f32 %v1657, %v1633
        %v1662 = vmin.f32 %v1658, %v1634
        %v1663 = vmin.f32 %v1659, %v1635
        %v1664 = vmin.f32 %v1660, %v1636
        %v1665 = vmin.f32 %v1661, %v1637
        %v1666 = vmin.f32 %v1662, %v1638
        %v1667 = vmin.f32 %v1663, %v1639
        %v1668 = vmin.f32 %v1664, %v1640
        %v1669 = vmin.f32 %v1665, %v1641
        %v1670 = vmin.f32 %v1666, %v1642
        %v1671 = vmin.f32 %v1667, %v1643
        %v1672 = vmin.f32 %v1668, %v1644
        %v1673 = vmin.f32 %v1669, %v1645
        %v1674 = vmin.f32 %v1670, %v1646
        %v1675 = vmin.f32 %v1671, %v1647
        %v1676 = vmin.f32 %v1672, %v1648
        %v1677 = vmin.f32 %v1673, %v1649
        %v1678 = vmin.f32 %v1674, %v1650
        %v1679 = vmin.f32 %v1675, %v1651
        %v1680 = vmin.f32 %v1676, %v1652
        %v1681 = vmin.f32 %v1677, %v1653
        %v1682 = vmin.f32 %v1678, %v1654
        %v1683 = vmin.f32 %v1679, %v1680
        %v1684 = vmin.f32 %v1681, %v1682
        %v1685 = vmin.f32 %v1683, %v1684
        %v1686 = vrot.slane %v1685, 4
        %v1687 = vmin.f32 %v1685, %v1686
        %v1688 = vrot.slane %v1687, 2
        %v1689 = vmin.f32 %v1687, %v1688
        %v1690 = vrot.slane %v1689, 1
        %v1691 = vmin.f32 %v1689, %v1690
        %vm1692 = vcmp.eq.f32.partialorder %v1623, %v1691
        %vm1693 = vcmp.eq.f32.partialorder %v1624, %v1691
        %vm1694 = vcmp.eq.f32.partialorder %v1625, %v1691
        %vm1695 = vcmp.eq.f32.partialorder %v1626, %v1691
        %vm1696 = vcmp.eq.f32.partialorder %v1627, %v1691
        %vm1697 = vcmp.eq.f32.partialorder %v1628, %v1691
        %vm1698 = vcmp.eq.f32.partialorder %v1629, %v1691
        %vm1699 = vcmp.eq.f32.partialorder %v1630, %v1691
        %vm1700 = vcmp.eq.f32.partialorder %v1631, %v1691
        %vm1701 = vcmp.eq.f32.partialorder %v1632, %v1691
        %vm1702 = vcmp.eq.f32.partialorder %v1633, %v1691
        %vm1703 = vcmp.eq.f32.partialorder %v1634, %v1691
        %vm1704 = vcmp.eq.f32.partialorder %v1635, %v1691
        %vm1705 = vcmp.eq.f32.partialorder %v1636, %v1691
        %vm1706 = vcmp.eq.f32.partialorder %v1637, %v1691
        %vm1707 = vcmp.eq.f32.partialorder %v1638, %v1691
        %vm1708 = vcmp.eq.f32.partialorder %v1639, %v1691
        %vm1709 = vcmp.eq.f32.partialorder %v1640, %v1691
        %vm1710 = vcmp.eq.f32.partialorder %v1641, %v1691
        %vm1711 = vcmp.eq.f32.partialorder %v1642, %v1691
        %vm1712 = vcmp.eq.f32.partialorder %v1643, %v1691
        %vm1713 = vcmp.eq.f32.partialorder %v1644, %v1691
        %vm1714 = vcmp.eq.f32.partialorder %v1645, %v1691
        %vm1715 = vcmp.eq.f32.partialorder %v1646, %v1691
        %vm1716 = vcmp.eq.f32.partialorder %v1647, %v1691
        %vm1717 = vcmp.eq.f32.partialorder %v1648, %v1691
        %vm1718 = vcmp.eq.f32.partialorder %v1649, %v1691
        %vm1719 = vcmp.eq.f32.partialorder %v1650, %v1691
        %vm1720 = vcmp.eq.f32.partialorder %v1651, %v1691
        %vm1721 = vcmp.eq.f32.partialorder %v1652, %v1691
        %vm1722 = vcmp.eq.f32.partialorder %v1653, %v1691
        %vm1723 = vcmp.eq.f32.partialorder %v1654, %v1691
        %v1724 = vsel %vm1692, %v399, 256
        %v1725 = vsel %vm1693, %v400, 256
        %v1726 = vsel %vm1694, %v401, 256
        %v1727 = vsel %vm1695, %v402, 256
        %v1728 = vsel %vm1696, %v403, 256
        %v1729 = vsel %vm1697, %v404, 256
        %v1730 = vsel %vm1698, %v405, 256
        %v1731 = vsel %vm1699, %v406, 256
        %v1732 = vsel %vm1700, %v407, 256
        %v1733 = vsel %vm1701, %v408, 256
        %v1734 = vsel %vm1702, %v409, 256
        %v1735 = vsel %vm1703, %v410, 256
        %v1736 = vsel %vm1704, %v411, 256
        %v1737 = vsel %vm1705, %v412, 256
        %v1738 = vsel %vm1706, %v413, 256
        %v1739 = vsel %vm1707, %v414, 256
        %v1740 = vsel %vm1708, %v415, 256
        %v1741 = vsel %vm1709, %v416, 256
        %v1742 = vsel %vm1710, %v417, 256
        %v1743 = vsel %vm1711, %v418, 256
        %v1744 = vsel %vm1712, %v419, 256
        %v1745 = vsel %vm1713, %v420, 256
        %v1746 = vsel %vm1714, %v421, 256
        %v1747 = vsel %vm1715, %v422, 256
        %v1748 = vsel %vm1716, %v423, 256
        %v1749 = vsel %vm1717, %v424, 256
        %v1750 = vsel %vm1718, %v425, 256
        %v1751 = vsel %vm1719, %v426, 256
        %v1752 = vsel %vm1720, %v427, 256
        %v1753 = vsel %vm1721, %v428, 256
        %v1754 = vsel %vm1722, %v429, 256
        %v1755 = vsel %vm1723, %v430, 256
        %vm1756 = vcmp.lt.s32.totalorder %v1724, %v1728
        %v1757 = vsel %vm1756, %v1724, %v1728
        %vm1758 = vcmp.lt.s32.totalorder %v1725, %v1729
        %v1759 = vsel %vm1758, %v1725, %v1729
        %vm1760 = vcmp.lt.s32.totalorder %v1726, %v1730
        %v1761 = vsel %vm1760, %v1726, %v1730
        %vm1762 = vcmp.lt.s32.totalorder %v1727, %v1731
        %v1763 = vsel %vm1762, %v1727, %v1731
        %vm1764 = vcmp.lt.s32.totalorder %v1757, %v1732
        %v1765 = vsel %vm1764, %v1757, %v1732
        %vm1766 = vcmp.lt.s32.totalorder %v1759, %v1733
        %v1767 = vsel %vm1766, %v1759, %v1733
        %vm1768 = vcmp.lt.s32.totalorder %v1761, %v1734
        %v1769 = vsel %vm1768, %v1761, %v1734
        %vm1770 = vcmp.lt.s32.totalorder %v1763, %v1735
        %v1771 = vsel %vm1770, %v1763, %v1735
        %vm1772 = vcmp.lt.s32.totalorder %v1765, %v1736
        %v1773 = vsel %vm1772, %v1765, %v1736
        %vm1774 = vcmp.lt.s32.totalorder %v1767, %v1737
        %v1775 = vsel %vm1774, %v1767, %v1737
        %vm1776 = vcmp.lt.s32.totalorder %v1769, %v1738
        %v1777 = vsel %vm1776, %v1769, %v1738
        %vm1778 = vcmp.lt.s32.totalorder %v1771, %v1739
        %v1779 = vsel %vm1778, %v1771, %v1739
        %vm1780 = vcmp.lt.s32.totalorder %v1773, %v1740
        %v1781 = vsel %vm1780, %v1773, %v1740
        %vm1782 = vcmp.lt.s32.totalorder %v1775, %v1741
        %v1783 = vsel %vm1782, %v1775, %v1741
        %vm1784 = vcmp.lt.s32.totalorder %v1777, %v1742
        %v1785 = vsel %vm1784, %v1777, %v1742
        %vm1786 = vcmp.lt.s32.totalorder %v1779, %v1743
        %v1787 = vsel %vm1786, %v1779, %v1743
        %vm1788 = vcmp.lt.s32.totalorder %v1781, %v1744
        %v1789 = vsel %vm1788, %v1781, %v1744
        %vm1790 = vcmp.lt.s32.totalorder %v1783, %v1745
        %v1791 = vsel %vm1790, %v1783, %v1745
        %vm1792 = vcmp.lt.s32.totalorder %v1785, %v1746
        %v1793 = vsel %vm1792, %v1785, %v1746
        %vm1794 = vcmp.lt.s32.totalorder %v1787, %v1747
        %v1795 = vsel %vm1794, %v1787, %v1747
        %vm1796 = vcmp.lt.s32.totalorder %v1789, %v1748
        %v1797 = vsel %vm1796, %v1789, %v1748
        %vm1798 = vcmp.lt.s32.totalorder %v1791, %v1749
        %v1799 = vsel %vm1798, %v1791, %v1749
        %vm1800 = vcmp.lt.s32.totalorder %v1793, %v1750
        %v1801 = vsel %vm1800, %v1793, %v1750
        %vm1802 = vcmp.lt.s32.totalorder %v1795, %v1751
        %v1803 = vsel %vm1802, %v1795, %v1751
        %vm1804 = vcmp.lt.s32.totalorder %v1797, %v1752
        %v1805 = vsel %vm1804, %v1797, %v1752
        %vm1806 = vcmp.lt.s32.totalorder %v1799, %v1753
        %v1807 = vsel %vm1806, %v1799, %v1753
        %vm1808 = vcmp.lt.s32.totalorder %v1801, %v1754
        %v1809 = vsel %vm1808, %v1801, %v1754
        %vm1810 = vcmp.lt.s32.totalorder %v1803, %v1755
        %v1811 = vsel %vm1810, %v1803, %v1755
        %vm1812 = vcmp.lt.s32.totalorder %v1805, %v1807
        %v1813 = vsel %vm1812, %v1805, %v1807
        %vm1814 = vcmp.lt.s32.totalorder %v1809, %v1811
        %v1815 = vsel %vm1814, %v1809, %v1811
        %vm1816 = vcmp.lt.s32.totalorder %v1813, %v1815
        %v1817 = vsel %vm1816, %v1813, %v1815
        %v1818 = vrot.slane %v1817, 4
        %vm1819 = vcmp.lt.s32.totalorder %v1817, %v1818
        %v1820 = vsel %vm1819, %v1817, %v1818
        %v1821 = vrot.slane %v1820, 2
        %vm1822 = vcmp.lt.s32.totalorder %v1820, %v1821
        %v1823 = vsel %vm1822, %v1820, %v1821
        %v1824 = vrot.slane %v1823, 1
        %vm1825 = vcmp.lt.s32.totalorder %v1823, %v1824
        %v1826 = vsel %vm1825, %v1823, %v1824
        %vm1827 = vcmp.eq.s32.totalorder %v399, %v1826
        %vm1828 = vcmp.eq.s32.totalorder %v400, %v1826
        %vm1829 = vcmp.eq.s32.totalorder %v401, %v1826
        %vm1830 = vcmp.eq.s32.totalorder %v402, %v1826
        %vm1831 = vcmp.eq.s32.totalorder %v403, %v1826
        %vm1832 = vcmp.eq.s32.totalorder %v404, %v1826
        %vm1833 = vcmp.eq.s32.totalorder %v405, %v1826
        %vm1834 = vcmp.eq.s32.totalorder %v406, %v1826
        %vm1835 = vcmp.eq.s32.totalorder %v407, %v1826
        %vm1836 = vcmp.eq.s32.totalorder %v408, %v1826
        %vm1837 = vcmp.eq.s32.totalorder %v409, %v1826
        %vm1838 = vcmp.eq.s32.totalorder %v410, %v1826
        %vm1839 = vcmp.eq.s32.totalorder %v411, %v1826
        %vm1840 = vcmp.eq.s32.totalorder %v412, %v1826
        %vm1841 = vcmp.eq.s32.totalorder %v413, %v1826
        %vm1842 = vcmp.eq.s32.totalorder %v414, %v1826
        %vm1843 = vcmp.eq.s32.totalorder %v415, %v1826
        %vm1844 = vcmp.eq.s32.totalorder %v416, %v1826
        %vm1845 = vcmp.eq.s32.totalorder %v417, %v1826
        %vm1846 = vcmp.eq.s32.totalorder %v418, %v1826
        %vm1847 = vcmp.eq.s32.totalorder %v419, %v1826
        %vm1848 = vcmp.eq.s32.totalorder %v420, %v1826
        %vm1849 = vcmp.eq.s32.totalorder %v421, %v1826
        %vm1850 = vcmp.eq.s32.totalorder %v422, %v1826
        %vm1851 = vcmp.eq.s32.totalorder %v423, %v1826
        %vm1852 = vcmp.eq.s32.totalorder %v424, %v1826
        %vm1853 = vcmp.eq.s32.totalorder %v425, %v1826
        %vm1854 = vcmp.eq.s32.totalorder %v426, %v1826
        %vm1855 = vcmp.eq.s32.totalorder %v427, %v1826
        %vm1856 = vcmp.eq.s32.totalorder %v428, %v1826
        %vm1857 = vcmp.eq.s32.totalorder %v429, %v1826
        %vm1858 = vcmp.eq.s32.totalorder %v430, %v1826
        %v1859 = vsel %vm1827, %v171, inf
        %v1860 = vsel %vm1828, %v176, inf
        %v1861 = vsel %vm1829, %v181, inf
        %v1862 = vsel %vm1830, %v186, inf
        %v1863 = vsel %vm1831, %v191, inf
        %v1864 = vsel %vm1832, %v196, inf
        %v1865 = vsel %vm1833, %v201, inf
        %v1866 = vsel %vm1834, %v206, inf
        %v1867 = vsel %vm1835, %v211, inf
        %v1868 = vsel %vm1836, %v216, inf
        %v1869 = vsel %vm1837, %v221, inf
        %v1870 = vsel %vm1838, %v226, inf
        %v1871 = vsel %vm1839, %v231, inf
        %v1872 = vsel %vm1840, %v236, inf
        %v1873 = vsel %vm1841, %v241, inf
        %v1874 = vsel %vm1842, %v246, inf
        %v1875 = vsel %vm1843, %v251, inf
        %v1876 = vsel %vm1844, %v256, inf
        %v1877 = vsel %vm1845, %v261, inf
        %v1878 = vsel %vm1846, %v266, inf
        %v1879 = vsel %vm1847, %v271, inf
        %v1880 = vsel %vm1848, %v276, inf
        %v1881 = vsel %vm1849, %v281, inf
        %v1882 = vsel %vm1850, %v286, inf
        %v1883 = vsel %vm1851, %v291, inf
        %v1884 = vsel %vm1852, %v296, inf
        %v1885 = vsel %vm1853, %v301, inf
        %v1886 = vsel %vm1854, %v306, inf
        %v1887 = vsel %vm1855, %v311, inf
        %v1888 = vsel %vm1856, %v316, inf
        %v1889 = vsel %vm1857, %v321, inf
        %v1890 = vsel %vm1858, %v326, inf
        %v1891 = vmin.f32 %v1859, %v1863
        %v1892 = vmin.f32 %v1860, %v1864
        %v1893 = vmin.f32 %v1861, %v1865
        %v1894 = vmin.f32 %v1862, %v1866
        %v1895 = vmin.f32 %v1891, %v1867
        %v1896 = vmin.f32 %v1892, %v1868
        %v1897 = vmin.f32 %v1893, %v1869
        %v1898 = vmin.f32 %v1894, %v1870
        %v1899 = vmin.f32 %v1895, %v1871
        %v1900 = vmin.f32 %v1896, %v1872
        %v1901 = vmin.f32 %v1897, %v1873
        %v1902 = vmin.f32 %v1898, %v1874
        %v1903 = vmin.f32 %v1899, %v1875
        %v1904 = vmin.f32 %v1900, %v1876
        %v1905 = vmin.f32 %v1901, %v1877
        %v1906 = vmin.f32 %v1902, %v1878
        %v1907 = vmin.f32 %v1903, %v1879
        %v1908 = vmin.f32 %v1904, %v1880
        %v1909 = vmin.f32 %v1905, %v1881
        %v1910 = vmin.f32 %v1906, %v1882
        %v1911 = vmin.f32 %v1907, %v1883
        %v1912 = vmin.f32 %v1908, %v1884
        %v1913 = vmin.f32 %v1909, %v1885
        %v1914 = vmin.f32 %v1910, %v1886
        %v1915 = vmin.f32 %v1911, %v1887
        %v1916 = vmin.f32 %v1912, %v1888
        %v1917 = vmin.f32 %v1913, %v1889
        %v1918 = vmin.f32 %v1914, %v1890
        %v1919 = vmin.f32 %v1915, %v1916
        %v1920 = vmin.f32 %v1917, %v1918
        %v1921 = vmin.f32 %v1919, %v1920
        %v1922 = vrot.slane %v1921, 4
        %v1923 = vmin.f32 %v1921, %v1922
        %v1924 = vrot.slane %v1923, 2
        %v1925 = vmin.f32 %v1923, %v1924
        %v1926 = vrot.slane %v1925, 1
        %v1927 = vmin.f32 %v1925, %v1926
        %v1928 = vadd.f32 %v1622, %v1927
        %v1929 = vmul.f32 %v1928, 0.2
        %1930 = vst [vmem:[%s131] sm:$0x1] %v1929
        %s1931 = sand.u32 %s71, 1
        %s1932 = scalar_lea.sflag [#allocation3], %s1931
        %s1933 = sand.u32 %s71, 1
        %s1934 = scalar_lea.vmem [#allocation2], %s1933
        // Predicated region
        $region29: #{tpu_custom_call.1} parent=27 // pred_check
          %p1935 = pneg %p81
        $region30: #{tpu_custom_call.1} parent=27 // pred_check_branch
          %1937 = sbr.rel (%p1935) target = $region32
        $region31: #{tpu_custom_call.1} parent=27 // pred_region
          %s1939 = ssub.s32 16, 16
          %1940 = vsyncadd %s1932, %s1939
          %s1941 = smul.addr %s16, 16
          %s1942 = scalar_lea.hbm %s2, %s1941
          %s1944 = sshll.u32 %s1934, 4
          %s1945 = int_to_ptr.vmem [resolvable:$true] %s1944
          %1947 = dma.vmem_to_hbm [thread:$0]  %s1945, 16, %s1942, %s1932
        $region32: #{tpu_custom_call.1} parent=27 // pred_fallthru
          _
      $region28: #{tpu_custom_call.1} parent=5 // pred_fallthru
        _
      %p1948 = scmp.le.s32.totalorder 2, %s11
      // Predicated region
      $region33: #{tpu_custom_call.1} parent=5 // pred_check
        %p1949 = pneg %p1948
      $region34: #{tpu_custom_call.1} parent=5 // pred_check_branch
        %1951 = sbr.rel (%p1949) target = $region36
      $region35: #{tpu_custom_call.1} parent=5 // pred_region
        %s1952 = ssub.s32 %s11, 2
        // Predicated region
        $region37: #{tpu_custom_call.1} parent=35 // pred_check
          %p1953 = pneg %p87
        $region38: #{tpu_custom_call.1} parent=35 // pred_check_branch
          %1955 = sbr.rel (%p1953) target = $region40
        $region39: #{tpu_custom_call.1} parent=35 // pred_region
          %s1956 = sand.u32 %s72, 1
          %s1957 = scalar_lea.sflag [#allocation3], %s1956
          %s1958 = sand.u32 %s72, 1
          %s1959 = scalar_lea.vmem [#allocation2], %s1958
          %1960 = dma.done %s1957, 16
        $region40: #{tpu_custom_call.1} parent=35 // pred_fallthru
          _
      $region36: #{tpu_custom_call.1} parent=5 // pred_fallthru
        _
    $region6: #{tpu_custom_call.1} parent=1 // loop_footer
      %s15 = sadd.s32 1, %s11
    $region7: #{tpu_custom_call.1} parent=1 // loop_footer_branch
      %10 = sbr.rel target = $region3
    $region8: #{tpu_custom_call.1} parent=1 // loop_exit
      _
    %1961 = vsyncpa [#allocation3], 1
    %s1962 = scalar_lea.sflag [#allocation3], 1
    %1963 = vsyncpa %s1962, 1

// kernel: body.3
$region0: #{body.3}
  #allocation0 [shape = 'u32[]', space=smem, size = 0x4, offset = 0x4, fixed_abs, tag = 'smem constant byte address 0x4 - core index']
  #allocation1 [shape = 'u32[144,128]{1,0:T(1,128)}', space=vmem, size = 0x12000, scoped, tag = 'internal scratch']
  %s0 = inlined_call_operand.vmem [shape: f32[256,1], index: 0, kind: input, shape index: {}]
  %s1 = inlined_call_operand.vmem [shape: f32[1,256], index: 1, kind: input, shape index: {}]
  %s2 = inlined_call_operand.vmem [shape: f32[1,256], index: 2, kind: output, shape index: {}]
  %s3 = sld [smem:[#allocation0]]
  $region41: #{body.3} parent=0
    _
  %s5 = ssub.s32 1, %s3
  %s6 = scalar_select 0, %s5, %s3
  loop: start=0, step=1, limit=4
  $region2: #{body.3} parent=0 // loop_pre_header
    _
  $region3: #{body.3} parent=0 // loop_header
    %s8 = sphi 0, %s12
    %p9 = scmp.ge.s32.totalorder %s8, 4
    %s16 = sphi 0, %s16
    %s18 = sphi 0, %s16
    %s19 = sphi 0, %s18
    %s33 = sphi 0, %s19
    %s39 = sphi 0, %s41
    %s42 = sphi 0, %s39
    %s43 = sphi 0, %s42
    %s59 = sphi 0, %s43
    %s65 = sphi 0, %s67
    %s68 = sphi 0, %s65
    %s69 = sphi 0, %s68
    %s85 = sphi 0, %s69
  $region4: #{body.3} parent=0 // loop_header_branch
    %11 = sbr.rel (%p9) target = $region8
  $region5: #{body.3} parent=0 // loop_body
    %s13 = ssub.s32 %s8, 1
    %s14 = ssub.s32 %s8, 2
    %s15 = sadd.s32 %s8, 1
    %s17 = sadd.s32 %s16, 1
    %p20 = scmp.eq.s32.totalorder %s8, 1
    %p21 = scmp.ne.s32.totalorder %s16, %s18
    %p22 = scmp.eq.s32.totalorder %s8, 0
    %p23 = por %p21, %p22
    %p24 = scmp.ne.s32.totalorder %s16, %s18
    %p25 = scmp.eq.s32.totalorder %s13, 1
    %p26 = por %p24, %p25
    %p27 = scmp.ne.s32.totalorder %s18, %s19
    %p28 = scmp.eq.s32.totalorder %s13, 0
    %p29 = por %p27, %p28
    %p30 = scmp.ne.s32.totalorder %s18, %s19
    %p31 = scmp.eq.s32.totalorder %s14, 1
    %p32 = por %p30, %p31
    %p34 = scmp.ne.s32.totalorder %s19, %s33
    %p35 = scmp.eq.s32.totalorder %s14, 0
    %p36 = por %p34, %p35
    %s37 = ssub.s32 %s8, %s15
    %p38 = scmp.eq.s32.totalorder %s37, 0
    %s40 = sadd.s32 %s39, 1
    %s41 = scalar_select %p38, %s39, %s40
    %p44 = pneg %p38
    %p45 = scmp.eq.s32.totalorder %s8, 1
    %p46 = por %p44, %p45
    %p47 = scmp.ne.s32.totalorder %s39, %s42
    %p48 = scmp.eq.s32.totalorder %s8, 0
    %p49 = por %p47, %p48
    %p50 = scmp.ne.s32.totalorder %s39, %s42
    %p51 = scmp.eq.s32.totalorder %s13, 1
    %p52 = por %p50, %p51
    %p53 = scmp.ne.s32.totalorder %s42, %s43
    %p54 = scmp.eq.s32.totalorder %s13, 0
    %p55 = por %p53, %p54
    %p56 = scmp.ne.s32.totalorder %s42, %s43
    %p57 = scmp.eq.s32.totalorder %s14, 1
    %p58 = por %p56, %p57
    %p60 = scmp.ne.s32.totalorder %s43, %s59
    %p61 = scmp.eq.s32.totalorder %s14, 0
    %p62 = por %p60, %p61
    %s63 = ssub.s32 %s8, %s15
    %p64 = scmp.eq.s32.totalorder %s63, 0
    %s66 = sadd.s32 %s65, 1
    %s67 = scalar_select %p64, %s65, %s66
    %p70 = pneg %p64
    %p71 = scmp.eq.s32.totalorder %s8, 1
    %p72 = por %p70, %p71
    %p73 = scmp.ne.s32.totalorder %s65, %s68
    %p74 = scmp.eq.s32.totalorder %s8, 0
    %p75 = por %p73, %p74
    %p76 = scmp.ne.s32.totalorder %s65, %s68
    %p77 = scmp.eq.s32.totalorder %s13, 1
    %p78 = por %p76, %p77
    %p79 = scmp.ne.s32.totalorder %s68, %s69
    %p80 = scmp.eq.s32.totalorder %s13, 0
    %p81 = por %p79, %p80
    %p82 = scmp.ne.s32.totalorder %s68, %s69
    %p83 = scmp.eq.s32.totalorder %s14, 1
    %p84 = por %p82, %p83
    %p86 = scmp.ne.s32.totalorder %s69, %s85
    %p87 = scmp.eq.s32.totalorder %s14, 0
    %p88 = por %p86, %p87
    %p89 = scmp.le.s32.totalorder 1, %s8
    %p90 = scmp.lt.s32.totalorder %s8, 3
    %p91 = pnand %p89, %p90
    %p92 = pneg %p91
    // Predicated region
    $region9: #{body.3} parent=5 // pred_check
      _
    $region10: #{body.3} parent=5 // pred_check_branch
      %94 = sbr.rel (%p91) target = $region12
    $region11: #{body.3} parent=5 // pred_region
      %s95 = ssub.s32 %s8, 1
      // Predicated region
      $region13: #{body.3} parent=11 // pred_check
        %p96 = pneg %p29
      $region14: #{body.3} parent=11 // pred_check_branch
        %98 = sbr.rel (%p96) target = $region16
      $region15: #{body.3} parent=11 // pred_region
        _
      $region16: #{body.3} parent=11 // pred_fallthru
        _
    $region12: #{body.3} parent=5 // pred_fallthru
      _
    %p99 = scmp.lt.s32.totalorder %s8, 2
    // Predicated region
    $region17: #{body.3} parent=5 // pred_check
      %p100 = pneg %p99
    $region18: #{body.3} parent=5 // pred_check_branch
      %102 = sbr.rel (%p100) target = $region20
    $region19: #{body.3} parent=5 // pred_region
      // Predicated region
      $region21: #{body.3} parent=19 // pred_check
        %p103 = pneg %p49
      $region22: #{body.3} parent=19 // pred_check_branch
        %105 = sbr.rel (%p103) target = $region24
      $region23: #{body.3} parent=19 // pred_region
        %p106 = scmp.lt.s32.totalorder %s8, 1
        %s107 = scalar_select %p106, %s8, 1
        %s108 = scalar_lea.vmem %s1, %s107
      $region24: #{body.3} parent=19 // pred_fallthru
        _
    $region20: #{body.3} parent=5 // pred_fallthru
      _
    %p109 = scmp.le.s32.totalorder 1, %s8
    %p110 = scmp.lt.s32.totalorder %s8, 3
    %p111 = pnand %p109, %p110
    %p112 = pneg %p111
    // Predicated region
    $region25: #{body.3} parent=5 // pred_check
      _
    $region26: #{body.3} parent=5 // pred_check_branch
      %114 = sbr.rel (%p111) target = $region28
    $region27: #{body.3} parent=5 // pred_region
      %s115 = ssub.s32 %s8, 1
      %p116 = pneg %p29
      %p117 = pneg %p26
      %p118 = scmp.lt.s32.totalorder %s13, 1
      %s119 = scalar_select %p118, %s13, 1
      %s120 = scalar_lea.vmem %s1, %s119
      %p121 = pneg %p55
      %p122 = pneg %p52
      %p123 = pneg %p81
      %p124 = pneg %p78
      %p125 = scmp.lt.s32.totalorder %s13, 1
      %s126 = scalar_select %p125, %s13, 1
      %s127 = scalar_lea.vmem %s2, %s126
      %p128 = scmp.lt.s32.totalorder %s13, 1
      %s129 = scalar_select %p128, %s13, 1
      %s130 = scalar_lea.vmem %s1, %s129
      %p131 = scmp.lt.s32.totalorder %s13, 1
      %s132 = scalar_select %p131, %s13, 1
      %s133 = scalar_lea.vmem %s2, %s132
      %v134 = vld [vmem:[%s0] sm:$0xff]
      %v135 = vld [vmem:[%s0 + $0x8] sm:$0xff]
      %v136 = vld [vmem:[%s0 + $0x10] sm:$0xff]
      %v137 = vld [vmem:[%s0 + $0x18] sm:$0xff]
      %v138 = vld [vmem:[%s0 + $0x20] sm:$0xff]
      %v139 = vld [vmem:[%s0 + $0x28] sm:$0xff]
      %v140 = vld [vmem:[%s0 + $0x30] sm:$0xff]
      %v141 = vld [vmem:[%s0 + $0x38] sm:$0xff]
      %v142 = vld [vmem:[%s0 + $0x40] sm:$0xff]
      %v143 = vld [vmem:[%s0 + $0x48] sm:$0xff]
      %v144 = vld [vmem:[%s0 + $0x50] sm:$0xff]
      %v145 = vld [vmem:[%s0 + $0x58] sm:$0xff]
      %v146 = vld [vmem:[%s0 + $0x60] sm:$0xff]
      %v147 = vld [vmem:[%s0 + $0x68] sm:$0xff]
      %v148 = vld [vmem:[%s0 + $0x70] sm:$0xff]
      %v149 = vld [vmem:[%s0 + $0x78] sm:$0xff]
      %v150 = vld [vmem:[%s0 + $0x80] sm:$0xff]
      %v151 = vld [vmem:[%s0 + $0x88] sm:$0xff]
      %v152 = vld [vmem:[%s0 + $0x90] sm:$0xff]
      %v153 = vld [vmem:[%s0 + $0x98] sm:$0xff]
      %v154 = vld [vmem:[%s0 + $0xa0] sm:$0xff]
      %v155 = vld [vmem:[%s0 + $0xa8] sm:$0xff]
      %v156 = vld [vmem:[%s0 + $0xb0] sm:$0xff]
      %v157 = vld [vmem:[%s0 + $0xb8] sm:$0xff]
      %v158 = vld [vmem:[%s0 + $0xc0] sm:$0xff]
      %v159 = vld [vmem:[%s0 + $0xc8] sm:$0xff]
      %v160 = vld [vmem:[%s0 + $0xd0] sm:$0xff]
      %v161 = vld [vmem:[%s0 + $0xd8] sm:$0xff]
      %v162 = vld [vmem:[%s0 + $0xe0] sm:$0xff]
      %v163 = vld [vmem:[%s0 + $0xe8] sm:$0xff]
      %v164 = vld [vmem:[%s0 + $0xf0] sm:$0xff]
      %v165 = vld [vmem:[%s0 + $0xf8] sm:$0xff]
      %v166 = vld [vmem:[%s130] sm:$0x1]
      %168 = vset.pattern.permute.xlu0 0
      %169 = vperm.xlu0 %168, %v134
      %v170 = vpop.permute.xlu0 %169
      %173 = vset.pattern.permute.xlu0 0
      %174 = vperm.xlu0 %173, %v135
      %v175 = vpop.permute.xlu0 %174
      %178 = vset.pattern.permute.xlu0 0
      %179 = vperm.xlu0 %178, %v136
      %v180 = vpop.permute.xlu0 %179
      %183 = vset.pattern.permute.xlu0 0
      %184 = vperm.xlu0 %183, %v137
      %v185 = vpop.permute.xlu0 %184
      %188 = vset.pattern.permute.xlu0 0
      %189 = vperm.xlu0 %188, %v138
      %v190 = vpop.permute.xlu0 %189
      %193 = vset.pattern.permute.xlu0 0
      %194 = vperm.xlu0 %193, %v139
      %v195 = vpop.permute.xlu0 %194
      %198 = vset.pattern.permute.xlu0 0
      %199 = vperm.xlu0 %198, %v140
      %v200 = vpop.permute.xlu0 %199
      %203 = vset.pattern.permute.xlu0 0
      %204 = vperm.xlu0 %203, %v141
      %v205 = vpop.permute.xlu0 %204
      %208 = vset.pattern.permute.xlu0 0
      %209 = vperm.xlu0 %208, %v142
      %v210 = vpop.permute.xlu0 %209
      %213 = vset.pattern.permute.xlu0 0
      %214 = vperm.xlu0 %213, %v143
      %v215 = vpop.permute.xlu0 %214
      %218 = vset.pattern.permute.xlu0 0
      %219 = vperm.xlu0 %218, %v144
      %v220 = vpop.permute.xlu0 %219
      %223 = vset.pattern.permute.xlu0 0
      %224 = vperm.xlu0 %223, %v145
      %v225 = vpop.permute.xlu0 %224
      %228 = vset.pattern.permute.xlu0 0
      %229 = vperm.xlu0 %228, %v146
      %v230 = vpop.permute.xlu0 %229
      %233 = vset.pattern.permute.xlu0 0
      %234 = vperm.xlu0 %233, %v147
      %v235 = vpop.permute.xlu0 %234
      %238 = vset.pattern.permute.xlu0 0
      %239 = vperm.xlu0 %238, %v148
      %v240 = vpop.permute.xlu0 %239
      %243 = vset.pattern.permute.xlu0 0
      %244 = vperm.xlu0 %243, %v149
      %v245 = vpop.permute.xlu0 %244
      %248 = vset.pattern.permute.xlu0 0
      %249 = vperm.xlu0 %248, %v150
      %v250 = vpop.permute.xlu0 %249
      %253 = vset.pattern.permute.xlu0 0
      %254 = vperm.xlu0 %253, %v151
      %v255 = vpop.permute.xlu0 %254
      %258 = vset.pattern.permute.xlu0 0
      %259 = vperm.xlu0 %258, %v152
      %v260 = vpop.permute.xlu0 %259
      %263 = vset.pattern.permute.xlu0 0
      %264 = vperm.xlu0 %263, %v153
      %v265 = vpop.permute.xlu0 %264
      %268 = vset.pattern.permute.xlu0 0
      %269 = vperm.xlu0 %268, %v154
      %v270 = vpop.permute.xlu0 %269
      %273 = vset.pattern.permute.xlu0 0
      %274 = vperm.xlu0 %273, %v155
      %v275 = vpop.permute.xlu0 %274
      %278 = vset.pattern.permute.xlu0 0
      %279 = vperm.xlu0 %278, %v156
      %v280 = vpop.permute.xlu0 %279
      %283 = vset.pattern.permute.xlu0 0
      %284 = vperm.xlu0 %283, %v157
      %v285 = vpop.permute.xlu0 %284
      %288 = vset.pattern.permute.xlu0 0
      %289 = vperm.xlu0 %288, %v158
      %v290 = vpop.permute.xlu0 %289
      %293 = vset.pattern.permute.xlu0 0
      %294 = vperm.xlu0 %293, %v159
      %v295 = vpop.permute.xlu0 %294
      %298 = vset.pattern.permute.xlu0 0
      %299 = vperm.xlu0 %298, %v160
      %v300 = vpop.permute.xlu0 %299
      %303 = vset.pattern.permute.xlu0 0
      %304 = vperm.xlu0 %303, %v161
      %v305 = vpop.permute.xlu0 %304
      %308 = vset.pattern.permute.xlu0 0
      %309 = vperm.xlu0 %308, %v162
      %v310 = vpop.permute.xlu0 %309
      %313 = vset.pattern.permute.xlu0 0
      %314 = vperm.xlu0 %313, %v163
      %v315 = vpop.permute.xlu0 %314
      %318 = vset.pattern.permute.xlu0 0
      %319 = vperm.xlu0 %318, %v164
      %v320 = vpop.permute.xlu0 %319
      %323 = vset.pattern.permute.xlu0 0
      %324 = vperm.xlu0 %323, %v165
      %v325 = vpop.permute.xlu0 %324
      %v328 = vlaneseq
      %v329 = vshrl.u32 %v328, 7
      %v330 = vsub.s32 0, %v329
      %v331 = vrot.slane %v166, %v330
      %v333 = vsub.f32 %v170, %v331
      %v334 = vsub.f32 %v175, %v331
      %v335 = vsub.f32 %v180, %v331
      %v336 = vsub.f32 %v185, %v331
      %v337 = vsub.f32 %v190, %v331
      %v338 = vsub.f32 %v195, %v331
      %v339 = vsub.f32 %v200, %v331
      %v340 = vsub.f32 %v205, %v331
      %v341 = vsub.f32 %v210, %v331
      %v342 = vsub.f32 %v215, %v331
      %v343 = vsub.f32 %v220, %v331
      %v344 = vsub.f32 %v225, %v331
      %v345 = vsub.f32 %v230, %v331
      %v346 = vsub.f32 %v235, %v331
      %v347 = vsub.f32 %v240, %v331
      %v348 = vsub.f32 %v245, %v331
      %v349 = vsub.f32 %v250, %v331
      %v350 = vsub.f32 %v255, %v331
      %v351 = vsub.f32 %v260, %v331
      %v352 = vsub.f32 %v265, %v331
      %v353 = vsub.f32 %v270, %v331
      %v354 = vsub.f32 %v275, %v331
      %v355 = vsub.f32 %v280, %v331
      %v356 = vsub.f32 %v285, %v331
      %v357 = vsub.f32 %v290, %v331
      %v358 = vsub.f32 %v295, %v331
      %v359 = vsub.f32 %v300, %v331
      %v360 = vsub.f32 %v305, %v331
      %v361 = vsub.f32 %v310, %v331
      %v362 = vsub.f32 %v315, %v331
      %v363 = vsub.f32 %v320, %v331
      %v364 = vsub.f32 %v325, %v331
      %v365 = vand.u32 2147483647, %v333
      %v366 = vand.u32 2147483647, %v334
      %v367 = vand.u32 2147483647, %v335
      %v368 = vand.u32 2147483647, %v336
      %v369 = vand.u32 2147483647, %v337
      %v370 = vand.u32 2147483647, %v338
      %v371 = vand.u32 2147483647, %v339
      %v372 = vand.u32 2147483647, %v340
      %v373 = vand.u32 2147483647, %v341
      %v374 = vand.u32 2147483647, %v342
      %v375 = vand.u32 2147483647, %v343
      %v376 = vand.u32 2147483647, %v344
      %v377 = vand.u32 2147483647, %v345
      %v378 = vand.u32 2147483647, %v346
      %v379 = vand.u32 2147483647, %v347
      %v380 = vand.u32 2147483647, %v348
      %v381 = vand.u32 2147483647, %v349
      %v382 = vand.u32 2147483647, %v350
      %v383 = vand.u32 2147483647, %v351
      %v384 = vand.u32 2147483647, %v352
      %v385 = vand.u32 2147483647, %v353
      %v386 = vand.u32 2147483647, %v354
      %v387 = vand.u32 2147483647, %v355
      %v388 = vand.u32 2147483647, %v356
      %v389 = vand.u32 2147483647, %v357
      %v390 = vand.u32 2147483647, %v358
      %v391 = vand.u32 2147483647, %v359
      %v392 = vand.u32 2147483647, %v360
      %v393 = vand.u32 2147483647, %v361
      %v394 = vand.u32 2147483647, %v362
      %v395 = vand.u32 2147483647, %v363
      %v396 = vand.u32 2147483647, %v364
      %v397 = vlaneseq
      %v398 = vshrl.u32 %v397, 7
      %v399 = vadd.s32 %v398, 8
      %v400 = vadd.s32 %v398, 16
      %v401 = vadd.s32 %v398, 24
      %v402 = vadd.s32 %v398, 32
      %v403 = vadd.s32 %v398, 40
      %v404 = vadd.s32 %v398, 48
      %v405 = vadd.s32 %v398, 56
      %v406 = vadd.s32 %v398, 64
      %v407 = vadd.s32 %v398, 72
      %v408 = vadd.s32 %v398, 80
      %v409 = vadd.s32 %v398, 88
      %v410 = vadd.s32 %v398, 96
      %v411 = vadd.s32 %v398, 104
      %v412 = vadd.s32 %v398, 112
      %v413 = vadd.s32 %v398, 120
      %v414 = vadd.s32 %v398, 128
      %v415 = vadd.s32 %v398, 136
      %v416 = vadd.s32 %v398, 144
      %v417 = vadd.s32 %v398, 152
      %v418 = vadd.s32 %v398, 160
      %v419 = vadd.s32 %v398, 168
      %v420 = vadd.s32 %v398, 176
      %v421 = vadd.s32 %v398, 184
      %v422 = vadd.s32 %v398, 192
      %v423 = vadd.s32 %v398, 200
      %v424 = vadd.s32 %v398, 208
      %v425 = vadd.s32 %v398, 216
      %v426 = vadd.s32 %v398, 224
      %v427 = vadd.s32 %v398, 232
      %v428 = vadd.s32 %v398, 240
      %v429 = vadd.s32 %v398, 248
      %v430 = vmin.f32 %v365, %v369
      %v431 = vmin.f32 %v366, %v370
      %v432 = vmin.f32 %v367, %v371
      %v433 = vmin.f32 %v368, %v372
      %v434 = vmin.f32 %v430, %v373
      %v435 = vmin.f32 %v431, %v374
      %v436 = vmin.f32 %v432, %v375
      %v437 = vmin.f32 %v433, %v376
      %v438 = vmin.f32 %v434, %v377
      %v439 = vmin.f32 %v435, %v378
      %v440 = vmin.f32 %v436, %v379
      %v441 = vmin.f32 %v437, %v380
      %v442 = vmin.f32 %v438, %v381
      %v443 = vmin.f32 %v439, %v382
      %v444 = vmin.f32 %v440, %v383
      %v445 = vmin.f32 %v441, %v384
      %v446 = vmin.f32 %v442, %v385
      %v447 = vmin.f32 %v443, %v386
      %v448 = vmin.f32 %v444, %v387
      %v449 = vmin.f32 %v445, %v388
      %v450 = vmin.f32 %v446, %v389
      %v451 = vmin.f32 %v447, %v390
      %v452 = vmin.f32 %v448, %v391
      %v453 = vmin.f32 %v449, %v392
      %v454 = vmin.f32 %v450, %v393
      %v455 = vmin.f32 %v451, %v394
      %v456 = vmin.f32 %v452, %v395
      %v457 = vmin.f32 %v453, %v396
      %v458 = vmin.f32 %v454, %v455
      %v459 = vmin.f32 %v456, %v457
      %v460 = vmin.f32 %v458, %v459
      %v461 = vrot.slane %v460, 4
      %v462 = vmin.f32 %v460, %v461
      %v463 = vrot.slane %v462, 2
      %v464 = vmin.f32 %v462, %v463
      %v465 = vrot.slane %v464, 1
      %v466 = vmin.f32 %v464, %v465
      %vm467 = vcmp.eq.f32.partialorder %v365, %v466
      %vm468 = vcmp.eq.f32.partialorder %v366, %v466
      %vm469 = vcmp.eq.f32.partialorder %v367, %v466
      %vm470 = vcmp.eq.f32.partialorder %v368, %v466
      %vm471 = vcmp.eq.f32.partialorder %v369, %v466
      %vm472 = vcmp.eq.f32.partialorder %v370, %v466
      %vm473 = vcmp.eq.f32.partialorder %v371, %v466
      %vm474 = vcmp.eq.f32.partialorder %v372, %v466
      %vm475 = vcmp.eq.f32.partialorder %v373, %v466
      %vm476 = vcmp.eq.f32.partialorder %v374, %v466
      %vm477 = vcmp.eq.f32.partialorder %v375, %v466
      %vm478 = vcmp.eq.f32.partialorder %v376, %v466
      %vm479 = vcmp.eq.f32.partialorder %v377, %v466
      %vm480 = vcmp.eq.f32.partialorder %v378, %v466
      %vm481 = vcmp.eq.f32.partialorder %v379, %v466
      %vm482 = vcmp.eq.f32.partialorder %v380, %v466
      %vm483 = vcmp.eq.f32.partialorder %v381, %v466
      %vm484 = vcmp.eq.f32.partialorder %v382, %v466
      %vm485 = vcmp.eq.f32.partialorder %v383, %v466
      %vm486 = vcmp.eq.f32.partialorder %v384, %v466
      %vm487 = vcmp.eq.f32.partialorder %v385, %v466
      %vm488 = vcmp.eq.f32.partialorder %v386, %v466
      %vm489 = vcmp.eq.f32.partialorder %v387, %v466
      %vm490 = vcmp.eq.f32.partialorder %v388, %v466
      %vm491 = vcmp.eq.f32.partialorder %v389, %v466
      %vm492 = vcmp.eq.f32.partialorder %v390, %v466
      %vm493 = vcmp.eq.f32.partialorder %v391, %v466
      %vm494 = vcmp.eq.f32.partialorder %v392, %v466
      %vm495 = vcmp.eq.f32.partialorder %v393, %v466
      %vm496 = vcmp.eq.f32.partialorder %v394, %v466
      %vm497 = vcmp.eq.f32.partialorder %v395, %v466
      %vm498 = vcmp.eq.f32.partialorder %v396, %v466
      %v499 = vsel %vm467, %v398, 256
      %v500 = vsel %vm468, %v399, 256
      %v501 = vsel %vm469, %v400, 256
      %v502 = vsel %vm470, %v401, 256
      %v503 = vsel %vm471, %v402, 256
      %v504 = vsel %vm472, %v403, 256
      %v505 = vsel %vm473, %v404, 256
      %v506 = vsel %vm474, %v405, 256
      %v507 = vsel %vm475, %v406, 256
      %v508 = vsel %vm476, %v407, 256
      %v509 = vsel %vm477, %v408, 256
      %v510 = vsel %vm478, %v409, 256
      %v511 = vsel %vm479, %v410, 256
      %v512 = vsel %vm480, %v411, 256
      %v513 = vsel %vm481, %v412, 256
      %v514 = vsel %vm482, %v413, 256
      %v515 = vsel %vm483, %v414, 256
      %v516 = vsel %vm484, %v415, 256
      %v517 = vsel %vm485, %v416, 256
      %v518 = vsel %vm486, %v417, 256
      %v519 = vsel %vm487, %v418, 256
      %v520 = vsel %vm488, %v419, 256
      %v521 = vsel %vm489, %v420, 256
      %v522 = vsel %vm490, %v421, 256
      %v523 = vsel %vm491, %v422, 256
      %v524 = vsel %vm492, %v423, 256
      %v525 = vsel %vm493, %v424, 256
      %v526 = vsel %vm494, %v425, 256
      %v527 = vsel %vm495, %v426, 256
      %v528 = vsel %vm496, %v427, 256
      %v529 = vsel %vm497, %v428, 256
      %v530 = vsel %vm498, %v429, 256
      %vm531 = vcmp.lt.s32.totalorder %v499, %v503
      %v532 = vsel %vm531, %v499, %v503
      %vm533 = vcmp.lt.s32.totalorder %v500, %v504
      %v534 = vsel %vm533, %v500, %v504
      %vm535 = vcmp.lt.s32.totalorder %v501, %v505
      %v536 = vsel %vm535, %v501, %v505
      %vm537 = vcmp.lt.s32.totalorder %v502, %v506
      %v538 = vsel %vm537, %v502, %v506
      %vm539 = vcmp.lt.s32.totalorder %v532, %v507
      %v540 = vsel %vm539, %v532, %v507
      %vm541 = vcmp.lt.s32.totalorder %v534, %v508
      %v542 = vsel %vm541, %v534, %v508
      %vm543 = vcmp.lt.s32.totalorder %v536, %v509
      %v544 = vsel %vm543, %v536, %v509
      %vm545 = vcmp.lt.s32.totalorder %v538, %v510
      %v546 = vsel %vm545, %v538, %v510
      %vm547 = vcmp.lt.s32.totalorder %v540, %v511
      %v548 = vsel %vm547, %v540, %v511
      %vm549 = vcmp.lt.s32.totalorder %v542, %v512
      %v550 = vsel %vm549, %v542, %v512
      %vm551 = vcmp.lt.s32.totalorder %v544, %v513
      %v552 = vsel %vm551, %v544, %v513
      %vm553 = vcmp.lt.s32.totalorder %v546, %v514
      %v554 = vsel %vm553, %v546, %v514
      %vm555 = vcmp.lt.s32.totalorder %v548, %v515
      %v556 = vsel %vm555, %v548, %v515
      %vm557 = vcmp.lt.s32.totalorder %v550, %v516
      %v558 = vsel %vm557, %v550, %v516
      %vm559 = vcmp.lt.s32.totalorder %v552, %v517
      %v560 = vsel %vm559, %v552, %v517
      %vm561 = vcmp.lt.s32.totalorder %v554, %v518
      %v562 = vsel %vm561, %v554, %v518
      %vm563 = vcmp.lt.s32.totalorder %v556, %v519
      %v564 = vsel %vm563, %v556, %v519
      %vm565 = vcmp.lt.s32.totalorder %v558, %v520
      %v566 = vsel %vm565, %v558, %v520
      %vm567 = vcmp.lt.s32.totalorder %v560, %v521
      %v568 = vsel %vm567, %v560, %v521
      %vm569 = vcmp.lt.s32.totalorder %v562, %v522
      %v570 = vsel %vm569, %v562, %v522
      %vm571 = vcmp.lt.s32.totalorder %v564, %v523
      %v572 = vsel %vm571, %v564, %v523
      %vm573 = vcmp.lt.s32.totalorder %v566, %v524
      %v574 = vsel %vm573, %v566, %v524
      %vm575 = vcmp.lt.s32.totalorder %v568, %v525
      %v576 = vsel %vm575, %v568, %v525
      %vm577 = vcmp.lt.s32.totalorder %v570, %v526
      %v578 = vsel %vm577, %v570, %v526
      %vm579 = vcmp.lt.s32.totalorder %v572, %v527
      %v580 = vsel %vm579, %v572, %v527
      %vm581 = vcmp.lt.s32.totalorder %v574, %v528
      %v582 = vsel %vm581, %v574, %v528
      %vm583 = vcmp.lt.s32.totalorder %v576, %v529
      %v584 = vsel %vm583, %v576, %v529
      %vm585 = vcmp.lt.s32.totalorder %v578, %v530
      %v586 = vsel %vm585, %v578, %v530
      %vm587 = vcmp.lt.s32.totalorder %v580, %v582
      %v588 = vsel %vm587, %v580, %v582
      %vm589 = vcmp.lt.s32.totalorder %v584, %v586
      %v590 = vsel %vm589, %v584, %v586
      %vm591 = vcmp.lt.s32.totalorder %v588, %v590
      %v592 = vsel %vm591, %v588, %v590
      %v593 = vrot.slane %v592, 4
      %vm594 = vcmp.lt.s32.totalorder %v592, %v593
      %v595 = vsel %vm594, %v592, %v593
      %v596 = vrot.slane %v595, 2
      %vm597 = vcmp.lt.s32.totalorder %v595, %v596
      %v598 = vsel %vm597, %v595, %v596
      %v599 = vrot.slane %v598, 1
      %vm600 = vcmp.lt.s32.totalorder %v598, %v599
      %v601 = vsel %vm600, %v598, %v599
      %vm602 = vcmp.eq.s32.totalorder %v398, %v601
      %vm603 = vcmp.eq.s32.totalorder %v399, %v601
      %vm604 = vcmp.eq.s32.totalorder %v400, %v601
      %vm605 = vcmp.eq.s32.totalorder %v401, %v601
      %vm606 = vcmp.eq.s32.totalorder %v402, %v601
      %vm607 = vcmp.eq.s32.totalorder %v403, %v601
      %vm608 = vcmp.eq.s32.totalorder %v404, %v601
      %vm609 = vcmp.eq.s32.totalorder %v405, %v601
      %vm610 = vcmp.eq.s32.totalorder %v406, %v601
      %vm611 = vcmp.eq.s32.totalorder %v407, %v601
      %vm612 = vcmp.eq.s32.totalorder %v408, %v601
      %vm613 = vcmp.eq.s32.totalorder %v409, %v601
      %vm614 = vcmp.eq.s32.totalorder %v410, %v601
      %vm615 = vcmp.eq.s32.totalorder %v411, %v601
      %vm616 = vcmp.eq.s32.totalorder %v412, %v601
      %vm617 = vcmp.eq.s32.totalorder %v413, %v601
      %vm618 = vcmp.eq.s32.totalorder %v414, %v601
      %vm619 = vcmp.eq.s32.totalorder %v415, %v601
      %vm620 = vcmp.eq.s32.totalorder %v416, %v601
      %vm621 = vcmp.eq.s32.totalorder %v417, %v601
      %vm622 = vcmp.eq.s32.totalorder %v418, %v601
      %vm623 = vcmp.eq.s32.totalorder %v419, %v601
      %vm624 = vcmp.eq.s32.totalorder %v420, %v601
      %vm625 = vcmp.eq.s32.totalorder %v421, %v601
      %vm626 = vcmp.eq.s32.totalorder %v422, %v601
      %vm627 = vcmp.eq.s32.totalorder %v423, %v601
      %vm628 = vcmp.eq.s32.totalorder %v424, %v601
      %vm629 = vcmp.eq.s32.totalorder %v425, %v601
      %vm630 = vcmp.eq.s32.totalorder %v426, %v601
      %vm631 = vcmp.eq.s32.totalorder %v427, %v601
      %vm632 = vcmp.eq.s32.totalorder %v428, %v601
      %vm633 = vcmp.eq.s32.totalorder %v429, %v601
      %v634 = vsel %vm602, %v170, inf
      %v635 = vsel %vm603, %v175, inf
      %v636 = vsel %vm604, %v180, inf
      %v637 = vsel %vm605, %v185, inf
      %v638 = vsel %vm606, %v190, inf
      %v639 = vsel %vm607, %v195, inf
      %v640 = vsel %vm608, %v200, inf
      %v641 = vsel %vm609, %v205, inf
      %v642 = vsel %vm610, %v210, inf
      %v643 = vsel %vm611, %v215, inf
      %v644 = vsel %vm612, %v220, inf
      %v645 = vsel %vm613, %v225, inf
      %v646 = vsel %vm614, %v230, inf
      %v647 = vsel %vm615, %v235, inf
      %v648 = vsel %vm616, %v240, inf
      %v649 = vsel %vm617, %v245, inf
      %v650 = vsel %vm618, %v250, inf
      %v651 = vsel %vm619, %v255, inf
      %v652 = vsel %vm620, %v260, inf
      %v653 = vsel %vm621, %v265, inf
      %v654 = vsel %vm622, %v270, inf
      %v655 = vsel %vm623, %v275, inf
      %v656 = vsel %vm624, %v280, inf
      %v657 = vsel %vm625, %v285, inf
      %v658 = vsel %vm626, %v290, inf
      %v659 = vsel %vm627, %v295, inf
      %v660 = vsel %vm628, %v300, inf
      %v661 = vsel %vm629, %v305, inf
      %v662 = vsel %vm630, %v310, inf
      %v663 = vsel %vm631, %v315, inf
      %v664 = vsel %vm632, %v320, inf
      %v665 = vsel %vm633, %v325, inf
      %v666 = vmin.f32 %v634, %v638
      %v667 = vmin.f32 %v635, %v639
      %v668 = vmin.f32 %v636, %v640
      %v669 = vmin.f32 %v637, %v641
      %v670 = vmin.f32 %v666, %v642
      %v671 = vmin.f32 %v667, %v643
      %v672 = vmin.f32 %v668, %v644
      %v673 = vmin.f32 %v669, %v645
      %v674 = vmin.f32 %v670, %v646
      %v675 = vmin.f32 %v671, %v647
      %v676 = vmin.f32 %v672, %v648
      %v677 = vmin.f32 %v673, %v649
      %v678 = vmin.f32 %v674, %v650
      %v679 = vmin.f32 %v675, %v651
      %v680 = vmin.f32 %v676, %v652
      %v681 = vmin.f32 %v677, %v653
      %v682 = vmin.f32 %v678, %v654
      %v683 = vmin.f32 %v679, %v655
      %v684 = vmin.f32 %v680, %v656
      %v685 = vmin.f32 %v681, %v657
      %v686 = vmin.f32 %v682, %v658
      %v687 = vmin.f32 %v683, %v659
      %v688 = vmin.f32 %v684, %v660
      %v689 = vmin.f32 %v685, %v661
      %v690 = vmin.f32 %v686, %v662
      %v691 = vmin.f32 %v687, %v663
      %v692 = vmin.f32 %v688, %v664
      %v693 = vmin.f32 %v689, %v665
      %v694 = vmin.f32 %v690, %v691
      %v695 = vmin.f32 %v692, %v693
      %v696 = vmin.f32 %v694, %v695
      %v697 = vrot.slane %v696, 4
      %v698 = vmin.f32 %v696, %v697
      %v699 = vrot.slane %v698, 2
      %v700 = vmin.f32 %v698, %v699
      %v701 = vrot.slane %v700, 1
      %v702 = vmin.f32 %v700, %v701
      %v703 = vadd.f32 %v702, 0.0
      %v704 = vsel %vm602, inf, %v365
      %v705 = vsel %vm603, inf, %v366
      %v706 = vsel %vm604, inf, %v367
      %v707 = vsel %vm605, inf, %v368
      %v708 = vsel %vm606, inf, %v369
      %v709 = vsel %vm607, inf, %v370
      %v710 = vsel %vm608, inf, %v371
      %v711 = vsel %vm609, inf, %v372
      %v712 = vsel %vm610, inf, %v373
      %v713 = vsel %vm611, inf, %v374
      %v714 = vsel %vm612, inf, %v375
      %v715 = vsel %vm613, inf, %v376
      %v716 = vsel %vm614, inf, %v377
      %v717 = vsel %vm615, inf, %v378
      %v718 = vsel %vm616, inf, %v379
      %v719 = vsel %vm617, inf, %v380
      %v720 = vsel %vm618, inf, %v381
      %v721 = vsel %vm619, inf, %v382
      %v722 = vsel %vm620, inf, %v383
      %v723 = vsel %vm621, inf, %v384
      %v724 = vsel %vm622, inf, %v385
      %v725 = vsel %vm623, inf, %v386
      %v726 = vsel %vm624, inf, %v387
      %v727 = vsel %vm625, inf, %v388
      %v728 = vsel %vm626, inf, %v389
      %v729 = vsel %vm627, inf, %v390
      %v730 = vsel %vm628, inf, %v391
      %v731 = vsel %vm629, inf, %v392
      %v732 = vsel %vm630, inf, %v393
      %v733 = vsel %vm631, inf, %v394
      %v734 = vsel %vm632, inf, %v395
      %v735 = vsel %vm633, inf, %v396
      %v736 = vmin.f32 %v704, %v708
      %v737 = vmin.f32 %v705, %v709
      %v738 = vmin.f32 %v706, %v710
      %v739 = vmin.f32 %v707, %v711
      %v740 = vmin.f32 %v736, %v712
      %v741 = vmin.f32 %v737, %v713
      %v742 = vmin.f32 %v738, %v714
      %v743 = vmin.f32 %v739, %v715
      %v744 = vmin.f32 %v740, %v716
      %v745 = vmin.f32 %v741, %v717
      %v746 = vmin.f32 %v742, %v718
      %v747 = vmin.f32 %v743, %v719
      %v748 = vmin.f32 %v744, %v720
      %v749 = vmin.f32 %v745, %v721
      %v750 = vmin.f32 %v746, %v722
      %v751 = vmin.f32 %v747, %v723
      %v752 = vmin.f32 %v748, %v724
      %v753 = vmin.f32 %v749, %v725
      %v754 = vmin.f32 %v750, %v726
      %v755 = vmin.f32 %v751, %v727
      %v756 = vmin.f32 %v752, %v728
      %v757 = vmin.f32 %v753, %v729
      %v758 = vmin.f32 %v754, %v730
      %v759 = vmin.f32 %v755, %v731
      %v760 = vmin.f32 %v756, %v732
      %v761 = vmin.f32 %v757, %v733
      %v762 = vmin.f32 %v758, %v734
      %v763 = vmin.f32 %v759, %v735
      %v764 = vmin.f32 %v760, %v761
      %v765 = vmin.f32 %v762, %v763
      %v766 = vmin.f32 %v764, %v765
      %v767 = vrot.slane %v766, 4
      %v768 = vmin.f32 %v766, %v767
      %v769 = vrot.slane %v768, 2
      %v770 = vmin.f32 %v768, %v769
      %v771 = vrot.slane %v770, 1
      %v772 = vmin.f32 %v770, %v771
      %vm773 = vcmp.eq.f32.partialorder %v704, %v772
      %vm774 = vcmp.eq.f32.partialorder %v705, %v772
      %vm775 = vcmp.eq.f32.partialorder %v706, %v772
      %vm776 = vcmp.eq.f32.partialorder %v707, %v772
      %vm777 = vcmp.eq.f32.partialorder %v708, %v772
      %vm778 = vcmp.eq.f32.partialorder %v709, %v772
      %vm779 = vcmp.eq.f32.partialorder %v710, %v772
      %vm780 = vcmp.eq.f32.partialorder %v711, %v772
      %vm781 = vcmp.eq.f32.partialorder %v712, %v772
      %vm782 = vcmp.eq.f32.partialorder %v713, %v772
      %vm783 = vcmp.eq.f32.partialorder %v714, %v772
      %vm784 = vcmp.eq.f32.partialorder %v715, %v772
      %vm785 = vcmp.eq.f32.partialorder %v716, %v772
      %vm786 = vcmp.eq.f32.partialorder %v717, %v772
      %vm787 = vcmp.eq.f32.partialorder %v718, %v772
      %vm788 = vcmp.eq.f32.partialorder %v719, %v772
      %vm789 = vcmp.eq.f32.partialorder %v720, %v772
      %vm790 = vcmp.eq.f32.partialorder %v721, %v772
      %vm791 = vcmp.eq.f32.partialorder %v722, %v772
      %vm792 = vcmp.eq.f32.partialorder %v723, %v772
      %vm793 = vcmp.eq.f32.partialorder %v724, %v772
      %vm794 = vcmp.eq.f32.partialorder %v725, %v772
      %vm795 = vcmp.eq.f32.partialorder %v726, %v772
      %vm796 = vcmp.eq.f32.partialorder %v727, %v772
      %vm797 = vcmp.eq.f32.partialorder %v728, %v772
      %vm798 = vcmp.eq.f32.partialorder %v729, %v772
      %vm799 = vcmp.eq.f32.partialorder %v730, %v772
      %vm800 = vcmp.eq.f32.partialorder %v731, %v772
      %vm801 = vcmp.eq.f32.partialorder %v732, %v772
      %vm802 = vcmp.eq.f32.partialorder %v733, %v772
      %vm803 = vcmp.eq.f32.partialorder %v734, %v772
      %vm804 = vcmp.eq.f32.partialorder %v735, %v772
      %v805 = vsel %vm773, %v398, 256
      %v806 = vsel %vm774, %v399, 256
      %v807 = vsel %vm775, %v400, 256
      %v808 = vsel %vm776, %v401, 256
      %v809 = vsel %vm777, %v402, 256
      %v810 = vsel %vm778, %v403, 256
      %v811 = vsel %vm779, %v404, 256
      %v812 = vsel %vm780, %v405, 256
      %v813 = vsel %vm781, %v406, 256
      %v814 = vsel %vm782, %v407, 256
      %v815 = vsel %vm783, %v408, 256
      %v816 = vsel %vm784, %v409, 256
      %v817 = vsel %vm785, %v410, 256
      %v818 = vsel %vm786, %v411, 256
      %v819 = vsel %vm787, %v412, 256
      %v820 = vsel %vm788, %v413, 256
      %v821 = vsel %vm789, %v414, 256
      %v822 = vsel %vm790, %v415, 256
      %v823 = vsel %vm791, %v416, 256
      %v824 = vsel %vm792, %v417, 256
      %v825 = vsel %vm793, %v418, 256
      %v826 = vsel %vm794, %v419, 256
      %v827 = vsel %vm795, %v420, 256
      %v828 = vsel %vm796, %v421, 256
      %v829 = vsel %vm797, %v422, 256
      %v830 = vsel %vm798, %v423, 256
      %v831 = vsel %vm799, %v424, 256
      %v832 = vsel %vm800, %v425, 256
      %v833 = vsel %vm801, %v426, 256
      %v834 = vsel %vm802, %v427, 256
      %v835 = vsel %vm803, %v428, 256
      %v836 = vsel %vm804, %v429, 256
      %vm837 = vcmp.lt.s32.totalorder %v805, %v809
      %v838 = vsel %vm837, %v805, %v809
      %vm839 = vcmp.lt.s32.totalorder %v806, %v810
      %v840 = vsel %vm839, %v806, %v810
      %vm841 = vcmp.lt.s32.totalorder %v807, %v811
      %v842 = vsel %vm841, %v807, %v811
      %vm843 = vcmp.lt.s32.totalorder %v808, %v812
      %v844 = vsel %vm843, %v808, %v812
      %vm845 = vcmp.lt.s32.totalorder %v838, %v813
      %v846 = vsel %vm845, %v838, %v813
      %vm847 = vcmp.lt.s32.totalorder %v840, %v814
      %v848 = vsel %vm847, %v840, %v814
      %vm849 = vcmp.lt.s32.totalorder %v842, %v815
      %v850 = vsel %vm849, %v842, %v815
      %vm851 = vcmp.lt.s32.totalorder %v844, %v816
      %v852 = vsel %vm851, %v844, %v816
      %vm853 = vcmp.lt.s32.totalorder %v846, %v817
      %v854 = vsel %vm853, %v846, %v817
      %vm855 = vcmp.lt.s32.totalorder %v848, %v818
      %v856 = vsel %vm855, %v848, %v818
      %vm857 = vcmp.lt.s32.totalorder %v850, %v819
      %v858 = vsel %vm857, %v850, %v819
      %vm859 = vcmp.lt.s32.totalorder %v852, %v820
      %v860 = vsel %vm859, %v852, %v820
      %vm861 = vcmp.lt.s32.totalorder %v854, %v821
      %v862 = vsel %vm861, %v854, %v821
      %vm863 = vcmp.lt.s32.totalorder %v856, %v822
      %v864 = vsel %vm863, %v856, %v822
      %vm865 = vcmp.lt.s32.totalorder %v858, %v823
      %v866 = vsel %vm865, %v858, %v823
      %vm867 = vcmp.lt.s32.totalorder %v860, %v824
      %v868 = vsel %vm867, %v860, %v824
      %vm869 = vcmp.lt.s32.totalorder %v862, %v825
      %v870 = vsel %vm869, %v862, %v825
      %vm871 = vcmp.lt.s32.totalorder %v864, %v826
      %v872 = vsel %vm871, %v864, %v826
      %vm873 = vcmp.lt.s32.totalorder %v866, %v827
      %v874 = vsel %vm873, %v866, %v827
      %vm875 = vcmp.lt.s32.totalorder %v868, %v828
      %v876 = vsel %vm875, %v868, %v828
      %vm877 = vcmp.lt.s32.totalorder %v870, %v829
      %v878 = vsel %vm877, %v870, %v829
      %vm879 = vcmp.lt.s32.totalorder %v872, %v830
      %v880 = vsel %vm879, %v872, %v830
      %vm881 = vcmp.lt.s32.totalorder %v874, %v831
      %v882 = vsel %vm881, %v874, %v831
      %vm883 = vcmp.lt.s32.totalorder %v876, %v832
      %v884 = vsel %vm883, %v876, %v832
      %vm885 = vcmp.lt.s32.totalorder %v878, %v833
      %v886 = vsel %vm885, %v878, %v833
      %vm887 = vcmp.lt.s32.totalorder %v880, %v834
      %v888 = vsel %vm887, %v880, %v834
      %vm889 = vcmp.lt.s32.totalorder %v882, %v835
      %v890 = vsel %vm889, %v882, %v835
      %vm891 = vcmp.lt.s32.totalorder %v884, %v836
      %v892 = vsel %vm891, %v884, %v836
      %vm893 = vcmp.lt.s32.totalorder %v886, %v888
      %v894 = vsel %vm893, %v886, %v888
      %vm895 = vcmp.lt.s32.totalorder %v890, %v892
      %v896 = vsel %vm895, %v890, %v892
      %vm897 = vcmp.lt.s32.totalorder %v894, %v896
      %v898 = vsel %vm897, %v894, %v896
      %v899 = vrot.slane %v898, 4
      %vm900 = vcmp.lt.s32.totalorder %v898, %v899
      %v901 = vsel %vm900, %v898, %v899
      %v902 = vrot.slane %v901, 2
      %vm903 = vcmp.lt.s32.totalorder %v901, %v902
      %v904 = vsel %vm903, %v901, %v902
      %v905 = vrot.slane %v904, 1
      %vm906 = vcmp.lt.s32.totalorder %v904, %v905
      %v907 = vsel %vm906, %v904, %v905
      %vm908 = vcmp.eq.s32.totalorder %v398, %v907
      %vm909 = vcmp.eq.s32.totalorder %v399, %v907
      %vm910 = vcmp.eq.s32.totalorder %v400, %v907
      %vm911 = vcmp.eq.s32.totalorder %v401, %v907
      %vm912 = vcmp.eq.s32.totalorder %v402, %v907
      %vm913 = vcmp.eq.s32.totalorder %v403, %v907
      %vm914 = vcmp.eq.s32.totalorder %v404, %v907
      %vm915 = vcmp.eq.s32.totalorder %v405, %v907
      %vm916 = vcmp.eq.s32.totalorder %v406, %v907
      %vm917 = vcmp.eq.s32.totalorder %v407, %v907
      %vm918 = vcmp.eq.s32.totalorder %v408, %v907
      %vm919 = vcmp.eq.s32.totalorder %v409, %v907
      %vm920 = vcmp.eq.s32.totalorder %v410, %v907
      %vm921 = vcmp.eq.s32.totalorder %v411, %v907
      %vm922 = vcmp.eq.s32.totalorder %v412, %v907
      %vm923 = vcmp.eq.s32.totalorder %v413, %v907
      %vm924 = vcmp.eq.s32.totalorder %v414, %v907
      %vm925 = vcmp.eq.s32.totalorder %v415, %v907
      %vm926 = vcmp.eq.s32.totalorder %v416, %v907
      %vm927 = vcmp.eq.s32.totalorder %v417, %v907
      %vm928 = vcmp.eq.s32.totalorder %v418, %v907
      %vm929 = vcmp.eq.s32.totalorder %v419, %v907
      %vm930 = vcmp.eq.s32.totalorder %v420, %v907
      %vm931 = vcmp.eq.s32.totalorder %v421, %v907
      %vm932 = vcmp.eq.s32.totalorder %v422, %v907
      %vm933 = vcmp.eq.s32.totalorder %v423, %v907
      %vm934 = vcmp.eq.s32.totalorder %v424, %v907
      %vm935 = vcmp.eq.s32.totalorder %v425, %v907
      %vm936 = vcmp.eq.s32.totalorder %v426, %v907
      %vm937 = vcmp.eq.s32.totalorder %v427, %v907
      %vm938 = vcmp.eq.s32.totalorder %v428, %v907
      %vm939 = vcmp.eq.s32.totalorder %v429, %v907
      %v940 = vsel %vm908, %v170, inf
      %v941 = vsel %vm909, %v175, inf
      %v942 = vsel %vm910, %v180, inf
      %v943 = vsel %vm911, %v185, inf
      %v944 = vsel %vm912, %v190, inf
      %v945 = vsel %vm913, %v195, inf
      %v946 = vsel %vm914, %v200, inf
      %v947 = vsel %vm915, %v205, inf
      %v948 = vsel %vm916, %v210, inf
      %v949 = vsel %vm917, %v215, inf
      %v950 = vsel %vm918, %v220, inf
      %v951 = vsel %vm919, %v225, inf
      %v952 = vsel %vm920, %v230, inf
      %v953 = vsel %vm921, %v235, inf
      %v954 = vsel %vm922, %v240, inf
      %v955 = vsel %vm923, %v245, inf
      %v956 = vsel %vm924, %v250, inf
      %v957 = vsel %vm925, %v255, inf
      %v958 = vsel %vm926, %v260, inf
      %v959 = vsel %vm927, %v265, inf
      %v960 = vsel %vm928, %v270, inf
      %v961 = vsel %vm929, %v275, inf
      %v962 = vsel %vm930, %v280, inf
      %v963 = vsel %vm931, %v285, inf
      %v964 = vsel %vm932, %v290, inf
      %v965 = vsel %vm933, %v295, inf
      %v966 = vsel %vm934, %v300, inf
      %v967 = vsel %vm935, %v305, inf
      %v968 = vsel %vm936, %v310, inf
      %v969 = vsel %vm937, %v315, inf
      %v970 = vsel %vm938, %v320, inf
      %v971 = vsel %vm939, %v325, inf
      %v972 = vmin.f32 %v940, %v944
      %v973 = vmin.f32 %v941, %v945
      %v974 = vmin.f32 %v942, %v946
      %v975 = vmin.f32 %v943, %v947
      %v976 = vmin.f32 %v972, %v948
      %v977 = vmin.f32 %v973, %v949
      %v978 = vmin.f32 %v974, %v950
      %v979 = vmin.f32 %v975, %v951
      %v980 = vmin.f32 %v976, %v952
      %v981 = vmin.f32 %v977, %v953
      %v982 = vmin.f32 %v978, %v954
      %v983 = vmin.f32 %v979, %v955
      %v984 = vmin.f32 %v980, %v956
      %v985 = vmin.f32 %v981, %v957
      %v986 = vmin.f32 %v982, %v958
      %v987 = vmin.f32 %v983, %v959
      %v988 = vmin.f32 %v984, %v960
      %v989 = vmin.f32 %v985, %v961
      %v990 = vmin.f32 %v986, %v962
      %v991 = vmin.f32 %v987, %v963
      %v992 = vmin.f32 %v988, %v964
      %v993 = vmin.f32 %v989, %v965
      %v994 = vmin.f32 %v990, %v966
      %v995 = vmin.f32 %v991, %v967
      %v996 = vmin.f32 %v992, %v968
      %v997 = vmin.f32 %v993, %v969
      %v998 = vmin.f32 %v994, %v970
      %v999 = vmin.f32 %v995, %v971
      %v1000 = vmin.f32 %v996, %v997
      %v1001 = vmin.f32 %v998, %v999
      %v1002 = vmin.f32 %v1000, %v1001
      %v1003 = vrot.slane %v1002, 4
      %v1004 = vmin.f32 %v1002, %v1003
      %v1005 = vrot.slane %v1004, 2
      %v1006 = vmin.f32 %v1004, %v1005
      %v1007 = vrot.slane %v1006, 1
      %v1008 = vmin.f32 %v1006, %v1007
      %v1009 = vadd.f32 %v703, %v1008
      %v1010 = vsel %vm908, inf, %v704
      %v1011 = vsel %vm909, inf, %v705
      %v1012 = vsel %vm910, inf, %v706
      %v1013 = vsel %vm911, inf, %v707
      %v1014 = vsel %vm912, inf, %v708
      %v1015 = vsel %vm913, inf, %v709
      %v1016 = vsel %vm914, inf, %v710
      %v1017 = vsel %vm915, inf, %v711
      %v1018 = vsel %vm916, inf, %v712
      %v1019 = vsel %vm917, inf, %v713
      %v1020 = vsel %vm918, inf, %v714
      %v1021 = vsel %vm919, inf, %v715
      %v1022 = vsel %vm920, inf, %v716
      %v1023 = vsel %vm921, inf, %v717
      %v1024 = vsel %vm922, inf, %v718
      %v1025 = vsel %vm923, inf, %v719
      %v1026 = vsel %vm924, inf, %v720
      %v1027 = vsel %vm925, inf, %v721
      %v1028 = vsel %vm926, inf, %v722
      %v1029 = vsel %vm927, inf, %v723
      %v1030 = vsel %vm928, inf, %v724
      %v1031 = vsel %vm929, inf, %v725
      %v1032 = vsel %vm930, inf, %v726
      %v1033 = vsel %vm931, inf, %v727
      %v1034 = vsel %vm932, inf, %v728
      %v1035 = vsel %vm933, inf, %v729
      %v1036 = vsel %vm934, inf, %v730
      %v1037 = vsel %vm935, inf, %v731
      %v1038 = vsel %vm936, inf, %v732
      %v1039 = vsel %vm937, inf, %v733
      %v1040 = vsel %vm938, inf, %v734
      %v1041 = vsel %vm939, inf, %v735
      %v1042 = vmin.f32 %v1010, %v1014
      %v1043 = vmin.f32 %v1011, %v1015
      %v1044 = vmin.f32 %v1012, %v1016
      %v1045 = vmin.f32 %v1013, %v1017
      %v1046 = vmin.f32 %v1042, %v1018
      %v1047 = vmin.f32 %v1043, %v1019
      %v1048 = vmin.f32 %v1044, %v1020
      %v1049 = vmin.f32 %v1045, %v1021
      %v1050 = vmin.f32 %v1046, %v1022
      %v1051 = vmin.f32 %v1047, %v1023
      %v1052 = vmin.f32 %v1048, %v1024
      %v1053 = vmin.f32 %v1049, %v1025
      %v1054 = vmin.f32 %v1050, %v1026
      %v1055 = vmin.f32 %v1051, %v1027
      %v1056 = vmin.f32 %v1052, %v1028
      %v1057 = vmin.f32 %v1053, %v1029
      %v1058 = vmin.f32 %v1054, %v1030
      %v1059 = vmin.f32 %v1055, %v1031
      %v1060 = vmin.f32 %v1056, %v1032
      %v1061 = vmin.f32 %v1057, %v1033
      %v1062 = vmin.f32 %v1058, %v1034
      %v1063 = vmin.f32 %v1059, %v1035
      %v1064 = vmin.f32 %v1060, %v1036
      %v1065 = vmin.f32 %v1061, %v1037
      %v1066 = vmin.f32 %v1062, %v1038
      %v1067 = vmin.f32 %v1063, %v1039
      %v1068 = vmin.f32 %v1064, %v1040
      %v1069 = vmin.f32 %v1065, %v1041
      %v1070 = vmin.f32 %v1066, %v1067
      %v1071 = vmin.f32 %v1068, %v1069
      %v1072 = vmin.f32 %v1070, %v1071
      %v1073 = vrot.slane %v1072, 4
      %v1074 = vmin.f32 %v1072, %v1073
      %v1075 = vrot.slane %v1074, 2
      %v1076 = vmin.f32 %v1074, %v1075
      %v1077 = vrot.slane %v1076, 1
      %v1078 = vmin.f32 %v1076, %v1077
      %vm1079 = vcmp.eq.f32.partialorder %v1010, %v1078
      %vm1080 = vcmp.eq.f32.partialorder %v1011, %v1078
      %vm1081 = vcmp.eq.f32.partialorder %v1012, %v1078
      %vm1082 = vcmp.eq.f32.partialorder %v1013, %v1078
      %vm1083 = vcmp.eq.f32.partialorder %v1014, %v1078
      %vm1084 = vcmp.eq.f32.partialorder %v1015, %v1078
      %vm1085 = vcmp.eq.f32.partialorder %v1016, %v1078
      %vm1086 = vcmp.eq.f32.partialorder %v1017, %v1078
      %vm1087 = vcmp.eq.f32.partialorder %v1018, %v1078
      %vm1088 = vcmp.eq.f32.partialorder %v1019, %v1078
      %vm1089 = vcmp.eq.f32.partialorder %v1020, %v1078
      %vm1090 = vcmp.eq.f32.partialorder %v1021, %v1078
      %vm1091 = vcmp.eq.f32.partialorder %v1022, %v1078
      %vm1092 = vcmp.eq.f32.partialorder %v1023, %v1078
      %vm1093 = vcmp.eq.f32.partialorder %v1024, %v1078
      %vm1094 = vcmp.eq.f32.partialorder %v1025, %v1078
      %vm1095 = vcmp.eq.f32.partialorder %v1026, %v1078
      %vm1096 = vcmp.eq.f32.partialorder %v1027, %v1078
      %vm1097 = vcmp.eq.f32.partialorder %v1028, %v1078
      %vm1098 = vcmp.eq.f32.partialorder %v1029, %v1078
      %vm1099 = vcmp.eq.f32.partialorder %v1030, %v1078
      %vm1100 = vcmp.eq.f32.partialorder %v1031, %v1078
      %vm1101 = vcmp.eq.f32.partialorder %v1032, %v1078
      %vm1102 = vcmp.eq.f32.partialorder %v1033, %v1078
      %vm1103 = vcmp.eq.f32.partialorder %v1034, %v1078
      %vm1104 = vcmp.eq.f32.partialorder %v1035, %v1078
      %vm1105 = vcmp.eq.f32.partialorder %v1036, %v1078
      %vm1106 = vcmp.eq.f32.partialorder %v1037, %v1078
      %vm1107 = vcmp.eq.f32.partialorder %v1038, %v1078
      %vm1108 = vcmp.eq.f32.partialorder %v1039, %v1078
      %vm1109 = vcmp.eq.f32.partialorder %v1040, %v1078
      %vm1110 = vcmp.eq.f32.partialorder %v1041, %v1078
      %v1111 = vsel %vm1079, %v398, 256
      %v1112 = vsel %vm1080, %v399, 256
      %v1113 = vsel %vm1081, %v400, 256
      %v1114 = vsel %vm1082, %v401, 256
      %v1115 = vsel %vm1083, %v402, 256
      %v1116 = vsel %vm1084, %v403, 256
      %v1117 = vsel %vm1085, %v404, 256
      %v1118 = vsel %vm1086, %v405, 256
      %v1119 = vsel %vm1087, %v406, 256
      %v1120 = vsel %vm1088, %v407, 256
      %v1121 = vsel %vm1089, %v408, 256
      %v1122 = vsel %vm1090, %v409, 256
      %v1123 = vsel %vm1091, %v410, 256
      %v1124 = vsel %vm1092, %v411, 256
      %v1125 = vsel %vm1093, %v412, 256
      %v1126 = vsel %vm1094, %v413, 256
      %v1127 = vsel %vm1095, %v414, 256
      %v1128 = vsel %vm1096, %v415, 256
      %v1129 = vsel %vm1097, %v416, 256
      %v1130 = vsel %vm1098, %v417, 256
      %v1131 = vsel %vm1099, %v418, 256
      %v1132 = vsel %vm1100, %v419, 256
      %v1133 = vsel %vm1101, %v420, 256
      %v1134 = vsel %vm1102, %v421, 256
      %v1135 = vsel %vm1103, %v422, 256
      %v1136 = vsel %vm1104, %v423, 256
      %v1137 = vsel %vm1105, %v424, 256
      %v1138 = vsel %vm1106, %v425, 256
      %v1139 = vsel %vm1107, %v426, 256
      %v1140 = vsel %vm1108, %v427, 256
      %v1141 = vsel %vm1109, %v428, 256
      %v1142 = vsel %vm1110, %v429, 256
      %vm1143 = vcmp.lt.s32.totalorder %v1111, %v1115
      %v1144 = vsel %vm1143, %v1111, %v1115
      %vm1145 = vcmp.lt.s32.totalorder %v1112, %v1116
      %v1146 = vsel %vm1145, %v1112, %v1116
      %vm1147 = vcmp.lt.s32.totalorder %v1113, %v1117
      %v1148 = vsel %vm1147, %v1113, %v1117
      %vm1149 = vcmp.lt.s32.totalorder %v1114, %v1118
      %v1150 = vsel %vm1149, %v1114, %v1118
      %vm1151 = vcmp.lt.s32.totalorder %v1144, %v1119
      %v1152 = vsel %vm1151, %v1144, %v1119
      %vm1153 = vcmp.lt.s32.totalorder %v1146, %v1120
      %v1154 = vsel %vm1153, %v1146, %v1120
      %vm1155 = vcmp.lt.s32.totalorder %v1148, %v1121
      %v1156 = vsel %vm1155, %v1148, %v1121
      %vm1157 = vcmp.lt.s32.totalorder %v1150, %v1122
      %v1158 = vsel %vm1157, %v1150, %v1122
      %vm1159 = vcmp.lt.s32.totalorder %v1152, %v1123
      %v1160 = vsel %vm1159, %v1152, %v1123
      %vm1161 = vcmp.lt.s32.totalorder %v1154, %v1124
      %v1162 = vsel %vm1161, %v1154, %v1124
      %vm1163 = vcmp.lt.s32.totalorder %v1156, %v1125
      %v1164 = vsel %vm1163, %v1156, %v1125
      %vm1165 = vcmp.lt.s32.totalorder %v1158, %v1126
      %v1166 = vsel %vm1165, %v1158, %v1126
      %vm1167 = vcmp.lt.s32.totalorder %v1160, %v1127
      %v1168 = vsel %vm1167, %v1160, %v1127
      %vm1169 = vcmp.lt.s32.totalorder %v1162, %v1128
      %v1170 = vsel %vm1169, %v1162, %v1128
      %vm1171 = vcmp.lt.s32.totalorder %v1164, %v1129
      %v1172 = vsel %vm1171, %v1164, %v1129
      %vm1173 = vcmp.lt.s32.totalorder %v1166, %v1130
      %v1174 = vsel %vm1173, %v1166, %v1130
      %vm1175 = vcmp.lt.s32.totalorder %v1168, %v1131
      %v1176 = vsel %vm1175, %v1168, %v1131
      %vm1177 = vcmp.lt.s32.totalorder %v1170, %v1132
      %v1178 = vsel %vm1177, %v1170, %v1132
      %vm1179 = vcmp.lt.s32.totalorder %v1172, %v1133
      %v1180 = vsel %vm1179, %v1172, %v1133
      %vm1181 = vcmp.lt.s32.totalorder %v1174, %v1134
      %v1182 = vsel %vm1181, %v1174, %v1134
      %vm1183 = vcmp.lt.s32.totalorder %v1176, %v1135
      %v1184 = vsel %vm1183, %v1176, %v1135
      %vm1185 = vcmp.lt.s32.totalorder %v1178, %v1136
      %v1186 = vsel %vm1185, %v1178, %v1136
      %vm1187 = vcmp.lt.s32.totalorder %v1180, %v1137
      %v1188 = vsel %vm1187, %v1180, %v1137
      %vm1189 = vcmp.lt.s32.totalorder %v1182, %v1138
      %v1190 = vsel %vm1189, %v1182, %v1138
      %vm1191 = vcmp.lt.s32.totalorder %v1184, %v1139
      %v1192 = vsel %vm1191, %v1184, %v1139
      %vm1193 = vcmp.lt.s32.totalorder %v1186, %v1140
      %v1194 = vsel %vm1193, %v1186, %v1140
      %vm1195 = vcmp.lt.s32.totalorder %v1188, %v1141
      %v1196 = vsel %vm1195, %v1188, %v1141
      %vm1197 = vcmp.lt.s32.totalorder %v1190, %v1142
      %v1198 = vsel %vm1197, %v1190, %v1142
      %vm1199 = vcmp.lt.s32.totalorder %v1192, %v1194
      %v1200 = vsel %vm1199, %v1192, %v1194
      %vm1201 = vcmp.lt.s32.totalorder %v1196, %v1198
      %v1202 = vsel %vm1201, %v1196, %v1198
      %vm1203 = vcmp.lt.s32.totalorder %v1200, %v1202
      %v1204 = vsel %vm1203, %v1200, %v1202
      %v1205 = vrot.slane %v1204, 4
      %vm1206 = vcmp.lt.s32.totalorder %v1204, %v1205
      %v1207 = vsel %vm1206, %v1204, %v1205
      %v1208 = vrot.slane %v1207, 2
      %vm1209 = vcmp.lt.s32.totalorder %v1207, %v1208
      %v1210 = vsel %vm1209, %v1207, %v1208
      %v1211 = vrot.slane %v1210, 1
      %vm1212 = vcmp.lt.s32.totalorder %v1210, %v1211
      %v1213 = vsel %vm1212, %v1210, %v1211
      %vm1214 = vcmp.eq.s32.totalorder %v398, %v1213
      %vm1215 = vcmp.eq.s32.totalorder %v399, %v1213
      %vm1216 = vcmp.eq.s32.totalorder %v400, %v1213
      %vm1217 = vcmp.eq.s32.totalorder %v401, %v1213
      %vm1218 = vcmp.eq.s32.totalorder %v402, %v1213
      %vm1219 = vcmp.eq.s32.totalorder %v403, %v1213
      %vm1220 = vcmp.eq.s32.totalorder %v404, %v1213
      %vm1221 = vcmp.eq.s32.totalorder %v405, %v1213
      %vm1222 = vcmp.eq.s32.totalorder %v406, %v1213
      %vm1223 = vcmp.eq.s32.totalorder %v407, %v1213
      %vm1224 = vcmp.eq.s32.totalorder %v408, %v1213
      %vm1225 = vcmp.eq.s32.totalorder %v409, %v1213
      %vm1226 = vcmp.eq.s32.totalorder %v410, %v1213
      %vm1227 = vcmp.eq.s32.totalorder %v411, %v1213
      %vm1228 = vcmp.eq.s32.totalorder %v412, %v1213
      %vm1229 = vcmp.eq.s32.totalorder %v413, %v1213
      %vm1230 = vcmp.eq.s32.totalorder %v414, %v1213
      %vm1231 = vcmp.eq.s32.totalorder %v415, %v1213
      %vm1232 = vcmp.eq.s32.totalorder %v416, %v1213
      %vm1233 = vcmp.eq.s32.totalorder %v417, %v1213
      %vm1234 = vcmp.eq.s32.totalorder %v418, %v1213
      %vm1235 = vcmp.eq.s32.totalorder %v419, %v1213
      %vm1236 = vcmp.eq.s32.totalorder %v420, %v1213
      %vm1237 = vcmp.eq.s32.totalorder %v421, %v1213
      %vm1238 = vcmp.eq.s32.totalorder %v422, %v1213
      %vm1239 = vcmp.eq.s32.totalorder %v423, %v1213
      %vm1240 = vcmp.eq.s32.totalorder %v424, %v1213
      %vm1241 = vcmp.eq.s32.totalorder %v425, %v1213
      %vm1242 = vcmp.eq.s32.totalorder %v426, %v1213
      %vm1243 = vcmp.eq.s32.totalorder %v427, %v1213
      %vm1244 = vcmp.eq.s32.totalorder %v428, %v1213
      %vm1245 = vcmp.eq.s32.totalorder %v429, %v1213
      %v1246 = vsel %vm1214, %v170, inf
      %v1247 = vsel %vm1215, %v175, inf
      %v1248 = vsel %vm1216, %v180, inf
      %v1249 = vsel %vm1217, %v185, inf
      %v1250 = vsel %vm1218, %v190, inf
      %v1251 = vsel %vm1219, %v195, inf
      %v1252 = vsel %vm1220, %v200, inf
      %v1253 = vsel %vm1221, %v205, inf
      %v1254 = vsel %vm1222, %v210, inf
      %v1255 = vsel %vm1223, %v215, inf
      %v1256 = vsel %vm1224, %v220, inf
      %v1257 = vsel %vm1225, %v225, inf
      %v1258 = vsel %vm1226, %v230, inf
      %v1259 = vsel %vm1227, %v235, inf
      %v1260 = vsel %vm1228, %v240, inf
      %v1261 = vsel %vm1229, %v245, inf
      %v1262 = vsel %vm1230, %v250, inf
      %v1263 = vsel %vm1231, %v255, inf
      %v1264 = vsel %vm1232, %v260, inf
      %v1265 = vsel %vm1233, %v265, inf
      %v1266 = vsel %vm1234, %v270, inf
      %v1267 = vsel %vm1235, %v275, inf
      %v1268 = vsel %vm1236, %v280, inf
      %v1269 = vsel %vm1237, %v285, inf
      %v1270 = vsel %vm1238, %v290, inf
      %v1271 = vsel %vm1239, %v295, inf
      %v1272 = vsel %vm1240, %v300, inf
      %v1273 = vsel %vm1241, %v305, inf
      %v1274 = vsel %vm1242, %v310, inf
      %v1275 = vsel %vm1243, %v315, inf
      %v1276 = vsel %vm1244, %v320, inf
      %v1277 = vsel %vm1245, %v325, inf
      %v1278 = vmin.f32 %v1246, %v1250
      %v1279 = vmin.f32 %v1247, %v1251
      %v1280 = vmin.f32 %v1248, %v1252
      %v1281 = vmin.f32 %v1249, %v1253
      %v1282 = vmin.f32 %v1278, %v1254
      %v1283 = vmin.f32 %v1279, %v1255
      %v1284 = vmin.f32 %v1280, %v1256
      %v1285 = vmin.f32 %v1281, %v1257
      %v1286 = vmin.f32 %v1282, %v1258
      %v1287 = vmin.f32 %v1283, %v1259
      %v1288 = vmin.f32 %v1284, %v1260
      %v1289 = vmin.f32 %v1285, %v1261
      %v1290 = vmin.f32 %v1286, %v1262
      %v1291 = vmin.f32 %v1287, %v1263
      %v1292 = vmin.f32 %v1288, %v1264
      %v1293 = vmin.f32 %v1289, %v1265
      %v1294 = vmin.f32 %v1290, %v1266
      %v1295 = vmin.f32 %v1291, %v1267
      %v1296 = vmin.f32 %v1292, %v1268
      %v1297 = vmin.f32 %v1293, %v1269
      %v1298 = vmin.f32 %v1294, %v1270
      %v1299 = vmin.f32 %v1295, %v1271
      %v1300 = vmin.f32 %v1296, %v1272
      %v1301 = vmin.f32 %v1297, %v1273
      %v1302 = vmin.f32 %v1298, %v1274
      %v1303 = vmin.f32 %v1299, %v1275
      %v1304 = vmin.f32 %v1300, %v1276
      %v1305 = vmin.f32 %v1301, %v1277
      %v1306 = vmin.f32 %v1302, %v1303
      %v1307 = vmin.f32 %v1304, %v1305
      %v1308 = vmin.f32 %v1306, %v1307
      %v1309 = vrot.slane %v1308, 4
      %v1310 = vmin.f32 %v1308, %v1309
      %v1311 = vrot.slane %v1310, 2
      %v1312 = vmin.f32 %v1310, %v1311
      %v1313 = vrot.slane %v1312, 1
      %v1314 = vmin.f32 %v1312, %v1313
      %v1315 = vadd.f32 %v1009, %v1314
      %v1316 = vsel %vm1214, inf, %v1010
      %v1317 = vsel %vm1215, inf, %v1011
      %v1318 = vsel %vm1216, inf, %v1012
      %v1319 = vsel %vm1217, inf, %v1013
      %v1320 = vsel %vm1218, inf, %v1014
      %v1321 = vsel %vm1219, inf, %v1015
      %v1322 = vsel %vm1220, inf, %v1016
      %v1323 = vsel %vm1221, inf, %v1017
      %v1324 = vsel %vm1222, inf, %v1018
      %v1325 = vsel %vm1223, inf, %v1019
      %v1326 = vsel %vm1224, inf, %v1020
      %v1327 = vsel %vm1225, inf, %v1021
      %v1328 = vsel %vm1226, inf, %v1022
      %v1329 = vsel %vm1227, inf, %v1023
      %v1330 = vsel %vm1228, inf, %v1024
      %v1331 = vsel %vm1229, inf, %v1025
      %v1332 = vsel %vm1230, inf, %v1026
      %v1333 = vsel %vm1231, inf, %v1027
      %v1334 = vsel %vm1232, inf, %v1028
      %v1335 = vsel %vm1233, inf, %v1029
      %v1336 = vsel %vm1234, inf, %v1030
      %v1337 = vsel %vm1235, inf, %v1031
      %v1338 = vsel %vm1236, inf, %v1032
      %v1339 = vsel %vm1237, inf, %v1033
      %v1340 = vsel %vm1238, inf, %v1034
      %v1341 = vsel %vm1239, inf, %v1035
      %v1342 = vsel %vm1240, inf, %v1036
      %v1343 = vsel %vm1241, inf, %v1037
      %v1344 = vsel %vm1242, inf, %v1038
      %v1345 = vsel %vm1243, inf, %v1039
      %v1346 = vsel %vm1244, inf, %v1040
      %v1347 = vsel %vm1245, inf, %v1041
      %v1348 = vmin.f32 %v1316, %v1320
      %v1349 = vmin.f32 %v1317, %v1321
      %v1350 = vmin.f32 %v1318, %v1322
      %v1351 = vmin.f32 %v1319, %v1323
      %v1352 = vmin.f32 %v1348, %v1324
      %v1353 = vmin.f32 %v1349, %v1325
      %v1354 = vmin.f32 %v1350, %v1326
      %v1355 = vmin.f32 %v1351, %v1327
      %v1356 = vmin.f32 %v1352, %v1328
      %v1357 = vmin.f32 %v1353, %v1329
      %v1358 = vmin.f32 %v1354, %v1330
      %v1359 = vmin.f32 %v1355, %v1331
      %v1360 = vmin.f32 %v1356, %v1332
      %v1361 = vmin.f32 %v1357, %v1333
      %v1362 = vmin.f32 %v1358, %v1334
      %v1363 = vmin.f32 %v1359, %v1335
      %v1364 = vmin.f32 %v1360, %v1336
      %v1365 = vmin.f32 %v1361, %v1337
      %v1366 = vmin.f32 %v1362, %v1338
      %v1367 = vmin.f32 %v1363, %v1339
      %v1368 = vmin.f32 %v1364, %v1340
      %v1369 = vmin.f32 %v1365, %v1341
      %v1370 = vmin.f32 %v1366, %v1342
      %v1371 = vmin.f32 %v1367, %v1343
      %v1372 = vmin.f32 %v1368, %v1344
      %v1373 = vmin.f32 %v1369, %v1345
      %v1374 = vmin.f32 %v1370, %v1346
      %v1375 = vmin.f32 %v1371, %v1347
      %v1376 = vmin.f32 %v1372, %v1373
      %v1377 = vmin.f32 %v1374, %v1375
      %v1378 = vmin.f32 %v1376, %v1377
      %v1379 = vrot.slane %v1378, 4
      %v1380 = vmin.f32 %v1378, %v1379
      %v1381 = vrot.slane %v1380, 2
      %v1382 = vmin.f32 %v1380, %v1381
      %v1383 = vrot.slane %v1382, 1
      %v1384 = vmin.f32 %v1382, %v1383
      %vm1385 = vcmp.eq.f32.partialorder %v1316, %v1384
      %vm1386 = vcmp.eq.f32.partialorder %v1317, %v1384
      %vm1387 = vcmp.eq.f32.partialorder %v1318, %v1384
      %vm1388 = vcmp.eq.f32.partialorder %v1319, %v1384
      %vm1389 = vcmp.eq.f32.partialorder %v1320, %v1384
      %vm1390 = vcmp.eq.f32.partialorder %v1321, %v1384
      %vm1391 = vcmp.eq.f32.partialorder %v1322, %v1384
      %vm1392 = vcmp.eq.f32.partialorder %v1323, %v1384
      %vm1393 = vcmp.eq.f32.partialorder %v1324, %v1384
      %vm1394 = vcmp.eq.f32.partialorder %v1325, %v1384
      %vm1395 = vcmp.eq.f32.partialorder %v1326, %v1384
      %vm1396 = vcmp.eq.f32.partialorder %v1327, %v1384
      %vm1397 = vcmp.eq.f32.partialorder %v1328, %v1384
      %vm1398 = vcmp.eq.f32.partialorder %v1329, %v1384
      %vm1399 = vcmp.eq.f32.partialorder %v1330, %v1384
      %vm1400 = vcmp.eq.f32.partialorder %v1331, %v1384
      %vm1401 = vcmp.eq.f32.partialorder %v1332, %v1384
      %vm1402 = vcmp.eq.f32.partialorder %v1333, %v1384
      %vm1403 = vcmp.eq.f32.partialorder %v1334, %v1384
      %vm1404 = vcmp.eq.f32.partialorder %v1335, %v1384
      %vm1405 = vcmp.eq.f32.partialorder %v1336, %v1384
      %vm1406 = vcmp.eq.f32.partialorder %v1337, %v1384
      %vm1407 = vcmp.eq.f32.partialorder %v1338, %v1384
      %vm1408 = vcmp.eq.f32.partialorder %v1339, %v1384
      %vm1409 = vcmp.eq.f32.partialorder %v1340, %v1384
      %vm1410 = vcmp.eq.f32.partialorder %v1341, %v1384
      %vm1411 = vcmp.eq.f32.partialorder %v1342, %v1384
      %vm1412 = vcmp.eq.f32.partialorder %v1343, %v1384
      %vm1413 = vcmp.eq.f32.partialorder %v1344, %v1384
      %vm1414 = vcmp.eq.f32.partialorder %v1345, %v1384
      %vm1415 = vcmp.eq.f32.partialorder %v1346, %v1384
      %vm1416 = vcmp.eq.f32.partialorder %v1347, %v1384
      %v1417 = vsel %vm1385, %v398, 256
      %v1418 = vsel %vm1386, %v399, 256
      %v1419 = vsel %vm1387, %v400, 256
      %v1420 = vsel %vm1388, %v401, 256
      %v1421 = vsel %vm1389, %v402, 256
      %v1422 = vsel %vm1390, %v403, 256
      %v1423 = vsel %vm1391, %v404, 256
      %v1424 = vsel %vm1392, %v405, 256
      %v1425 = vsel %vm1393, %v406, 256
      %v1426 = vsel %vm1394, %v407, 256
      %v1427 = vsel %vm1395, %v408, 256
      %v1428 = vsel %vm1396, %v409, 256
      %v1429 = vsel %vm1397, %v410, 256
      %v1430 = vsel %vm1398, %v411, 256
      %v1431 = vsel %vm1399, %v412, 256
      %v1432 = vsel %vm1400, %v413, 256
      %v1433 = vsel %vm1401, %v414, 256
      %v1434 = vsel %vm1402, %v415, 256
      %v1435 = vsel %vm1403, %v416, 256
      %v1436 = vsel %vm1404, %v417, 256
      %v1437 = vsel %vm1405, %v418, 256
      %v1438 = vsel %vm1406, %v419, 256
      %v1439 = vsel %vm1407, %v420, 256
      %v1440 = vsel %vm1408, %v421, 256
      %v1441 = vsel %vm1409, %v422, 256
      %v1442 = vsel %vm1410, %v423, 256
      %v1443 = vsel %vm1411, %v424, 256
      %v1444 = vsel %vm1412, %v425, 256
      %v1445 = vsel %vm1413, %v426, 256
      %v1446 = vsel %vm1414, %v427, 256
      %v1447 = vsel %vm1415, %v428, 256
      %v1448 = vsel %vm1416, %v429, 256
      %vm1449 = vcmp.lt.s32.totalorder %v1417, %v1421
      %v1450 = vsel %vm1449, %v1417, %v1421
      %vm1451 = vcmp.lt.s32.totalorder %v1418, %v1422
      %v1452 = vsel %vm1451, %v1418, %v1422
      %vm1453 = vcmp.lt.s32.totalorder %v1419, %v1423
      %v1454 = vsel %vm1453, %v1419, %v1423
      %vm1455 = vcmp.lt.s32.totalorder %v1420, %v1424
      %v1456 = vsel %vm1455, %v1420, %v1424
      %vm1457 = vcmp.lt.s32.totalorder %v1450, %v1425
      %v1458 = vsel %vm1457, %v1450, %v1425
      %vm1459 = vcmp.lt.s32.totalorder %v1452, %v1426
      %v1460 = vsel %vm1459, %v1452, %v1426
      %vm1461 = vcmp.lt.s32.totalorder %v1454, %v1427
      %v1462 = vsel %vm1461, %v1454, %v1427
      %vm1463 = vcmp.lt.s32.totalorder %v1456, %v1428
      %v1464 = vsel %vm1463, %v1456, %v1428
      %vm1465 = vcmp.lt.s32.totalorder %v1458, %v1429
      %v1466 = vsel %vm1465, %v1458, %v1429
      %vm1467 = vcmp.lt.s32.totalorder %v1460, %v1430
      %v1468 = vsel %vm1467, %v1460, %v1430
      %vm1469 = vcmp.lt.s32.totalorder %v1462, %v1431
      %v1470 = vsel %vm1469, %v1462, %v1431
      %vm1471 = vcmp.lt.s32.totalorder %v1464, %v1432
      %v1472 = vsel %vm1471, %v1464, %v1432
      %vm1473 = vcmp.lt.s32.totalorder %v1466, %v1433
      %v1474 = vsel %vm1473, %v1466, %v1433
      %vm1475 = vcmp.lt.s32.totalorder %v1468, %v1434
      %v1476 = vsel %vm1475, %v1468, %v1434
      %vm1477 = vcmp.lt.s32.totalorder %v1470, %v1435
      %v1478 = vsel %vm1477, %v1470, %v1435
      %vm1479 = vcmp.lt.s32.totalorder %v1472, %v1436
      %v1480 = vsel %vm1479, %v1472, %v1436
      %vm1481 = vcmp.lt.s32.totalorder %v1474, %v1437
      %v1482 = vsel %vm1481, %v1474, %v1437
      %vm1483 = vcmp.lt.s32.totalorder %v1476, %v1438
      %v1484 = vsel %vm1483, %v1476, %v1438
      %vm1485 = vcmp.lt.s32.totalorder %v1478, %v1439
      %v1486 = vsel %vm1485, %v1478, %v1439
      %vm1487 = vcmp.lt.s32.totalorder %v1480, %v1440
      %v1488 = vsel %vm1487, %v1480, %v1440
      %vm1489 = vcmp.lt.s32.totalorder %v1482, %v1441
      %v1490 = vsel %vm1489, %v1482, %v1441
      %vm1491 = vcmp.lt.s32.totalorder %v1484, %v1442
      %v1492 = vsel %vm1491, %v1484, %v1442
      %vm1493 = vcmp.lt.s32.totalorder %v1486, %v1443
      %v1494 = vsel %vm1493, %v1486, %v1443
      %vm1495 = vcmp.lt.s32.totalorder %v1488, %v1444
      %v1496 = vsel %vm1495, %v1488, %v1444
      %vm1497 = vcmp.lt.s32.totalorder %v1490, %v1445
      %v1498 = vsel %vm1497, %v1490, %v1445
      %vm1499 = vcmp.lt.s32.totalorder %v1492, %v1446
      %v1500 = vsel %vm1499, %v1492, %v1446
      %vm1501 = vcmp.lt.s32.totalorder %v1494, %v1447
      %v1502 = vsel %vm1501, %v1494, %v1447
      %vm1503 = vcmp.lt.s32.totalorder %v1496, %v1448
      %v1504 = vsel %vm1503, %v1496, %v1448
      %vm1505 = vcmp.lt.s32.totalorder %v1498, %v1500
      %v1506 = vsel %vm1505, %v1498, %v1500
      %vm1507 = vcmp.lt.s32.totalorder %v1502, %v1504
      %v1508 = vsel %vm1507, %v1502, %v1504
      %vm1509 = vcmp.lt.s32.totalorder %v1506, %v1508
      %v1510 = vsel %vm1509, %v1506, %v1508
      %v1511 = vrot.slane %v1510, 4
      %vm1512 = vcmp.lt.s32.totalorder %v1510, %v1511
      %v1513 = vsel %vm1512, %v1510, %v1511
      %v1514 = vrot.slane %v1513, 2
      %vm1515 = vcmp.lt.s32.totalorder %v1513, %v1514
      %v1516 = vsel %vm1515, %v1513, %v1514
      %v1517 = vrot.slane %v1516, 1
      %vm1518 = vcmp.lt.s32.totalorder %v1516, %v1517
      %v1519 = vsel %vm1518, %v1516, %v1517
      %vm1520 = vcmp.eq.s32.totalorder %v398, %v1519
      %vm1521 = vcmp.eq.s32.totalorder %v399, %v1519
      %vm1522 = vcmp.eq.s32.totalorder %v400, %v1519
      %vm1523 = vcmp.eq.s32.totalorder %v401, %v1519
      %vm1524 = vcmp.eq.s32.totalorder %v402, %v1519
      %vm1525 = vcmp.eq.s32.totalorder %v403, %v1519
      %vm1526 = vcmp.eq.s32.totalorder %v404, %v1519
      %vm1527 = vcmp.eq.s32.totalorder %v405, %v1519
      %vm1528 = vcmp.eq.s32.totalorder %v406, %v1519
      %vm1529 = vcmp.eq.s32.totalorder %v407, %v1519
      %vm1530 = vcmp.eq.s32.totalorder %v408, %v1519
      %vm1531 = vcmp.eq.s32.totalorder %v409, %v1519
      %vm1532 = vcmp.eq.s32.totalorder %v410, %v1519
      %vm1533 = vcmp.eq.s32.totalorder %v411, %v1519
      %vm1534 = vcmp.eq.s32.totalorder %v412, %v1519
      %vm1535 = vcmp.eq.s32.totalorder %v413, %v1519
      %vm1536 = vcmp.eq.s32.totalorder %v414, %v1519
      %vm1537 = vcmp.eq.s32.totalorder %v415, %v1519
      %vm1538 = vcmp.eq.s32.totalorder %v416, %v1519
      %vm1539 = vcmp.eq.s32.totalorder %v417, %v1519
      %vm1540 = vcmp.eq.s32.totalorder %v418, %v1519
      %vm1541 = vcmp.eq.s32.totalorder %v419, %v1519
      %vm1542 = vcmp.eq.s32.totalorder %v420, %v1519
      %vm1543 = vcmp.eq.s32.totalorder %v421, %v1519
      %vm1544 = vcmp.eq.s32.totalorder %v422, %v1519
      %vm1545 = vcmp.eq.s32.totalorder %v423, %v1519
      %vm1546 = vcmp.eq.s32.totalorder %v424, %v1519
      %vm1547 = vcmp.eq.s32.totalorder %v425, %v1519
      %vm1548 = vcmp.eq.s32.totalorder %v426, %v1519
      %vm1549 = vcmp.eq.s32.totalorder %v427, %v1519
      %vm1550 = vcmp.eq.s32.totalorder %v428, %v1519
      %vm1551 = vcmp.eq.s32.totalorder %v429, %v1519
      %v1552 = vsel %vm1520, %v170, inf
      %v1553 = vsel %vm1521, %v175, inf
      %v1554 = vsel %vm1522, %v180, inf
      %v1555 = vsel %vm1523, %v185, inf
      %v1556 = vsel %vm1524, %v190, inf
      %v1557 = vsel %vm1525, %v195, inf
      %v1558 = vsel %vm1526, %v200, inf
      %v1559 = vsel %vm1527, %v205, inf
      %v1560 = vsel %vm1528, %v210, inf
      %v1561 = vsel %vm1529, %v215, inf
      %v1562 = vsel %vm1530, %v220, inf
      %v1563 = vsel %vm1531, %v225, inf
      %v1564 = vsel %vm1532, %v230, inf
      %v1565 = vsel %vm1533, %v235, inf
      %v1566 = vsel %vm1534, %v240, inf
      %v1567 = vsel %vm1535, %v245, inf
      %v1568 = vsel %vm1536, %v250, inf
      %v1569 = vsel %vm1537, %v255, inf
      %v1570 = vsel %vm1538, %v260, inf
      %v1571 = vsel %vm1539, %v265, inf
      %v1572 = vsel %vm1540, %v270, inf
      %v1573 = vsel %vm1541, %v275, inf
      %v1574 = vsel %vm1542, %v280, inf
      %v1575 = vsel %vm1543, %v285, inf
      %v1576 = vsel %vm1544, %v290, inf
      %v1577 = vsel %vm1545, %v295, inf
      %v1578 = vsel %vm1546, %v300, inf
      %v1579 = vsel %vm1547, %v305, inf
      %v1580 = vsel %vm1548, %v310, inf
      %v1581 = vsel %vm1549, %v315, inf
      %v1582 = vsel %vm1550, %v320, inf
      %v1583 = vsel %vm1551, %v325, inf
      %v1584 = vmin.f32 %v1552, %v1556
      %v1585 = vmin.f32 %v1553, %v1557
      %v1586 = vmin.f32 %v1554, %v1558
      %v1587 = vmin.f32 %v1555, %v1559
      %v1588 = vmin.f32 %v1584, %v1560
      %v1589 = vmin.f32 %v1585, %v1561
      %v1590 = vmin.f32 %v1586, %v1562
      %v1591 = vmin.f32 %v1587, %v1563
      %v1592 = vmin.f32 %v1588, %v1564
      %v1593 = vmin.f32 %v1589, %v1565
      %v1594 = vmin.f32 %v1590, %v1566
      %v1595 = vmin.f32 %v1591, %v1567
      %v1596 = vmin.f32 %v1592, %v1568
      %v1597 = vmin.f32 %v1593, %v1569
      %v1598 = vmin.f32 %v1594, %v1570
      %v1599 = vmin.f32 %v1595, %v1571
      %v1600 = vmin.f32 %v1596, %v1572
      %v1601 = vmin.f32 %v1597, %v1573
      %v1602 = vmin.f32 %v1598, %v1574
      %v1603 = vmin.f32 %v1599, %v1575
      %v1604 = vmin.f32 %v1600, %v1576
      %v1605 = vmin.f32 %v1601, %v1577
      %v1606 = vmin.f32 %v1602, %v1578
      %v1607 = vmin.f32 %v1603, %v1579
      %v1608 = vmin.f32 %v1604, %v1580
      %v1609 = vmin.f32 %v1605, %v1581
      %v1610 = vmin.f32 %v1606, %v1582
      %v1611 = vmin.f32 %v1607, %v1583
      %v1612 = vmin.f32 %v1608, %v1609
      %v1613 = vmin.f32 %v1610, %v1611
      %v1614 = vmin.f32 %v1612, %v1613
      %v1615 = vrot.slane %v1614, 4
      %v1616 = vmin.f32 %v1614, %v1615
      %v1617 = vrot.slane %v1616, 2
      %v1618 = vmin.f32 %v1616, %v1617
      %v1619 = vrot.slane %v1618, 1
      %v1620 = vmin.f32 %v1618, %v1619
      %v1621 = vadd.f32 %v1315, %v1620
      %v1622 = vsel %vm1520, inf, %v1316
      %v1623 = vsel %vm1521, inf, %v1317
      %v1624 = vsel %vm1522, inf, %v1318
      %v1625 = vsel %vm1523, inf, %v1319
      %v1626 = vsel %vm1524, inf, %v1320
      %v1627 = vsel %vm1525, inf, %v1321
      %v1628 = vsel %vm1526, inf, %v1322
      %v1629 = vsel %vm1527, inf, %v1323
      %v1630 = vsel %vm1528, inf, %v1324
      %v1631 = vsel %vm1529, inf, %v1325
      %v1632 = vsel %vm1530, inf, %v1326
      %v1633 = vsel %vm1531, inf, %v1327
      %v1634 = vsel %vm1532, inf, %v1328
      %v1635 = vsel %vm1533, inf, %v1329
      %v1636 = vsel %vm1534, inf, %v1330
      %v1637 = vsel %vm1535, inf, %v1331
      %v1638 = vsel %vm1536, inf, %v1332
      %v1639 = vsel %vm1537, inf, %v1333
      %v1640 = vsel %vm1538, inf, %v1334
      %v1641 = vsel %vm1539, inf, %v1335
      %v1642 = vsel %vm1540, inf, %v1336
      %v1643 = vsel %vm1541, inf, %v1337
      %v1644 = vsel %vm1542, inf, %v1338
      %v1645 = vsel %vm1543, inf, %v1339
      %v1646 = vsel %vm1544, inf, %v1340
      %v1647 = vsel %vm1545, inf, %v1341
      %v1648 = vsel %vm1546, inf, %v1342
      %v1649 = vsel %vm1547, inf, %v1343
      %v1650 = vsel %vm1548, inf, %v1344
      %v1651 = vsel %vm1549, inf, %v1345
      %v1652 = vsel %vm1550, inf, %v1346
      %v1653 = vsel %vm1551, inf, %v1347
      %v1654 = vmin.f32 %v1622, %v1626
      %v1655 = vmin.f32 %v1623, %v1627
      %v1656 = vmin.f32 %v1624, %v1628
      %v1657 = vmin.f32 %v1625, %v1629
      %v1658 = vmin.f32 %v1654, %v1630
      %v1659 = vmin.f32 %v1655, %v1631
      %v1660 = vmin.f32 %v1656, %v1632
      %v1661 = vmin.f32 %v1657, %v1633
      %v1662 = vmin.f32 %v1658, %v1634
      %v1663 = vmin.f32 %v1659, %v1635
      %v1664 = vmin.f32 %v1660, %v1636
      %v1665 = vmin.f32 %v1661, %v1637
      %v1666 = vmin.f32 %v1662, %v1638
      %v1667 = vmin.f32 %v1663, %v1639
      %v1668 = vmin.f32 %v1664, %v1640
      %v1669 = vmin.f32 %v1665, %v1641
      %v1670 = vmin.f32 %v1666, %v1642
      %v1671 = vmin.f32 %v1667, %v1643
      %v1672 = vmin.f32 %v1668, %v1644
      %v1673 = vmin.f32 %v1669, %v1645
      %v1674 = vmin.f32 %v1670, %v1646
      %v1675 = vmin.f32 %v1671, %v1647
      %v1676 = vmin.f32 %v1672, %v1648
      %v1677 = vmin.f32 %v1673, %v1649
      %v1678 = vmin.f32 %v1674, %v1650
      %v1679 = vmin.f32 %v1675, %v1651
      %v1680 = vmin.f32 %v1676, %v1652
      %v1681 = vmin.f32 %v1677, %v1653
      %v1682 = vmin.f32 %v1678, %v1679
      %v1683 = vmin.f32 %v1680, %v1681
      %v1684 = vmin.f32 %v1682, %v1683
      %v1685 = vrot.slane %v1684, 4
      %v1686 = vmin.f32 %v1684, %v1685
      %v1687 = vrot.slane %v1686, 2
      %v1688 = vmin.f32 %v1686, %v1687
      %v1689 = vrot.slane %v1688, 1
      %v1690 = vmin.f32 %v1688, %v1689
      %vm1691 = vcmp.eq.f32.partialorder %v1622, %v1690
      %vm1692 = vcmp.eq.f32.partialorder %v1623, %v1690
      %vm1693 = vcmp.eq.f32.partialorder %v1624, %v1690
      %vm1694 = vcmp.eq.f32.partialorder %v1625, %v1690
      %vm1695 = vcmp.eq.f32.partialorder %v1626, %v1690
      %vm1696 = vcmp.eq.f32.partialorder %v1627, %v1690
      %vm1697 = vcmp.eq.f32.partialorder %v1628, %v1690
      %vm1698 = vcmp.eq.f32.partialorder %v1629, %v1690
      %vm1699 = vcmp.eq.f32.partialorder %v1630, %v1690
      %vm1700 = vcmp.eq.f32.partialorder %v1631, %v1690
      %vm1701 = vcmp.eq.f32.partialorder %v1632, %v1690
      %vm1702 = vcmp.eq.f32.partialorder %v1633, %v1690
      %vm1703 = vcmp.eq.f32.partialorder %v1634, %v1690
      %vm1704 = vcmp.eq.f32.partialorder %v1635, %v1690
      %vm1705 = vcmp.eq.f32.partialorder %v1636, %v1690
      %vm1706 = vcmp.eq.f32.partialorder %v1637, %v1690
      %vm1707 = vcmp.eq.f32.partialorder %v1638, %v1690
      %vm1708 = vcmp.eq.f32.partialorder %v1639, %v1690
      %vm1709 = vcmp.eq.f32.partialorder %v1640, %v1690
      %vm1710 = vcmp.eq.f32.partialorder %v1641, %v1690
      %vm1711 = vcmp.eq.f32.partialorder %v1642, %v1690
      %vm1712 = vcmp.eq.f32.partialorder %v1643, %v1690
      %vm1713 = vcmp.eq.f32.partialorder %v1644, %v1690
      %vm1714 = vcmp.eq.f32.partialorder %v1645, %v1690
      %vm1715 = vcmp.eq.f32.partialorder %v1646, %v1690
      %vm1716 = vcmp.eq.f32.partialorder %v1647, %v1690
      %vm1717 = vcmp.eq.f32.partialorder %v1648, %v1690
      %vm1718 = vcmp.eq.f32.partialorder %v1649, %v1690
      %vm1719 = vcmp.eq.f32.partialorder %v1650, %v1690
      %vm1720 = vcmp.eq.f32.partialorder %v1651, %v1690
      %vm1721 = vcmp.eq.f32.partialorder %v1652, %v1690
      %vm1722 = vcmp.eq.f32.partialorder %v1653, %v1690
      %v1723 = vsel %vm1691, %v398, 256
      %v1724 = vsel %vm1692, %v399, 256
      %v1725 = vsel %vm1693, %v400, 256
      %v1726 = vsel %vm1694, %v401, 256
      %v1727 = vsel %vm1695, %v402, 256
      %v1728 = vsel %vm1696, %v403, 256
      %v1729 = vsel %vm1697, %v404, 256
      %v1730 = vsel %vm1698, %v405, 256
      %v1731 = vsel %vm1699, %v406, 256
      %v1732 = vsel %vm1700, %v407, 256
      %v1733 = vsel %vm1701, %v408, 256
      %v1734 = vsel %vm1702, %v409, 256
      %v1735 = vsel %vm1703, %v410, 256
      %v1736 = vsel %vm1704, %v411, 256
      %v1737 = vsel %vm1705, %v412, 256
      %v1738 = vsel %vm1706, %v413, 256
      %v1739 = vsel %vm1707, %v414, 256
      %v1740 = vsel %vm1708, %v415, 256
      %v1741 = vsel %vm1709, %v416, 256
      %v1742 = vsel %vm1710, %v417, 256
      %v1743 = vsel %vm1711, %v418, 256
      %v1744 = vsel %vm1712, %v419, 256
      %v1745 = vsel %vm1713, %v420, 256
      %v1746 = vsel %vm1714, %v421, 256
      %v1747 = vsel %vm1715, %v422, 256
      %v1748 = vsel %vm1716, %v423, 256
      %v1749 = vsel %vm1717, %v424, 256
      %v1750 = vsel %vm1718, %v425, 256
      %v1751 = vsel %vm1719, %v426, 256
      %v1752 = vsel %vm1720, %v427, 256
      %v1753 = vsel %vm1721, %v428, 256
      %v1754 = vsel %vm1722, %v429, 256
      %vm1755 = vcmp.lt.s32.totalorder %v1723, %v1727
      %v1756 = vsel %vm1755, %v1723, %v1727
      %vm1757 = vcmp.lt.s32.totalorder %v1724, %v1728
      %v1758 = vsel %vm1757, %v1724, %v1728
      %vm1759 = vcmp.lt.s32.totalorder %v1725, %v1729
      %v1760 = vsel %vm1759, %v1725, %v1729
      %vm1761 = vcmp.lt.s32.totalorder %v1726, %v1730
      %v1762 = vsel %vm1761, %v1726, %v1730
      %vm1763 = vcmp.lt.s32.totalorder %v1756, %v1731
      %v1764 = vsel %vm1763, %v1756, %v1731
      %vm1765 = vcmp.lt.s32.totalorder %v1758, %v1732
      %v1766 = vsel %vm1765, %v1758, %v1732
      %vm1767 = vcmp.lt.s32.totalorder %v1760, %v1733
      %v1768 = vsel %vm1767, %v1760, %v1733
      %vm1769 = vcmp.lt.s32.totalorder %v1762, %v1734
      %v1770 = vsel %vm1769, %v1762, %v1734
      %vm1771 = vcmp.lt.s32.totalorder %v1764, %v1735
      %v1772 = vsel %vm1771, %v1764, %v1735
      %vm1773 = vcmp.lt.s32.totalorder %v1766, %v1736
      %v1774 = vsel %vm1773, %v1766, %v1736
      %vm1775 = vcmp.lt.s32.totalorder %v1768, %v1737
      %v1776 = vsel %vm1775, %v1768, %v1737
      %vm1777 = vcmp.lt.s32.totalorder %v1770, %v1738
      %v1778 = vsel %vm1777, %v1770, %v1738
      %vm1779 = vcmp.lt.s32.totalorder %v1772, %v1739
      %v1780 = vsel %vm1779, %v1772, %v1739
      %vm1781 = vcmp.lt.s32.totalorder %v1774, %v1740
      %v1782 = vsel %vm1781, %v1774, %v1740
      %vm1783 = vcmp.lt.s32.totalorder %v1776, %v1741
      %v1784 = vsel %vm1783, %v1776, %v1741
      %vm1785 = vcmp.lt.s32.totalorder %v1778, %v1742
      %v1786 = vsel %vm1785, %v1778, %v1742
      %vm1787 = vcmp.lt.s32.totalorder %v1780, %v1743
      %v1788 = vsel %vm1787, %v1780, %v1743
      %vm1789 = vcmp.lt.s32.totalorder %v1782, %v1744
      %v1790 = vsel %vm1789, %v1782, %v1744
      %vm1791 = vcmp.lt.s32.totalorder %v1784, %v1745
      %v1792 = vsel %vm1791, %v1784, %v1745
      %vm1793 = vcmp.lt.s32.totalorder %v1786, %v1746
      %v1794 = vsel %vm1793, %v1786, %v1746
      %vm1795 = vcmp.lt.s32.totalorder %v1788, %v1747
      %v1796 = vsel %vm1795, %v1788, %v1747
      %vm1797 = vcmp.lt.s32.totalorder %v1790, %v1748
      %v1798 = vsel %vm1797, %v1790, %v1748
      %vm1799 = vcmp.lt.s32.totalorder %v1792, %v1749
      %v1800 = vsel %vm1799, %v1792, %v1749
      %vm1801 = vcmp.lt.s32.totalorder %v1794, %v1750
      %v1802 = vsel %vm1801, %v1794, %v1750
      %vm1803 = vcmp.lt.s32.totalorder %v1796, %v1751
      %v1804 = vsel %vm1803, %v1796, %v1751
      %vm1805 = vcmp.lt.s32.totalorder %v1798, %v1752
      %v1806 = vsel %vm1805, %v1798, %v1752
      %vm1807 = vcmp.lt.s32.totalorder %v1800, %v1753
      %v1808 = vsel %vm1807, %v1800, %v1753
      %vm1809 = vcmp.lt.s32.totalorder %v1802, %v1754
      %v1810 = vsel %vm1809, %v1802, %v1754
      %vm1811 = vcmp.lt.s32.totalorder %v1804, %v1806
      %v1812 = vsel %vm1811, %v1804, %v1806
      %vm1813 = vcmp.lt.s32.totalorder %v1808, %v1810
      %v1814 = vsel %vm1813, %v1808, %v1810
      %vm1815 = vcmp.lt.s32.totalorder %v1812, %v1814
      %v1816 = vsel %vm1815, %v1812, %v1814
      %v1817 = vrot.slane %v1816, 4
      %vm1818 = vcmp.lt.s32.totalorder %v1816, %v1817
      %v1819 = vsel %vm1818, %v1816, %v1817
      %v1820 = vrot.slane %v1819, 2
      %vm1821 = vcmp.lt.s32.totalorder %v1819, %v1820
      %v1822 = vsel %vm1821, %v1819, %v1820
      %v1823 = vrot.slane %v1822, 1
      %vm1824 = vcmp.lt.s32.totalorder %v1822, %v1823
      %v1825 = vsel %vm1824, %v1822, %v1823
      %vm1826 = vcmp.eq.s32.totalorder %v398, %v1825
      %vm1827 = vcmp.eq.s32.totalorder %v399, %v1825
      %vm1828 = vcmp.eq.s32.totalorder %v400, %v1825
      %vm1829 = vcmp.eq.s32.totalorder %v401, %v1825
      %vm1830 = vcmp.eq.s32.totalorder %v402, %v1825
      %vm1831 = vcmp.eq.s32.totalorder %v403, %v1825
      %vm1832 = vcmp.eq.s32.totalorder %v404, %v1825
      %vm1833 = vcmp.eq.s32.totalorder %v405, %v1825
      %vm1834 = vcmp.eq.s32.totalorder %v406, %v1825
      %vm1835 = vcmp.eq.s32.totalorder %v407, %v1825
      %vm1836 = vcmp.eq.s32.totalorder %v408, %v1825
      %vm1837 = vcmp.eq.s32.totalorder %v409, %v1825
      %vm1838 = vcmp.eq.s32.totalorder %v410, %v1825
      %vm1839 = vcmp.eq.s32.totalorder %v411, %v1825
      %vm1840 = vcmp.eq.s32.totalorder %v412, %v1825
      %vm1841 = vcmp.eq.s32.totalorder %v413, %v1825
      %vm1842 = vcmp.eq.s32.totalorder %v414, %v1825
      %vm1843 = vcmp.eq.s32.totalorder %v415, %v1825
      %vm1844 = vcmp.eq.s32.totalorder %v416, %v1825
      %vm1845 = vcmp.eq.s32.totalorder %v417, %v1825
      %vm1846 = vcmp.eq.s32.totalorder %v418, %v1825
      %vm1847 = vcmp.eq.s32.totalorder %v419, %v1825
      %vm1848 = vcmp.eq.s32.totalorder %v420, %v1825
      %vm1849 = vcmp.eq.s32.totalorder %v421, %v1825
      %vm1850 = vcmp.eq.s32.totalorder %v422, %v1825
      %vm1851 = vcmp.eq.s32.totalorder %v423, %v1825
      %vm1852 = vcmp.eq.s32.totalorder %v424, %v1825
      %vm1853 = vcmp.eq.s32.totalorder %v425, %v1825
      %vm1854 = vcmp.eq.s32.totalorder %v426, %v1825
      %vm1855 = vcmp.eq.s32.totalorder %v427, %v1825
      %vm1856 = vcmp.eq.s32.totalorder %v428, %v1825
      %vm1857 = vcmp.eq.s32.totalorder %v429, %v1825
      %v1858 = vsel %vm1826, %v170, inf
      %v1859 = vsel %vm1827, %v175, inf
      %v1860 = vsel %vm1828, %v180, inf
      %v1861 = vsel %vm1829, %v185, inf
      %v1862 = vsel %vm1830, %v190, inf
      %v1863 = vsel %vm1831, %v195, inf
      %v1864 = vsel %vm1832, %v200, inf
      %v1865 = vsel %vm1833, %v205, inf
      %v1866 = vsel %vm1834, %v210, inf
      %v1867 = vsel %vm1835, %v215, inf
      %v1868 = vsel %vm1836, %v220, inf
      %v1869 = vsel %vm1837, %v225, inf
      %v1870 = vsel %vm1838, %v230, inf
      %v1871 = vsel %vm1839, %v235, inf
      %v1872 = vsel %vm1840, %v240, inf
      %v1873 = vsel %vm1841, %v245, inf
      %v1874 = vsel %vm1842, %v250, inf
      %v1875 = vsel %vm1843, %v255, inf
      %v1876 = vsel %vm1844, %v260, inf
      %v1877 = vsel %vm1845, %v265, inf
      %v1878 = vsel %vm1846, %v270, inf
      %v1879 = vsel %vm1847, %v275, inf
      %v1880 = vsel %vm1848, %v280, inf
      %v1881 = vsel %vm1849, %v285, inf
      %v1882 = vsel %vm1850, %v290, inf
      %v1883 = vsel %vm1851, %v295, inf
      %v1884 = vsel %vm1852, %v300, inf
      %v1885 = vsel %vm1853, %v305, inf
      %v1886 = vsel %vm1854, %v310, inf
      %v1887 = vsel %vm1855, %v315, inf
      %v1888 = vsel %vm1856, %v320, inf
      %v1889 = vsel %vm1857, %v325, inf
      %v1890 = vmin.f32 %v1858, %v1862
      %v1891 = vmin.f32 %v1859, %v1863
      %v1892 = vmin.f32 %v1860, %v1864
      %v1893 = vmin.f32 %v1861, %v1865
      %v1894 = vmin.f32 %v1890, %v1866
      %v1895 = vmin.f32 %v1891, %v1867
      %v1896 = vmin.f32 %v1892, %v1868
      %v1897 = vmin.f32 %v1893, %v1869
      %v1898 = vmin.f32 %v1894, %v1870
      %v1899 = vmin.f32 %v1895, %v1871
      %v1900 = vmin.f32 %v1896, %v1872
      %v1901 = vmin.f32 %v1897, %v1873
      %v1902 = vmin.f32 %v1898, %v1874
      %v1903 = vmin.f32 %v1899, %v1875
      %v1904 = vmin.f32 %v1900, %v1876
      %v1905 = vmin.f32 %v1901, %v1877
      %v1906 = vmin.f32 %v1902, %v1878
      %v1907 = vmin.f32 %v1903, %v1879
      %v1908 = vmin.f32 %v1904, %v1880
      %v1909 = vmin.f32 %v1905, %v1881
      %v1910 = vmin.f32 %v1906, %v1882
      %v1911 = vmin.f32 %v1907, %v1883
      %v1912 = vmin.f32 %v1908, %v1884
      %v1913 = vmin.f32 %v1909, %v1885
      %v1914 = vmin.f32 %v1910, %v1886
      %v1915 = vmin.f32 %v1911, %v1887
      %v1916 = vmin.f32 %v1912, %v1888
      %v1917 = vmin.f32 %v1913, %v1889
      %v1918 = vmin.f32 %v1914, %v1915
      %v1919 = vmin.f32 %v1916, %v1917
      %v1920 = vmin.f32 %v1918, %v1919
      %v1921 = vrot.slane %v1920, 4
      %v1922 = vmin.f32 %v1920, %v1921
      %v1923 = vrot.slane %v1922, 2
      %v1924 = vmin.f32 %v1922, %v1923
      %v1925 = vrot.slane %v1924, 1
      %v1926 = vmin.f32 %v1924, %v1925
      %v1927 = vadd.f32 %v1621, %v1926
      %v1928 = vmul.f32 %v1927, 0.2
      %1929 = vst [vmem:[%s133] sm:$0x1] %v1928
      %p1930 = scmp.lt.s32.totalorder %s13, 1
      %s1931 = scalar_select %p1930, %s13, 1
      %s1932 = scalar_lea.vmem %s2, %s1931
      // Predicated region
      $region29: #{body.3} parent=27 // pred_check
        %p1933 = pneg %p78
      $region30: #{body.3} parent=27 // pred_check_branch
        %1935 = sbr.rel (%p1933) target = $region32
      $region31: #{body.3} parent=27 // pred_region
        _
      $region32: #{body.3} parent=27 // pred_fallthru
        _
    $region28: #{body.3} parent=5 // pred_fallthru
      _
    %p1936 = scmp.le.s32.totalorder 2, %s8
    // Predicated region
    $region33: #{body.3} parent=5 // pred_check
      %p1937 = pneg %p1936
    $region34: #{body.3} parent=5 // pred_check_branch
      %1939 = sbr.rel (%p1937) target = $region36
    $region35: #{body.3} parent=5 // pred_region
      %s1940 = ssub.s32 %s8, 2
      // Predicated region
      $region37: #{body.3} parent=35 // pred_check
        %p1941 = pneg %p84
      $region38: #{body.3} parent=35 // pred_check_branch
        %1943 = sbr.rel (%p1941) target = $region40
      $region39: #{body.3} parent=35 // pred_region
        %p1944 = scmp.lt.s32.totalorder %s14, 1
        %s1945 = scalar_select %p1944, %s14, 1
        %s1946 = scalar_lea.vmem %s2, %s1945
      $region40: #{body.3} parent=35 // pred_fallthru
        _
    $region36: #{body.3} parent=5 // pred_fallthru
      _
  $region6: #{body.3} parent=0 // loop_footer
    %s12 = sadd.s32 1, %s8
  $region7: #{body.3} parent=0 // loop_footer_branch
    %7 = sbr.rel target = $region3
  $region8: #{body.3} parent=0 // loop_exit
    _

</llo_original>
